<compile_context>
chip_gen: v6e
topology: v6e:2x2x1
jax: 0.10.0
libtpu: 0.0.40
codegen_flags: <defaults>
</compile_context>

<pallas_src>
import jax
import jax.numpy as jnp
import numpy as np
from jax.experimental import pallas as pl
from jax.experimental.pallas import tpu as pltpu

# ---------------- model sizes (module defaults, small node count) ------------
N_NODES = 64
DES_SIZE = 768
TWEET_SIZE = 768
NUM_PROP_SIZE = 6
CAT_PROP_SIZE = 11
FEAT_TOTAL = DES_SIZE + TWEET_SIZE + NUM_PROP_SIZE + CAT_PROP_SIZE   # 1553
FEAT_PAD = 1664                                                       # 13 * 128 (lane aligned)
EMB = 128
EMB_Q = EMB // 4          # 32
N_EDGES = 256
N_REL = 2
N_LAYERS = 8
OUT_PAD = 128             # lane-dense padded head width (real output width = 2)
NEG_SLOPE = 0.01          # nn.LeakyReLU default


def _leaky(x):
    return jnp.where(x > 0, x, NEG_SLOPE * x)


def _dot(a, b):
    return jnp.dot(a, b, preferred_element_type=jnp.float32)


def _vspec():
    return pl.BlockSpec(memory_space=pltpu.MemorySpace.VMEM)


# ---------------------------- fused Pallas kernel -----------------------------
def fused_kernel(feat_ref, adj_ref,
                 wenc_ref, benc_ref,
                 wi_ref, bi_ref,
                 wrel_ref, brel_ref,
                 wo1_ref, bo1_ref, wo2_ref, bo2_ref,
                 o_ref):
    # ---- encoder: one block-diagonal K=1664, N=128 MXU matmul + LeakyReLU.
    #      Elementwise LeakyReLU on the concat == per-branch LeakyReLU. ----
    enc = _leaky(_dot(feat_ref[...], wenc_ref[...]) + benc_ref[...])     # (N, 128)
    x = _leaky(_dot(enc, wi_ref[...]) + bi_ref[...])                     # (N, 128) linear_relu_input

    # ---- 8 RGCN layers: 2 MXU contractions per layer.
    #      out = [A0 | A1] @ [x@W0 ; x@W1] + x@Wroot + b
    #      (adjacency / bias read from refs inside the loop -> low vreg liveness). ----
    for _ in range(N_LAYERS):
        xw = _dot(x, wrel_ref[...])                                      # (N, 384): [xW0 | xW1 | xWroot]
        stacked = jnp.concatenate([xw[:, 0:EMB], xw[:, EMB:2 * EMB]], axis=0)   # (2N, 128) sublane stack
        x = _dot(adj_ref[...], stacked) + xw[:, 2 * EMB:3 * EMB] + brel_ref[...]
        # F.dropout(p=0.3, training=False) -> identity (eval mode)

    # ---- output head: wo2/bo2 zero-padded to 128 lanes -> unmasked lane-dense store. ----
    h = _leaky(_dot(x, wo1_ref[...]) + bo1_ref[...])                     # linear_relu_output1
    o_ref[...] = _dot(h, wo2_ref[...]) + bo2_ref[...]                    # linear_output2 (padded)


# ---------------------------- pallas_call wrapper ------------------------------
def run_fused(feat_pad, adj_cat, pk):
    args = (feat_pad, adj_cat,
            pk["wenc"], pk["benc"],
            pk["wi"], pk["bi"],
            pk["wrel"], pk["brel"],
            pk["wo1"], pk["bo1"], pk["wo2"], pk["bo2"])

    out = pl.pallas_call(
        fused_kernel,
        out_shape=jax.ShapeDtypeStruct((N_NODES, OUT_PAD), jnp.float32),
        in_specs=[_vspec()] * len(args),
        out_specs=_vspec(),
        cost_estimate=pl.CostEstimate(flops=100_000_000, transcendentals=0,
                                      bytes_accessed=2_000_000),
    )(*args)
    return out[:, :2]


# ---------------------------- parameter init ----------------------------------
def make_linear(key, fan_in, fan_out):
    k1, k2 = jax.random.split(key)
    bound = 1.0 / float(np.sqrt(fan_in))
    w = jax.random.uniform(k1, (fan_in, fan_out), jnp.float32, -bound, bound)
    b = jax.random.uniform(k2, (1, fan_out), jnp.float32, -bound, bound)
    return w, b


def init_params(key):
    keys = jax.random.split(key, 10)
    p = {}
    p["wd"], p["bd"] = make_linear(keys[0], DES_SIZE, EMB_Q)
    p["wt"], p["bt"] = make_linear(keys[1], TWEET_SIZE, EMB_Q)
    p["wn"], p["bn"] = make_linear(keys[2], NUM_PROP_SIZE, EMB_Q)
    p["wc"], p["bc"] = make_linear(keys[3], CAT_PROP_SIZE, EMB_Q)
    p["wi"], p["bi"] = make_linear(keys[4], EMB, EMB)            # linear_relu_input
    p["wo1"], p["bo1"] = make_linear(keys[5], EMB, EMB)          # linear_relu_output1
    p["wo2"], p["bo2"] = make_linear(keys[6], EMB, 2)            # linear_output2
    # RGCNConv(EMB, EMB, num_relations=2): per-relation weights, root weight, bias.
    bound = 1.0 / float(np.sqrt(EMB))
    p["rgcn_w"] = jax.random.uniform(keys[7], (N_REL, EMB, EMB), jnp.float32, -bound, bound)
    p["rgcn_root"] = jax.random.uniform(keys[8], (EMB, EMB), jnp.float32, -bound, bound)
    p["rgcn_b"] = jax.random.uniform(keys[9], (1, EMB), jnp.float32, -bound, bound)
    return p


def pack_params(p):
    """One-time packing of kernel-ready weights (hoisted out of the per-forward path)."""
    # Block-diagonal encoder weight: [des|tweet|num|cat] features -> 4x32 output lanes.
    r1 = DES_SIZE
    r2 = r1 + TWEET_SIZE
    r3 = r2 + NUM_PROP_SIZE
    r4 = r3 + CAT_PROP_SIZE
    wenc = jnp.zeros((FEAT_PAD, EMB), jnp.float32)
    wenc = wenc.at[0:r1, 0 * EMB_Q:1 * EMB_Q].set(p["wd"])
    wenc = wenc.at[r1:r2, 1 * EMB_Q:2 * EMB_Q].set(p["wt"])
    wenc = wenc.at[r2:r3, 2 * EMB_Q:3 * EMB_Q].set(p["wn"])
    wenc = wenc.at[r3:r4, 3 * EMB_Q:4 * EMB_Q].set(p["wc"])
    benc = jnp.concatenate([p["bd"], p["bt"], p["bn"], p["bc"]], axis=1)     # (1, 128)
    # Relational weights: [W0 | W1 | Wroot] -> (128, 384), one MXU push per layer.
    wrel = jnp.concatenate([p["rgcn_w"][0], p["rgcn_w"][1], p["rgcn_root"]], axis=1)
    # Lane-dense head: zero-pad to 128 output columns.
    wo2 = jnp.zeros((EMB, OUT_PAD), jnp.float32).at[:, :2].set(p["wo2"])
    bo2 = jnp.zeros((1, OUT_PAD), jnp.float32).at[:, :2].set(p["bo2"])
    return {"wenc": wenc, "benc": benc,
            "wi": p["wi"], "bi": p["bi"],
            "wrel": wrel, "brel": p["rgcn_b"],
            "wo1": p["wo1"], "bo1": p["bo1"],
            "wo2": wo2, "bo2": bo2}


# ---------------------------- adjacency glue -----------------------------------
def build_adjacency(edge_index, edge_type):
    """Dense row-normalized adjacency per relation (mean aggregation)."""
    src, dst = edge_index[0], edge_index[1]
    adj = jnp.zeros((N_REL, N_NODES, N_NODES), jnp.float32)
    adj = adj.at[edge_type, dst, src].add(1.0)
    deg = adj.sum(axis=2, keepdims=True)
    return adj / jnp.maximum(deg, 1.0)


# ---------------------------- full forward ------------------------------------
@jax.jit
def forward(packed, des, tweet, num_prop, cat_prop, edge_index, edge_type):
    adj = build_adjacency(edge_index, edge_type)
    adj_cat = jnp.concatenate([adj[0], adj[1]], axis=1)                  # (N, 2N) lane-dense
    feat = jnp.concatenate([des, tweet, num_prop, cat_prop], axis=1)     # (N, 1553)
    feat_pad = jnp.pad(feat, ((0, 0), (0, FEAT_PAD - FEAT_TOTAL)))       # (N, 1664)
    return run_fused(feat_pad, adj_cat, packed)


# ---------------------------- pure-JAX reference -------------------------------
def ref_forward(params, des, tweet, num_prop, cat_prop, edge_index, edge_type):
    adj = build_adjacency(edge_index, edge_type)
    d = _leaky(des @ params["wd"] + params["bd"])
    t = _leaky(tweet @ params["wt"] + params["bt"])
    n = _leaky(num_prop @ params["wn"] + params["bn"])
    c = _leaky(cat_prop @ params["wc"] + params["bc"])
    x = jnp.concatenate([d, t, n, c], axis=1)
    x = _leaky(x @ params["wi"] + params["bi"])
    for _ in range(N_LAYERS):
        x = (adj[0] @ x @ params["rgcn_w"][0] + adj[1] @ x @ params["rgcn_w"][1]
             + x @ params["rgcn_root"] + params["rgcn_b"])
    x = _leaky(x @ params["wo1"] + params["bo1"])
    return x @ params["wo2"] + params["bo2"]


# ---------------------------- main ---------------------------------------------
if __name__ == "__main__":
    key = jax.random.PRNGKey(0)
    k_par, k_des, k_tw, k_np, k_cp, k_src, k_dst, k_et = jax.random.split(key, 8)

    params = init_params(k_par)
    packed = pack_params(params)          # one-time packing, outside the per-forward path

    des = jax.random.normal(k_des, (N_NODES, DES_SIZE), jnp.float32)
    tweet = jax.random.normal(k_tw, (N_NODES, TWEET_SIZE), jnp.float32)
    num_prop = jax.random.normal(k_np, (N_NODES, NUM_PROP_SIZE), jnp.float32)
    cat_prop = jax.random.normal(k_cp, (N_NODES, CAT_PROP_SIZE), jnp.float32)

    src = jax.random.randint(k_src, (N_EDGES,), 0, N_NODES, jnp.int32)
    dst = jax.random.randint(k_dst, (N_EDGES,), 0, N_NODES, jnp.int32)
    edge_index = jnp.stack([src, dst], axis=0)                           # (2, E)
    edge_type = jax.random.randint(k_et, (N_EDGES,), 0, N_REL, jnp.int32)

    out = forward(packed, des, tweet, num_prop, cat_prop, edge_index, edge_type)
    out = jax.block_until_ready(out)

    ref = ref_forward(params, des, tweet, num_prop, cat_prop, edge_index, edge_type)
    np.testing.assert_allclose(np.asarray(out), np.asarray(ref), rtol=1e-3, atol=1e-3)
    assert out.shape == (N_NODES, 2)

    print("KERNEL_OK")
</pallas_src>

<mosaic_0001>
module attributes {stable_mosaic.version = 11 : i64} {
  func.func private @main(%arg0: i32) attributes {dimension_semantics = [#tpu.dimension_semantics<core_parallel>], iteration_bounds = array<i64: 2>, tpu.core_type = #tpu.core_type<sc_scalar_subcore>, window_params = []} {
    return
  }
}

module attributes {stable_mosaic.version = 11 : i64} {
  func.func private @main(%arg0: i32) attributes {dimension_semantics = [#tpu.dimension_semantics<core_parallel>], iteration_bounds = array<i64: 2>, tpu.core_type = #tpu.core_type<sc_scalar_subcore>, window_params = []} {
    return
  }
}

module attributes {stable_mosaic.version = 11 : i64} {
  func.func @fused_kernel(%arg0: memref<64x1664xf32, #tpu.memory_space<vmem>>, %arg1: memref<64x128xf32, #tpu.memory_space<vmem>>, %arg2: memref<1664x128xf32, #tpu.memory_space<vmem>>, %arg3: memref<1x128xf32, #tpu.memory_space<vmem>>, %arg4: memref<128x128xf32, #tpu.memory_space<vmem>>, %arg5: memref<1x128xf32, #tpu.memory_space<vmem>>, %arg6: memref<128x384xf32, #tpu.memory_space<vmem>>, %arg7: memref<1x128xf32, #tpu.memory_space<vmem>>, %arg8: memref<128x128xf32, #tpu.memory_space<vmem>>, %arg9: memref<1x128xf32, #tpu.memory_space<vmem>>, %arg10: memref<128x128xf32, #tpu.memory_space<vmem>>, %arg11: memref<1x128xf32, #tpu.memory_space<vmem>>, %arg12: memref<64x128xf32, #tpu.memory_space<vmem>>) attributes {dimension_semantics = [], scalar_prefetch = 0 : i64, scratch_operands = 0 : i64, tpu.core_type = #tpu.core_type<tc>} {
    %c0 = arith.constant 0 : index
    %c0_0 = arith.constant 0 : index
    %0 = vector.load %arg0[%c0, %c0_0] : memref<64x1664xf32, #tpu.memory_space<vmem>>, vector<64x1664xf32>
    %c0_1 = arith.constant 0 : index
    %c0_2 = arith.constant 0 : index
    %1 = vector.load %arg2[%c0_1, %c0_2] : memref<1664x128xf32, #tpu.memory_space<vmem>>, vector<1664x128xf32>
    %cst = arith.constant dense<0.000000e+00> : vector<64x128xf32>
    %2 = tpu.matmul %0, %1, %cst {dimension_numbers = #tpu.dot_dimension_numbers<[1], [0], [0], [1], [0, 0, 1, 1], [], []>} : vector<64x1664xf32>, vector<1664x128xf32>, vector<64x128xf32> -> vector<64x128xf32>
    %c0_3 = arith.constant 0 : index
    %c0_4 = arith.constant 0 : index
    %3 = vector.load %arg3[%c0_3, %c0_4] : memref<1x128xf32, #tpu.memory_space<vmem>>, vector<1x128xf32>
    %4 = vector.broadcast %3 : vector<1x128xf32> to vector<64x128xf32>
    %5 = arith.addf %2, %4 : vector<64x128xf32>
    %cst_5 = arith.constant 0.000000e+00 : f32
    %6 = vector.broadcast %cst_5 : f32 to vector<64x128xf32>
    %7 = arith.cmpf ogt, %5, %6 : vector<64x128xf32>
    %cst_6 = arith.constant 0.00999999977 : f32
    %8 = vector.broadcast %cst_6 : f32 to vector<64x128xf32>
    %9 = arith.mulf %8, %5 : vector<64x128xf32>
    %10 = arith.select %7, %5, %9 : vector<64x128xi1>, vector<64x128xf32>
    %c0_7 = arith.constant 0 : index
    %c0_8 = arith.constant 0 : index
    %11 = vector.load %arg4[%c0_7, %c0_8] : memref<128x128xf32, #tpu.memory_space<vmem>>, vector<128x128xf32>
    %cst_9 = arith.constant dense<0.000000e+00> : vector<64x128xf32>
    %12 = tpu.matmul %10, %11, %cst_9 {dimension_numbers = #tpu.dot_dimension_numbers<[1], [0], [0], [1], [0, 0, 1, 1], [], []>} : vector<64x128xf32>, vector<128x128xf32>, vector<64x128xf32> -> vector<64x128xf32>
    %c0_10 = arith.constant 0 : index
    %c0_11 = arith.constant 0 : index
    %13 = vector.load %arg5[%c0_10, %c0_11] : memref<1x128xf32, #tpu.memory_space<vmem>>, vector<1x128xf32>
    %14 = vector.broadcast %13 : vector<1x128xf32> to vector<64x128xf32>
    %15 = arith.addf %12, %14 : vector<64x128xf32>
    %cst_12 = arith.constant 0.000000e+00 : f32
    %16 = vector.broadcast %cst_12 : f32 to vector<64x128xf32>
    %17 = arith.cmpf ogt, %15, %16 : vector<64x128xf32>
    %cst_13 = arith.constant 0.00999999977 : f32
    %18 = vector.broadcast %cst_13 : f32 to vector<64x128xf32>
    %19 = arith.mulf %18, %15 : vector<64x128xf32>
    %20 = arith.select %17, %15, %19 : vector<64x128xi1>, vector<64x128xf32>
    %c0_14 = arith.constant 0 : index
    %c0_15 = arith.constant 0 : index
    %21 = vector.load %arg6[%c0_14, %c0_15] : memref<128x384xf32, #tpu.memory_space<vmem>>, vector<128x384xf32>
    %cst_16 = arith.constant dense<0.000000e+00> : vector<64x384xf32>
    %22 = tpu.matmul %20, %21, %cst_16 {dimension_numbers = #tpu.dot_dimension_numbers<[1], [0], [0], [1], [0, 0, 1, 1], [], []>} : vector<64x128xf32>, vector<128x384xf32>, vector<64x384xf32> -> vector<64x384xf32>
    %23 = vector.extract_strided_slice %22 {offsets = [0, 0], sizes = [64, 128], strides = [1, 1]} : vector<64x384xf32> to vector<64x128xf32>
    %24 = vector.extract_strided_slice %22 {offsets = [0, 128], sizes = [64, 128], strides = [1, 1]} : vector<64x384xf32> to vector<64x128xf32>
    %25 = tpu.concatenate %23, %24 in 0 : vector<64x128xf32>, vector<64x128xf32> -> vector<128x128xf32>
    %c0_17 = arith.constant 0 : index
    %c0_18 = arith.constant 0 : index
    %26 = vector.load %arg1[%c0_17, %c0_18] : memref<64x128xf32, #tpu.memory_space<vmem>>, vector<64x128xf32>
    %cst_19 = arith.constant dense<0.000000e+00> : vector<64x128xf32>
    %27 = tpu.matmul %26, %25, %cst_19 {dimension_numbers = #tpu.dot_dimension_numbers<[1], [0], [0], [1], [0, 0, 1, 1], [], []>} : vector<64x128xf32>, vector<128x128xf32>, vector<64x128xf32> -> vector<64x128xf32>
    %28 = vector.extract_strided_slice %22 {offsets = [0, 256], sizes = [64, 128], strides = [1, 1]} : vector<64x384xf32> to vector<64x128xf32>
    %29 = arith.addf %27, %28 : vector<64x128xf32>
    %c0_20 = arith.constant 0 : index
    %c0_21 = arith.constant 0 : index
    %30 = vector.load %arg7[%c0_20, %c0_21] : memref<1x128xf32, #tpu.memory_space<vmem>>, vector<1x128xf32>
    %31 = vector.broadcast %30 : vector<1x128xf32> to vector<64x128xf32>
    %32 = arith.addf %29, %31 : vector<64x128xf32>
    %c0_22 = arith.constant 0 : index
    %c0_23 = arith.constant 0 : index
    %33 = vector.load %arg6[%c0_22, %c0_23] : memref<128x384xf32, #tpu.memory_space<vmem>>, vector<128x384xf32>
    %cst_24 = arith.constant dense<0.000000e+00> : vector<64x384xf32>
    %34 = tpu.matmul %32, %33, %cst_24 {dimension_numbers = #tpu.dot_dimension_numbers<[1], [0], [0], [1], [0, 0, 1, 1], [], []>} : vector<64x128xf32>, vector<128x384xf32>, vector<64x384xf32> -> vector<64x384xf32>
    %35 = vector.extract_strided_slice %34 {offsets = [0, 0], sizes = [64, 128], strides = [1, 1]} : vector<64x384xf32> to vector<64x128xf32>
    %36 = vector.extract_strided_slice %34 {offsets = [0, 128], sizes = [64, 128], strides = [1, 1]} : vector<64x384xf32> to vector<64x128xf32>
    %37 = tpu.concatenate %35, %36 in 0 : vector<64x128xf32>, vector<64x128xf32> -> vector<128x128xf32>
    %c0_25 = arith.constant 0 : index
    %c0_26 = arith.constant 0 : index
    %38 = vector.load %arg1[%c0_25, %c0_26] : memref<64x128xf32, #tpu.memory_space<vmem>>, vector<64x128xf32>
    %cst_27 = arith.constant dense<0.000000e+00> : vector<64x128xf32>
    %39 = tpu.matmul %38, %37, %cst_27 {dimension_numbers = #tpu.dot_dimension_numbers<[1], [0], [0], [1], [0, 0, 1, 1], [], []>} : vector<64x128xf32>, vector<128x128xf32>, vector<64x128xf32> -> vector<64x128xf32>
    %40 = vector.extract_strided_slice %34 {offsets = [0, 256], sizes = [64, 128], strides = [1, 1]} : vector<64x384xf32> to vector<64x128xf32>
    %41 = arith.addf %39, %40 : vector<64x128xf32>
    %c0_28 = arith.constant 0 : index
    %c0_29 = arith.constant 0 : index
    %42 = vector.load %arg7[%c0_28, %c0_29] : memref<1x128xf32, #tpu.memory_space<vmem>>, vector<1x128xf32>
    %43 = vector.broadcast %42 : vector<1x128xf32> to vector<64x128xf32>
    %44 = arith.addf %41, %43 : vector<64x128xf32>
    %c0_30 = arith.constant 0 : index
    %c0_31 = arith.constant 0 : index
    %45 = vector.load %arg6[%c0_30, %c0_31] : memref<128x384xf32, #tpu.memory_space<vmem>>, vector<128x384xf32>
    %cst_32 = arith.constant dense<0.000000e+00> : vector<64x384xf32>
    %46 = tpu.matmul %44, %45, %cst_32 {dimension_numbers = #tpu.dot_dimension_numbers<[1], [0], [0], [1], [0, 0, 1, 1], [], []>} : vector<64x128xf32>, vector<128x384xf32>, vector<64x384xf32> -> vector<64x384xf32>
    %47 = vector.extract_strided_slice %46 {offsets = [0, 0], sizes = [64, 128], strides = [1, 1]} : vector<64x384xf32> to vector<64x128xf32>
    %48 = vector.extract_strided_slice %46 {offsets = [0, 128], sizes = [64, 128], strides = [1, 1]} : vector<64x384xf32> to vector<64x128xf32>
    %49 = tpu.concatenate %47, %48 in 0 : vector<64x128xf32>, vector<64x128xf32> -> vector<128x128xf32>
    %c0_33 = arith.constant 0 : index
    %c0_34 = arith.constant 0 : index
    %50 = vector.load %arg1[%c0_33, %c0_34] : memref<64x128xf32, #tpu.memory_space<vmem>>, vector<64x128xf32>
    %cst_35 = arith.constant dense<0.000000e+00> : vector<64x128xf32>
    %51 = tpu.matmul %50, %49, %cst_35 {dimension_numbers = #tpu.dot_dimension_numbers<[1], [0], [0], [1], [0, 0, 1, 1], [], []>} : vector<64x128xf32>, vector<128x128xf32>, vector<64x128xf32> -> vector<64x128xf32>
    %52 = vector.extract_strided_slice %46 {offsets = [0, 256], sizes = [64, 128], strides = [1, 1]} : vector<64x384xf32> to vector<64x128xf32>
    %53 = arith.addf %51, %52 : vector<64x128xf32>
    %c0_36 = arith.constant 0 : index
    %c0_37 = arith.constant 0 : index
    %54 = vector.load %arg7[%c0_36, %c0_37] : memref<1x128xf32, #tpu.memory_space<vmem>>, vector<1x128xf32>
    %55 = vector.broadcast %54 : vector<1x128xf32> to vector<64x128xf32>
    %56 = arith.addf %53, %55 : vector<64x128xf32>
    %c0_38 = arith.constant 0 : index
    %c0_39 = arith.constant 0 : index
    %57 = vector.load %arg6[%c0_38, %c0_39] : memref<128x384xf32, #tpu.memory_space<vmem>>, vector<128x384xf32>
    %cst_40 = arith.constant dense<0.000000e+00> : vector<64x384xf32>
    %58 = tpu.matmul %56, %57, %cst_40 {dimension_numbers = #tpu.dot_dimension_numbers<[1], [0], [0], [1], [0, 0, 1, 1], [], []>} : vector<64x128xf32>, vector<128x384xf32>, vector<64x384xf32> -> vector<64x384xf32>
    %59 = vector.extract_strided_slice %58 {offsets = [0, 0], sizes = [64, 128], strides = [1, 1]} : vector<64x384xf32> to vector<64x128xf32>
    %60 = vector.extract_strided_slice %58 {offsets = [0, 128], sizes = [64, 128], strides = [1, 1]} : vector<64x384xf32> to vector<64x128xf32>
    %61 = tpu.concatenate %59, %60 in 0 : vector<64x128xf32>, vector<64x128xf32> -> vector<128x128xf32>
    %c0_41 = arith.constant 0 : index
    %c0_42 = arith.constant 0 : index
    %62 = vector.load %arg1[%c0_41, %c0_42] : memref<64x128xf32, #tpu.memory_space<vmem>>, vector<64x128xf32>
    %cst_43 = arith.constant dense<0.000000e+00> : vector<64x128xf32>
    %63 = tpu.matmul %62, %61, %cst_43 {dimension_numbers = #tpu.dot_dimension_numbers<[1], [0], [0], [1], [0, 0, 1, 1], [], []>} : vector<64x128xf32>, vector<128x128xf32>, vector<64x128xf32> -> vector<64x128xf32>
    %64 = vector.extract_strided_slice %58 {offsets = [0, 256], sizes = [64, 128], strides = [1, 1]} : vector<64x384xf32> to vector<64x128xf32>
    %65 = arith.addf %63, %64 : vector<64x128xf32>
    %c0_44 = arith.constant 0 : index
    %c0_45 = arith.constant 0 : index
    %66 = vector.load %arg7[%c0_44, %c0_45] : memref<1x128xf32, #tpu.memory_space<vmem>>, vector<1x128xf32>
    %67 = vector.broadcast %66 : vector<1x128xf32> to vector<64x128xf32>
    %68 = arith.addf %65, %67 : vector<64x128xf32>
    %c0_46 = arith.constant 0 : index
    %c0_47 = arith.constant 0 : index
    %69 = vector.load %arg6[%c0_46, %c0_47] : memref<128x384xf32, #tpu.memory_space<vmem>>, vector<128x384xf32>
    %cst_48 = arith.constant dense<0.000000e+00> : vector<64x384xf32>
    %70 = tpu.matmul %68, %69, %cst_48 {dimension_numbers = #tpu.dot_dimension_numbers<[1], [0], [0], [1], [0, 0, 1, 1], [], []>} : vector<64x128xf32>, vector<128x384xf32>, vector<64x384xf32> -> vector<64x384xf32>
    %71 = vector.extract_strided_slice %70 {offsets = [0, 0], sizes = [64, 128], strides = [1, 1]} : vector<64x384xf32> to vector<64x128xf32>
    %72 = vector.extract_strided_slice %70 {offsets = [0, 128], sizes = [64, 128], strides = [1, 1]} : vector<64x384xf32> to vector<64x128xf32>
    %73 = tpu.concatenate %71, %72 in 0 : vector<64x128xf32>, vector<64x128xf32> -> vector<128x128xf32>
    %c0_49 = arith.constant 0 : index
    %c0_50 = arith.constant 0 : index
    %74 = vector.load %arg1[%c0_49, %c0_50] : memref<64x128xf32, #tpu.memory_space<vmem>>, vector<64x128xf32>
    %cst_51 = arith.constant dense<0.000000e+00> : vector<64x128xf32>
    %75 = tpu.matmul %74, %73, %cst_51 {dimension_numbers = #tpu.dot_dimension_numbers<[1], [0], [0], [1], [0, 0, 1, 1], [], []>} : vector<64x128xf32>, vector<128x128xf32>, vector<64x128xf32> -> vector<64x128xf32>
    %76 = vector.extract_strided_slice %70 {offsets = [0, 256], sizes = [64, 128], strides = [1, 1]} : vector<64x384xf32> to vector<64x128xf32>
    %77 = arith.addf %75, %76 : vector<64x128xf32>
    %c0_52 = arith.constant 0 : index
    %c0_53 = arith.constant 0 : index
    %78 = vector.load %arg7[%c0_52, %c0_53] : memref<1x128xf32, #tpu.memory_space<vmem>>, vector<1x128xf32>
    %79 = vector.broadcast %78 : vector<1x128xf32> to vector<64x128xf32>
    %80 = arith.addf %77, %79 : vector<64x128xf32>
    %c0_54 = arith.constant 0 : index
    %c0_55 = arith.constant 0 : index
    %81 = vector.load %arg6[%c0_54, %c0_55] : memref<128x384xf32, #tpu.memory_space<vmem>>, vector<128x384xf32>
    %cst_56 = arith.constant dense<0.000000e+00> : vector<64x384xf32>
    %82 = tpu.matmul %80, %81, %cst_56 {dimension_numbers = #tpu.dot_dimension_numbers<[1], [0], [0], [1], [0, 0, 1, 1], [], []>} : vector<64x128xf32>, vector<128x384xf32>, vector<64x384xf32> -> vector<64x384xf32>
    %83 = vector.extract_strided_slice %82 {offsets = [0, 0], sizes = [64, 128], strides = [1, 1]} : vector<64x384xf32> to vector<64x128xf32>
    %84 = vector.extract_strided_slice %82 {offsets = [0, 128], sizes = [64, 128], strides = [1, 1]} : vector<64x384xf32> to vector<64x128xf32>
    %85 = tpu.concatenate %83, %84 in 0 : vector<64x128xf32>, vector<64x128xf32> -> vector<128x128xf32>
    %c0_57 = arith.constant 0 : index
    %c0_58 = arith.constant 0 : index
    %86 = vector.load %arg1[%c0_57, %c0_58] : memref<64x128xf32, #tpu.memory_space<vmem>>, vector<64x128xf32>
    %cst_59 = arith.constant dense<0.000000e+00> : vector<64x128xf32>
    %87 = tpu.matmul %86, %85, %cst_59 {dimension_numbers = #tpu.dot_dimension_numbers<[1], [0], [0], [1], [0, 0, 1, 1], [], []>} : vector<64x128xf32>, vector<128x128xf32>, vector<64x128xf32> -> vector<64x128xf32>
    %88 = vector.extract_strided_slice %82 {offsets = [0, 256], sizes = [64, 128], strides = [1, 1]} : vector<64x384xf32> to vector<64x128xf32>
    %89 = arith.addf %87, %88 : vector<64x128xf32>
    %c0_60 = arith.constant 0 : index
    %c0_61 = arith.constant 0 : index
    %90 = vector.load %arg7[%c0_60, %c0_61] : memref<1x128xf32, #tpu.memory_space<vmem>>, vector<1x128xf32>
    %91 = vector.broadcast %90 : vector<1x128xf32> to vector<64x128xf32>
    %92 = arith.addf %89, %91 : vector<64x128xf32>
    %c0_62 = arith.constant 0 : index
    %c0_63 = arith.constant 0 : index
    %93 = vector.load %arg6[%c0_62, %c0_63] : memref<128x384xf32, #tpu.memory_space<vmem>>, vector<128x384xf32>
    %cst_64 = arith.constant dense<0.000000e+00> : vector<64x384xf32>
    %94 = tpu.matmul %92, %93, %cst_64 {dimension_numbers = #tpu.dot_dimension_numbers<[1], [0], [0], [1], [0, 0, 1, 1], [], []>} : vector<64x128xf32>, vector<128x384xf32>, vector<64x384xf32> -> vector<64x384xf32>
    %95 = vector.extract_strided_slice %94 {offsets = [0, 0], sizes = [64, 128], strides = [1, 1]} : vector<64x384xf32> to vector<64x128xf32>
    %96 = vector.extract_strided_slice %94 {offsets = [0, 128], sizes = [64, 128], strides = [1, 1]} : vector<64x384xf32> to vector<64x128xf32>
    %97 = tpu.concatenate %95, %96 in 0 : vector<64x128xf32>, vector<64x128xf32> -> vector<128x128xf32>
    %c0_65 = arith.constant 0 : index
    %c0_66 = arith.constant 0 : index
    %98 = vector.load %arg1[%c0_65, %c0_66] : memref<64x128xf32, #tpu.memory_space<vmem>>, vector<64x128xf32>
    %cst_67 = arith.constant dense<0.000000e+00> : vector<64x128xf32>
    %99 = tpu.matmul %98, %97, %cst_67 {dimension_numbers = #tpu.dot_dimension_numbers<[1], [0], [0], [1], [0, 0, 1, 1], [], []>} : vector<64x128xf32>, vector<128x128xf32>, vector<64x128xf32> -> vector<64x128xf32>
    %100 = vector.extract_strided_slice %94 {offsets = [0, 256], sizes = [64, 128], strides = [1, 1]} : vector<64x384xf32> to vector<64x128xf32>
    %101 = arith.addf %99, %100 : vector<64x128xf32>
    %c0_68 = arith.constant 0 : index
    %c0_69 = arith.constant 0 : index
    %102 = vector.load %arg7[%c0_68, %c0_69] : memref<1x128xf32, #tpu.memory_space<vmem>>, vector<1x128xf32>
    %103 = vector.broadcast %102 : vector<1x128xf32> to vector<64x128xf32>
    %104 = arith.addf %101, %103 : vector<64x128xf32>
    %c0_70 = arith.constant 0 : index
    %c0_71 = arith.constant 0 : index
    %105 = vector.load %arg6[%c0_70, %c0_71] : memref<128x384xf32, #tpu.memory_space<vmem>>, vector<128x384xf32>
    %cst_72 = arith.constant dense<0.000000e+00> : vector<64x384xf32>
    %106 = tpu.matmul %104, %105, %cst_72 {dimension_numbers = #tpu.dot_dimension_numbers<[1], [0], [0], [1], [0, 0, 1, 1], [], []>} : vector<64x128xf32>, vector<128x384xf32>, vector<64x384xf32> -> vector<64x384xf32>
    %107 = vector.extract_strided_slice %106 {offsets = [0, 0], sizes = [64, 128], strides = [1, 1]} : vector<64x384xf32> to vector<64x128xf32>
    %108 = vector.extract_strided_slice %106 {offsets = [0, 128], sizes = [64, 128], strides = [1, 1]} : vector<64x384xf32> to vector<64x128xf32>
    %109 = tpu.concatenate %107, %108 in 0 : vector<64x128xf32>, vector<64x128xf32> -> vector<128x128xf32>
    %c0_73 = arith.constant 0 : index
    %c0_74 = arith.constant 0 : index
    %110 = vector.load %arg1[%c0_73, %c0_74] : memref<64x128xf32, #tpu.memory_space<vmem>>, vector<64x128xf32>
    %cst_75 = arith.constant dense<0.000000e+00> : vector<64x128xf32>
    %111 = tpu.matmul %110, %109, %cst_75 {dimension_numbers = #tpu.dot_dimension_numbers<[1], [0], [0], [1], [0, 0, 1, 1], [], []>} : vector<64x128xf32>, vector<128x128xf32>, vector<64x128xf32> -> vector<64x128xf32>
    %112 = vector.extract_strided_slice %106 {offsets = [0, 256], sizes = [64, 128], strides = [1, 1]} : vector<64x384xf32> to vector<64x128xf32>
    %113 = arith.addf %111, %112 : vector<64x128xf32>
    %c0_76 = arith.constant 0 : index
    %c0_77 = arith.constant 0 : index
    %114 = vector.load %arg7[%c0_76, %c0_77] : memref<1x128xf32, #tpu.memory_space<vmem>>, vector<1x128xf32>
    %115 = vector.broadcast %114 : vector<1x128xf32> to vector<64x128xf32>
    %116 = arith.addf %113, %115 : vector<64x128xf32>
    %c0_78 = arith.constant 0 : index
    %c0_79 = arith.constant 0 : index
    %117 = vector.load %arg8[%c0_78, %c0_79] : memref<128x128xf32, #tpu.memory_space<vmem>>, vector<128x128xf32>
    %cst_80 = arith.constant dense<0.000000e+00> : vector<64x128xf32>
    %118 = tpu.matmul %116, %117, %cst_80 {dimension_numbers = #tpu.dot_dimension_numbers<[1], [0], [0], [1], [0, 0, 1, 1], [], []>} : vector<64x128xf32>, vector<128x128xf32>, vector<64x128xf32> -> vector<64x128xf32>
    %c0_81 = arith.constant 0 : index
    %c0_82 = arith.constant 0 : index
    %119 = vector.load %arg9[%c0_81, %c0_82] : memref<1x128xf32, #tpu.memory_space<vmem>>, vector<1x128xf32>
    %120 = vector.broadcast %119 : vector<1x128xf32> to vector<64x128xf32>
    %121 = arith.addf %118, %120 : vector<64x128xf32>
    %cst_83 = arith.constant 0.000000e+00 : f32
    %122 = vector.broadcast %cst_83 : f32 to vector<64x128xf32>
    %123 = arith.cmpf ogt, %121, %122 : vector<64x128xf32>
    %cst_84 = arith.constant 0.00999999977 : f32
    %124 = vector.broadcast %cst_84 : f32 to vector<64x128xf32>
    %125 = arith.mulf %124, %121 : vector<64x128xf32>
    %126 = arith.select %123, %121, %125 : vector<64x128xi1>, vector<64x128xf32>
    %c0_85 = arith.constant 0 : index
    %c0_86 = arith.constant 0 : index
    %127 = vector.load %arg10[%c0_85, %c0_86] : memref<128x128xf32, #tpu.memory_space<vmem>>, vector<128x128xf32>
    %cst_87 = arith.constant dense<0.000000e+00> : vector<64x128xf32>
    %128 = tpu.matmul %126, %127, %cst_87 {dimension_numbers = #tpu.dot_dimension_numbers<[1], [0], [0], [1], [0, 0, 1, 1], [], []>} : vector<64x128xf32>, vector<128x128xf32>, vector<64x128xf32> -> vector<64x128xf32>
    %c0_88 = arith.constant 0 : index
    %c0_89 = arith.constant 0 : index
    %129 = vector.load %arg11[%c0_88, %c0_89] : memref<1x128xf32, #tpu.memory_space<vmem>>, vector<1x128xf32>
    %130 = vector.broadcast %129 : vector<1x128xf32> to vector<64x128xf32>
    %131 = arith.addf %128, %130 : vector<64x128xf32>
    %c0_90 = arith.constant 0 : index
    %c0_91 = arith.constant 0 : index
    %132 = vector.load %arg12[%c0_90, %c0_91] : memref<64x128xf32, #tpu.memory_space<vmem>>, vector<64x128xf32>
    tpu.vector_store %arg12[%c0_90, %c0_91], %131 {strides = array<i32>} : memref<64x128xf32, #tpu.memory_space<vmem>>, vector<64x128xf32>,
    return
  }
}

</mosaic_0001>

<llo_original>
// kernel: forward.1
$region0: #{forward.1}
  #allocation0 [shape = 'u32[]', space=smem, size = 0x4, offset = 0x4, fixed_abs, tag = 'smem constant byte address 0x4 - core index']
  #allocation1 [shape = 'u32[144,128]{1,0:T(1,128)}', space=vmem, size = 0x12000, scoped, tag = 'internal scratch']
  %s0 = inlined_call_operand.vmem [shape: f32[64,1664], index: 0, kind: input, shape index: {}]
  %s1 = inlined_call_operand.vmem [shape: f32[64,128], index: 1, kind: input, shape index: {}]
  %s2 = inlined_call_operand.vmem [shape: f32[1664,128], index: 2, kind: input, shape index: {}]
  %s3 = inlined_call_operand.vmem [shape: f32[1,128], index: 3, kind: input, shape index: {}]
  %s4 = inlined_call_operand.vmem [shape: f32[128,128], index: 4, kind: input, shape index: {}]
  %s5 = inlined_call_operand.vmem [shape: f32[1,128], index: 5, kind: input, shape index: {}]
  %s6 = inlined_call_operand.vmem [shape: f32[128,384], index: 6, kind: input, shape index: {}]
  %s7 = inlined_call_operand.vmem [shape: f32[1,128], index: 7, kind: input, shape index: {}]
  %s8 = inlined_call_operand.vmem [shape: f32[128,128], index: 8, kind: input, shape index: {}]
  %s9 = inlined_call_operand.vmem [shape: f32[1,128], index: 9, kind: input, shape index: {}]
  %s10 = inlined_call_operand.vmem [shape: f32[128,128], index: 10, kind: input, shape index: {}]
  %s11 = inlined_call_operand.vmem [shape: f32[1,128], index: 11, kind: input, shape index: {}]
  %s12 = inlined_call_operand.vmem [shape: f32[64,128], index: 12, kind: output, shape index: {}]
  %s13 = sld [smem:[#allocation0]]
  $region58: #{forward.1} parent=0
    _
  %s15 = ssub.s32 1, %s13
  %s16 = scalar_select 0, %s15, %s13
  // Predicated region
  $region2: #{forward.1} parent=0 // pred_check
    _
  $region3: #{forward.1} parent=0 // pred_check_branch
    %18 = sbr.rel (0) target = $region5
  $region4: #{forward.1} parent=0 // pred_region
    _
  $region5: #{forward.1} parent=0 // pred_fallthru
    _
  // Predicated region
  $region6: #{forward.1} parent=0 // pred_check
    _
  $region7: #{forward.1} parent=0 // pred_check_branch
    %20 = sbr.rel (0) target = $region9
  $region8: #{forward.1} parent=0 // pred_region
    _
  $region9: #{forward.1} parent=0 // pred_fallthru
    _
  // Predicated region
  $region10: #{forward.1} parent=0 // pred_check
    _
  $region11: #{forward.1} parent=0 // pred_check_branch
    %22 = sbr.rel (0) target = $region13
  $region12: #{forward.1} parent=0 // pred_region
    _
  $region13: #{forward.1} parent=0 // pred_fallthru
    _
  // Predicated region
  $region14: #{forward.1} parent=0 // pred_check
    _
  $region15: #{forward.1} parent=0 // pred_check_branch
    %24 = sbr.rel (0) target = $region17
  $region16: #{forward.1} parent=0 // pred_region
    _
  $region17: #{forward.1} parent=0 // pred_fallthru
    _
  // Predicated region
  $region18: #{forward.1} parent=0 // pred_check
    _
  $region19: #{forward.1} parent=0 // pred_check_branch
    %26 = sbr.rel (0) target = $region21
  $region20: #{forward.1} parent=0 // pred_region
    _
  $region21: #{forward.1} parent=0 // pred_fallthru
    _
  // Predicated region
  $region22: #{forward.1} parent=0 // pred_check
    _
  $region23: #{forward.1} parent=0 // pred_check_branch
    %28 = sbr.rel (0) target = $region25
  $region24: #{forward.1} parent=0 // pred_region
    _
  $region25: #{forward.1} parent=0 // pred_fallthru
    _
  // Predicated region
  $region26: #{forward.1} parent=0 // pred_check
    _
  $region27: #{forward.1} parent=0 // pred_check_branch
    %30 = sbr.rel (0) target = $region29
  $region28: #{forward.1} parent=0 // pred_region
    _
  $region29: #{forward.1} parent=0 // pred_fallthru
    _
  // Predicated region
  $region30: #{forward.1} parent=0 // pred_check
    _
  $region31: #{forward.1} parent=0 // pred_check_branch
    %32 = sbr.rel (0) target = $region33
  $region32: #{forward.1} parent=0 // pred_region
    _
  $region33: #{forward.1} parent=0 // pred_fallthru
    _
  // Predicated region
  $region34: #{forward.1} parent=0 // pred_check
    _
  $region35: #{forward.1} parent=0 // pred_check_branch
    %34 = sbr.rel (0) target = $region37
  $region36: #{forward.1} parent=0 // pred_region
    _
  $region37: #{forward.1} parent=0 // pred_fallthru
    _
  // Predicated region
  $region38: #{forward.1} parent=0 // pred_check
    _
  $region39: #{forward.1} parent=0 // pred_check_branch
    %36 = sbr.rel (0) target = $region41
  $region40: #{forward.1} parent=0 // pred_region
    _
  $region41: #{forward.1} parent=0 // pred_fallthru
    _
  // Predicated region
  $region42: #{forward.1} parent=0 // pred_check
    _
  $region43: #{forward.1} parent=0 // pred_check_branch
    %38 = sbr.rel (0) target = $region45
  $region44: #{forward.1} parent=0 // pred_region
    _
  $region45: #{forward.1} parent=0 // pred_fallthru
    _
  // Predicated region
  $region46: #{forward.1} parent=0 // pred_check
    _
  $region47: #{forward.1} parent=0 // pred_check_branch
    %40 = sbr.rel (0) target = $region49
  $region48: #{forward.1} parent=0 // pred_region
    _
  $region49: #{forward.1} parent=0 // pred_fallthru
    _
  %v41 = vld [vmem:[%s0] sm:$0xff]
  %v42 = vld [vmem:[%s0 + $0x8] sm:$0xff]
  %v43 = vld [vmem:[%s0 + $0x10] sm:$0xff]
  %v44 = vld [vmem:[%s0 + $0x18] sm:$0xff]
  %v45 = vld [vmem:[%s0 + $0x20] sm:$0xff]
  %v46 = vld [vmem:[%s0 + $0x28] sm:$0xff]
  %v47 = vld [vmem:[%s0 + $0x30] sm:$0xff]
  %v48 = vld [vmem:[%s0 + $0x38] sm:$0xff]
  %v49 = vld [vmem:[%s0 + $0x40] sm:$0xff]
  %v50 = vld [vmem:[%s0 + $0x48] sm:$0xff]
  %v51 = vld [vmem:[%s0 + $0x50] sm:$0xff]
  %v52 = vld [vmem:[%s0 + $0x58] sm:$0xff]
  %v53 = vld [vmem:[%s0 + $0x60] sm:$0xff]
  %v54 = vld [vmem:[%s0 + $0x68] sm:$0xff]
  %v55 = vld [vmem:[%s0 + $0x70] sm:$0xff]
  %v56 = vld [vmem:[%s0 + $0x78] sm:$0xff]
  %v57 = vld [vmem:[%s0 + $0x80] sm:$0xff]
  %v58 = vld [vmem:[%s0 + $0x88] sm:$0xff]
  %v59 = vld [vmem:[%s0 + $0x90] sm:$0xff]
  %v60 = vld [vmem:[%s0 + $0x98] sm:$0xff]
  %v61 = vld [vmem:[%s0 + $0xa0] sm:$0xff]
  %v62 = vld [vmem:[%s0 + $0xa8] sm:$0xff]
  %v63 = vld [vmem:[%s0 + $0xb0] sm:$0xff]
  %v64 = vld [vmem:[%s0 + $0xb8] sm:$0xff]
  %v65 = vld [vmem:[%s0 + $0xc0] sm:$0xff]
  %v66 = vld [vmem:[%s0 + $0xc8] sm:$0xff]
  %v67 = vld [vmem:[%s0 + $0xd0] sm:$0xff]
  %v68 = vld [vmem:[%s0 + $0xd8] sm:$0xff]
  %v69 = vld [vmem:[%s0 + $0xe0] sm:$0xff]
  %v70 = vld [vmem:[%s0 + $0xe8] sm:$0xff]
  %v71 = vld [vmem:[%s0 + $0xf0] sm:$0xff]
  %v72 = vld [vmem:[%s0 + $0xf8] sm:$0xff]
  %v73 = vld [vmem:[%s0 + $0x100] sm:$0xff]
  %v74 = vld [vmem:[%s0 + $0x108] sm:$0xff]
  %v75 = vld [vmem:[%s0 + $0x110] sm:$0xff]
  %v76 = vld [vmem:[%s0 + $0x118] sm:$0xff]
  %v77 = vld [vmem:[%s0 + $0x120] sm:$0xff]
  %v78 = vld [vmem:[%s0 + $0x128] sm:$0xff]
  %v79 = vld [vmem:[%s0 + $0x130] sm:$0xff]
  %v80 = vld [vmem:[%s0 + $0x138] sm:$0xff]
  %v81 = vld [vmem:[%s0 + $0x140] sm:$0xff]
  %v82 = vld [vmem:[%s0 + $0x148] sm:$0xff]
  %v83 = vld [vmem:[%s0 + $0x150] sm:$0xff]
  %v84 = vld [vmem:[%s0 + $0x158] sm:$0xff]
  %v85 = vld [vmem:[%s0 + $0x160] sm:$0xff]
  %v86 = vld [vmem:[%s0 + $0x168] sm:$0xff]
  %v87 = vld [vmem:[%s0 + $0x170] sm:$0xff]
  %v88 = vld [vmem:[%s0 + $0x178] sm:$0xff]
  %v89 = vld [vmem:[%s0 + $0x180] sm:$0xff]
  %v90 = vld [vmem:[%s0 + $0x188] sm:$0xff]
  %v91 = vld [vmem:[%s0 + $0x190] sm:$0xff]
  %v92 = vld [vmem:[%s0 + $0x198] sm:$0xff]
  %v93 = vld [vmem:[%s0 + $0x1a0] sm:$0xff]
  %v94 = vld [vmem:[%s0 + $0x1a8] sm:$0xff]
  %v95 = vld [vmem:[%s0 + $0x1b0] sm:$0xff]
  %v96 = vld [vmem:[%s0 + $0x1b8] sm:$0xff]
  %v97 = vld [vmem:[%s0 + $0x1c0] sm:$0xff]
  %v98 = vld [vmem:[%s0 + $0x1c8] sm:$0xff]
  %v99 = vld [vmem:[%s0 + $0x1d0] sm:$0xff]
  %v100 = vld [vmem:[%s0 + $0x1d8] sm:$0xff]
  %v101 = vld [vmem:[%s0 + $0x1e0] sm:$0xff]
  %v102 = vld [vmem:[%s0 + $0x1e8] sm:$0xff]
  %v103 = vld [vmem:[%s0 + $0x1f0] sm:$0xff]
  %v104 = vld [vmem:[%s0 + $0x1f8] sm:$0xff]
  %v105 = vld [vmem:[%s0 + $0x200] sm:$0xff]
  %v106 = vld [vmem:[%s0 + $0x208] sm:$0xff]
  %v107 = vld [vmem:[%s0 + $0x210] sm:$0xff]
  %v108 = vld [vmem:[%s0 + $0x218] sm:$0xff]
  %v109 = vld [vmem:[%s0 + $0x220] sm:$0xff]
  %v110 = vld [vmem:[%s0 + $0x228] sm:$0xff]
  %v111 = vld [vmem:[%s0 + $0x230] sm:$0xff]
  %v112 = vld [vmem:[%s0 + $0x238] sm:$0xff]
  %v113 = vld [vmem:[%s0 + $0x240] sm:$0xff]
  %v114 = vld [vmem:[%s0 + $0x248] sm:$0xff]
  %v115 = vld [vmem:[%s0 + $0x250] sm:$0xff]
  %v116 = vld [vmem:[%s0 + $0x258] sm:$0xff]
  %v117 = vld [vmem:[%s0 + $0x260] sm:$0xff]
  %v118 = vld [vmem:[%s0 + $0x268] sm:$0xff]
  %v119 = vld [vmem:[%s0 + $0x270] sm:$0xff]
  %v120 = vld [vmem:[%s0 + $0x278] sm:$0xff]
  %v121 = vld [vmem:[%s0 + $0x280] sm:$0xff]
  %v122 = vld [vmem:[%s0 + $0x288] sm:$0xff]
  %v123 = vld [vmem:[%s0 + $0x290] sm:$0xff]
  %v124 = vld [vmem:[%s0 + $0x298] sm:$0xff]
  %v125 = vld [vmem:[%s0 + $0x2a0] sm:$0xff]
  %v126 = vld [vmem:[%s0 + $0x2a8] sm:$0xff]
  %v127 = vld [vmem:[%s0 + $0x2b0] sm:$0xff]
  %v128 = vld [vmem:[%s0 + $0x2b8] sm:$0xff]
  %v129 = vld [vmem:[%s0 + $0x2c0] sm:$0xff]
  %v130 = vld [vmem:[%s0 + $0x2c8] sm:$0xff]
  %v131 = vld [vmem:[%s0 + $0x2d0] sm:$0xff]
  %v132 = vld [vmem:[%s0 + $0x2d8] sm:$0xff]
  %v133 = vld [vmem:[%s0 + $0x2e0] sm:$0xff]
  %v134 = vld [vmem:[%s0 + $0x2e8] sm:$0xff]
  %v135 = vld [vmem:[%s0 + $0x2f0] sm:$0xff]
  %v136 = vld [vmem:[%s0 + $0x2f8] sm:$0xff]
  %v137 = vld [vmem:[%s0 + $0x300] sm:$0xff]
  %v138 = vld [vmem:[%s0 + $0x308] sm:$0xff]
  %v139 = vld [vmem:[%s0 + $0x310] sm:$0xff]
  %v140 = vld [vmem:[%s0 + $0x318] sm:$0xff]
  %v141 = vld [vmem:[%s0 + $0x320] sm:$0xff]
  %v142 = vld [vmem:[%s0 + $0x328] sm:$0xff]
  %v143 = vld [vmem:[%s0 + $0x330] sm:$0xff]
  %v144 = vld [vmem:[%s0 + $0x338] sm:$0xff]
  %v145 = vld [vmem:[%s2] sm:$0xff]
  %v146 = vld [vmem:[%s2 + $0x8] sm:$0xff]
  %v147 = vld [vmem:[%s2 + $0x10] sm:$0xff]
  %v148 = vld [vmem:[%s2 + $0x18] sm:$0xff]
  %v149 = vld [vmem:[%s2 + $0x20] sm:$0xff]
  %v150 = vld [vmem:[%s2 + $0x28] sm:$0xff]
  %v151 = vld [vmem:[%s2 + $0x30] sm:$0xff]
  %v152 = vld [vmem:[%s2 + $0x38] sm:$0xff]
  %v153 = vld [vmem:[%s2 + $0x40] sm:$0xff]
  %v154 = vld [vmem:[%s2 + $0x48] sm:$0xff]
  %v155 = vld [vmem:[%s2 + $0x50] sm:$0xff]
  %v156 = vld [vmem:[%s2 + $0x58] sm:$0xff]
  %v157 = vld [vmem:[%s2 + $0x60] sm:$0xff]
  %v158 = vld [vmem:[%s2 + $0x68] sm:$0xff]
  %v159 = vld [vmem:[%s2 + $0x70] sm:$0xff]
  %v160 = vld [vmem:[%s2 + $0x78] sm:$0xff]
  %v161 = vld [vmem:[%s2 + $0x80] sm:$0xff]
  %v162 = vld [vmem:[%s2 + $0x88] sm:$0xff]
  %v163 = vld [vmem:[%s2 + $0x90] sm:$0xff]
  %v164 = vld [vmem:[%s2 + $0x98] sm:$0xff]
  %v165 = vld [vmem:[%s2 + $0xa0] sm:$0xff]
  %v166 = vld [vmem:[%s2 + $0xa8] sm:$0xff]
  %v167 = vld [vmem:[%s2 + $0xb0] sm:$0xff]
  %v168 = vld [vmem:[%s2 + $0xb8] sm:$0xff]
  %v169 = vld [vmem:[%s2 + $0xc0] sm:$0xff]
  %v170 = vld [vmem:[%s2 + $0xc8] sm:$0xff]
  %v171 = vld [vmem:[%s2 + $0xd0] sm:$0xff]
  %v172 = vld [vmem:[%s2 + $0xd8] sm:$0xff]
  %v173 = vld [vmem:[%s2 + $0xe0] sm:$0xff]
  %v174 = vld [vmem:[%s2 + $0xe8] sm:$0xff]
  %v175 = vld [vmem:[%s2 + $0xf0] sm:$0xff]
  %v176 = vld [vmem:[%s2 + $0xf8] sm:$0xff]
  %v177 = vld [vmem:[%s2 + $0x100] sm:$0xff]
  %v178 = vld [vmem:[%s2 + $0x108] sm:$0xff]
  %v179 = vld [vmem:[%s2 + $0x110] sm:$0xff]
  %v180 = vld [vmem:[%s2 + $0x118] sm:$0xff]
  %v181 = vld [vmem:[%s2 + $0x120] sm:$0xff]
  %v182 = vld [vmem:[%s2 + $0x128] sm:$0xff]
  %v183 = vld [vmem:[%s2 + $0x130] sm:$0xff]
  %v184 = vld [vmem:[%s2 + $0x138] sm:$0xff]
  %v185 = vld [vmem:[%s2 + $0x140] sm:$0xff]
  %v186 = vld [vmem:[%s2 + $0x148] sm:$0xff]
  %v187 = vld [vmem:[%s2 + $0x150] sm:$0xff]
  %v188 = vld [vmem:[%s2 + $0x158] sm:$0xff]
  %v189 = vld [vmem:[%s2 + $0x160] sm:$0xff]
  %v190 = vld [vmem:[%s2 + $0x168] sm:$0xff]
  %v191 = vld [vmem:[%s2 + $0x170] sm:$0xff]
  %v192 = vld [vmem:[%s2 + $0x178] sm:$0xff]
  %v193 = vld [vmem:[%s2 + $0x180] sm:$0xff]
  %v194 = vld [vmem:[%s2 + $0x188] sm:$0xff]
  %v195 = vld [vmem:[%s2 + $0x190] sm:$0xff]
  %v196 = vld [vmem:[%s2 + $0x198] sm:$0xff]
  %v197 = vld [vmem:[%s2 + $0x1a0] sm:$0xff]
  %v198 = vld [vmem:[%s2 + $0x1a8] sm:$0xff]
  %v199 = vld [vmem:[%s2 + $0x1b0] sm:$0xff]
  %v200 = vld [vmem:[%s2 + $0x1b8] sm:$0xff]
  %v201 = vld [vmem:[%s2 + $0x1c0] sm:$0xff]
  %v202 = vld [vmem:[%s2 + $0x1c8] sm:$0xff]
  %v203 = vld [vmem:[%s2 + $0x1d0] sm:$0xff]
  %v204 = vld [vmem:[%s2 + $0x1d8] sm:$0xff]
  %v205 = vld [vmem:[%s2 + $0x1e0] sm:$0xff]
  %v206 = vld [vmem:[%s2 + $0x1e8] sm:$0xff]
  %v207 = vld [vmem:[%s2 + $0x1f0] sm:$0xff]
  %v208 = vld [vmem:[%s2 + $0x1f8] sm:$0xff]
  %v209 = vld [vmem:[%s2 + $0x200] sm:$0xff]
  %v210 = vld [vmem:[%s2 + $0x208] sm:$0xff]
  %v211 = vld [vmem:[%s2 + $0x210] sm:$0xff]
  %v212 = vld [vmem:[%s2 + $0x218] sm:$0xff]
  %v213 = vld [vmem:[%s2 + $0x220] sm:$0xff]
  %v214 = vld [vmem:[%s2 + $0x228] sm:$0xff]
  %v215 = vld [vmem:[%s2 + $0x230] sm:$0xff]
  %v216 = vld [vmem:[%s2 + $0x238] sm:$0xff]
  %v217 = vld [vmem:[%s2 + $0x240] sm:$0xff]
  %v218 = vld [vmem:[%s2 + $0x248] sm:$0xff]
  %v219 = vld [vmem:[%s2 + $0x250] sm:$0xff]
  %v220 = vld [vmem:[%s2 + $0x258] sm:$0xff]
  %v221 = vld [vmem:[%s2 + $0x260] sm:$0xff]
  %v222 = vld [vmem:[%s2 + $0x268] sm:$0xff]
  %v223 = vld [vmem:[%s2 + $0x270] sm:$0xff]
  %v224 = vld [vmem:[%s2 + $0x278] sm:$0xff]
  %v225 = vld [vmem:[%s2 + $0x280] sm:$0xff]
  %v226 = vld [vmem:[%s2 + $0x288] sm:$0xff]
  %v227 = vld [vmem:[%s2 + $0x290] sm:$0xff]
  %v228 = vld [vmem:[%s2 + $0x298] sm:$0xff]
  %v229 = vld [vmem:[%s2 + $0x2a0] sm:$0xff]
  %v230 = vld [vmem:[%s2 + $0x2a8] sm:$0xff]
  %v231 = vld [vmem:[%s2 + $0x2b0] sm:$0xff]
  %v232 = vld [vmem:[%s2 + $0x2b8] sm:$0xff]
  %v233 = vld [vmem:[%s2 + $0x2c0] sm:$0xff]
  %v234 = vld [vmem:[%s2 + $0x2c8] sm:$0xff]
  %v235 = vld [vmem:[%s2 + $0x2d0] sm:$0xff]
  %v236 = vld [vmem:[%s2 + $0x2d8] sm:$0xff]
  %v237 = vld [vmem:[%s2 + $0x2e0] sm:$0xff]
  %v238 = vld [vmem:[%s2 + $0x2e8] sm:$0xff]
  %v239 = vld [vmem:[%s2 + $0x2f0] sm:$0xff]
  %v240 = vld [vmem:[%s2 + $0x2f8] sm:$0xff]
  %v241 = vld [vmem:[%s2 + $0x300] sm:$0xff]
  %v242 = vld [vmem:[%s2 + $0x308] sm:$0xff]
  %v243 = vld [vmem:[%s2 + $0x310] sm:$0xff]
  %v244 = vld [vmem:[%s2 + $0x318] sm:$0xff]
  %v245 = vld [vmem:[%s2 + $0x320] sm:$0xff]
  %v246 = vld [vmem:[%s2 + $0x328] sm:$0xff]
  %v247 = vld [vmem:[%s2 + $0x330] sm:$0xff]
  %v248 = vld [vmem:[%s2 + $0x338] sm:$0xff]
  %v249 = vld [vmem:[%s2 + $0x340] sm:$0xff]
  %v250 = vld [vmem:[%s2 + $0x348] sm:$0xff]
  %v251 = vld [vmem:[%s2 + $0x350] sm:$0xff]
  %v252 = vld [vmem:[%s2 + $0x358] sm:$0xff]
  %v253 = vld [vmem:[%s2 + $0x360] sm:$0xff]
  %v254 = vld [vmem:[%s2 + $0x368] sm:$0xff]
  %v255 = vld [vmem:[%s2 + $0x370] sm:$0xff]
  %v256 = vld [vmem:[%s2 + $0x378] sm:$0xff]
  %v257 = vld [vmem:[%s2 + $0x380] sm:$0xff]
  %v258 = vld [vmem:[%s2 + $0x388] sm:$0xff]
  %v259 = vld [vmem:[%s2 + $0x390] sm:$0xff]
  %v260 = vld [vmem:[%s2 + $0x398] sm:$0xff]
  %v261 = vld [vmem:[%s2 + $0x3a0] sm:$0xff]
  %v262 = vld [vmem:[%s2 + $0x3a8] sm:$0xff]
  %v263 = vld [vmem:[%s2 + $0x3b0] sm:$0xff]
  %v264 = vld [vmem:[%s2 + $0x3b8] sm:$0xff]
  %v265 = vld [vmem:[%s2 + $0x3c0] sm:$0xff]
  %v266 = vld [vmem:[%s2 + $0x3c8] sm:$0xff]
  %v267 = vld [vmem:[%s2 + $0x3d0] sm:$0xff]
  %v268 = vld [vmem:[%s2 + $0x3d8] sm:$0xff]
  %v269 = vld [vmem:[%s2 + $0x3e0] sm:$0xff]
  %v270 = vld [vmem:[%s2 + $0x3e8] sm:$0xff]
  %v271 = vld [vmem:[%s2 + $0x3f0] sm:$0xff]
  %v272 = vld [vmem:[%s2 + $0x3f8] sm:$0xff]
  %v273 = vld [vmem:[%s2 + $0x400] sm:$0xff]
  %v274 = vld [vmem:[%s2 + $0x408] sm:$0xff]
  %v275 = vld [vmem:[%s2 + $0x410] sm:$0xff]
  %v276 = vld [vmem:[%s2 + $0x418] sm:$0xff]
  %v277 = vld [vmem:[%s2 + $0x420] sm:$0xff]
  %v278 = vld [vmem:[%s2 + $0x428] sm:$0xff]
  %v279 = vld [vmem:[%s2 + $0x430] sm:$0xff]
  %v280 = vld [vmem:[%s2 + $0x438] sm:$0xff]
  %v281 = vld [vmem:[%s2 + $0x440] sm:$0xff]
  %v282 = vld [vmem:[%s2 + $0x448] sm:$0xff]
  %v283 = vld [vmem:[%s2 + $0x450] sm:$0xff]
  %v284 = vld [vmem:[%s2 + $0x458] sm:$0xff]
  %v285 = vld [vmem:[%s2 + $0x460] sm:$0xff]
  %v286 = vld [vmem:[%s2 + $0x468] sm:$0xff]
  %v287 = vld [vmem:[%s2 + $0x470] sm:$0xff]
  %v288 = vld [vmem:[%s2 + $0x478] sm:$0xff]
  %v289 = vld [vmem:[%s2 + $0x480] sm:$0xff]
  %v290 = vld [vmem:[%s2 + $0x488] sm:$0xff]
  %v291 = vld [vmem:[%s2 + $0x490] sm:$0xff]
  %v292 = vld [vmem:[%s2 + $0x498] sm:$0xff]
  %v293 = vld [vmem:[%s2 + $0x4a0] sm:$0xff]
  %v294 = vld [vmem:[%s2 + $0x4a8] sm:$0xff]
  %v295 = vld [vmem:[%s2 + $0x4b0] sm:$0xff]
  %v296 = vld [vmem:[%s2 + $0x4b8] sm:$0xff]
  %v297 = vld [vmem:[%s2 + $0x4c0] sm:$0xff]
  %v298 = vld [vmem:[%s2 + $0x4c8] sm:$0xff]
  %v299 = vld [vmem:[%s2 + $0x4d0] sm:$0xff]
  %v300 = vld [vmem:[%s2 + $0x4d8] sm:$0xff]
  %v301 = vld [vmem:[%s2 + $0x4e0] sm:$0xff]
  %v302 = vld [vmem:[%s2 + $0x4e8] sm:$0xff]
  %v303 = vld [vmem:[%s2 + $0x4f0] sm:$0xff]
  %v304 = vld [vmem:[%s2 + $0x4f8] sm:$0xff]
  %v305 = vld [vmem:[%s2 + $0x500] sm:$0xff]
  %v306 = vld [vmem:[%s2 + $0x508] sm:$0xff]
  %v307 = vld [vmem:[%s2 + $0x510] sm:$0xff]
  %v308 = vld [vmem:[%s2 + $0x518] sm:$0xff]
  %v309 = vld [vmem:[%s2 + $0x520] sm:$0xff]
  %v310 = vld [vmem:[%s2 + $0x528] sm:$0xff]
  %v311 = vld [vmem:[%s2 + $0x530] sm:$0xff]
  %v312 = vld [vmem:[%s2 + $0x538] sm:$0xff]
  %v313 = vld [vmem:[%s2 + $0x540] sm:$0xff]
  %v314 = vld [vmem:[%s2 + $0x548] sm:$0xff]
  %v315 = vld [vmem:[%s2 + $0x550] sm:$0xff]
  %v316 = vld [vmem:[%s2 + $0x558] sm:$0xff]
  %v317 = vld [vmem:[%s2 + $0x560] sm:$0xff]
  %v318 = vld [vmem:[%s2 + $0x568] sm:$0xff]
  %v319 = vld [vmem:[%s2 + $0x570] sm:$0xff]
  %v320 = vld [vmem:[%s2 + $0x578] sm:$0xff]
  %v321 = vld [vmem:[%s2 + $0x580] sm:$0xff]
  %v322 = vld [vmem:[%s2 + $0x588] sm:$0xff]
  %v323 = vld [vmem:[%s2 + $0x590] sm:$0xff]
  %v324 = vld [vmem:[%s2 + $0x598] sm:$0xff]
  %v325 = vld [vmem:[%s2 + $0x5a0] sm:$0xff]
  %v326 = vld [vmem:[%s2 + $0x5a8] sm:$0xff]
  %v327 = vld [vmem:[%s2 + $0x5b0] sm:$0xff]
  %v328 = vld [vmem:[%s2 + $0x5b8] sm:$0xff]
  %v329 = vld [vmem:[%s2 + $0x5c0] sm:$0xff]
  %v330 = vld [vmem:[%s2 + $0x5c8] sm:$0xff]
  %v331 = vld [vmem:[%s2 + $0x5d0] sm:$0xff]
  %v332 = vld [vmem:[%s2 + $0x5d8] sm:$0xff]
  %v333 = vld [vmem:[%s2 + $0x5e0] sm:$0xff]
  %v334 = vld [vmem:[%s2 + $0x5e8] sm:$0xff]
  %v335 = vld [vmem:[%s2 + $0x5f0] sm:$0xff]
  %v336 = vld [vmem:[%s2 + $0x5f8] sm:$0xff]
  %v337 = vld [vmem:[%s2 + $0x600] sm:$0xff]
  %v338 = vld [vmem:[%s2 + $0x608] sm:$0xff]
  %v339 = vld [vmem:[%s2 + $0x610] sm:$0xff]
  %v340 = vld [vmem:[%s2 + $0x618] sm:$0xff]
  %v341 = vld [vmem:[%s2 + $0x620] sm:$0xff]
  %v342 = vld [vmem:[%s2 + $0x628] sm:$0xff]
  %v343 = vld [vmem:[%s2 + $0x630] sm:$0xff]
  %v344 = vld [vmem:[%s2 + $0x638] sm:$0xff]
  %v345 = vld [vmem:[%s2 + $0x640] sm:$0xff]
  %v346 = vld [vmem:[%s2 + $0x648] sm:$0xff]
  %v347 = vld [vmem:[%s2 + $0x650] sm:$0xff]
  %v348 = vld [vmem:[%s2 + $0x658] sm:$0xff]
  %v349 = vld [vmem:[%s2 + $0x660] sm:$0xff]
  %v350 = vld [vmem:[%s2 + $0x668] sm:$0xff]
  %v351 = vld [vmem:[%s2 + $0x670] sm:$0xff]
  %v352 = vld [vmem:[%s2 + $0x678] sm:$0xff]
  %v353 = vld [vmem:[%s3] sm:$0x1]
  %v355 = vlaneseq
  %v356 = vshrl.u32 %v355, 7
  %v357 = vsub.s32 0, %v356
  %v358 = vrot.slane %v353, %v357
  %360 = vmatprep.subr.mxu0 0.0
  %361 = vmatpush1.msra.mxu0 %v160
  %362 = vmatprep.subr.mxu0 0.0
  %363 = vmatpush1.msra.mxu0 %v159
  %364 = vmatprep.subr.mxu0 0.0
  %365 = vmatpush1.msra.mxu0 %v158
  %366 = vmatprep.subr.mxu0 0.0
  %367 = vmatpush1.msra.mxu0 %v157
  %368 = vmatprep.subr.mxu0 0.0
  %369 = vmatpush1.msra.mxu0 %v156
  %370 = vmatprep.subr.mxu0 0.0
  %371 = vmatpush1.msra.mxu0 %v155
  %372 = vmatprep.subr.mxu0 0.0
  %373 = vmatpush1.msra.mxu0 %v154
  %374 = vmatprep.subr.mxu0 0.0
  %375 = vmatpush1.msra.mxu0 %v153
  %376 = vmatprep.subr.mxu0 0.0
  %377 = vmatpush1.msra.mxu0 %v152
  %378 = vmatprep.subr.mxu0 0.0
  %379 = vmatpush1.msra.mxu0 %v151
  %380 = vmatprep.subr.mxu0 0.0
  %381 = vmatpush1.msra.mxu0 %v150
  %382 = vmatprep.subr.mxu0 0.0
  %383 = vmatpush1.msra.mxu0 %v149
  %384 = vmatprep.subr.mxu0 0.0
  %385 = vmatpush1.msra.mxu0 %v148
  %386 = vmatprep.subr.mxu0 0.0
  %387 = vmatpush1.msra.mxu0 %v147
  %388 = vmatprep.subr.mxu0 0.0
  %389 = vmatpush1.msra.mxu0 %v146
  %390 = vmatprep.subr.mxu0 0.0
  %391 = vmatpush1.msra.mxu0 %v145
  %392 = vmatprep.subr.mxu0 0.0
  %393 = vmatpush2.msra.mxu0 %v176
  %394 = vmatprep.subr.mxu0 0.0
  %395 = vmatpush2.msra.mxu0 %v175
  %396 = vmatprep.subr.mxu0 0.0
  %397 = vmatpush2.msra.mxu0 %v174
  %398 = vmatprep.subr.mxu0 0.0
  %399 = vmatpush2.msra.mxu0 %v173
  %400 = vmatprep.subr.mxu0 0.0
  %401 = vmatpush2.msra.mxu0 %v172
  %402 = vmatprep.subr.mxu0 0.0
  %403 = vmatpush2.msra.mxu0 %v171
  %404 = vmatprep.subr.mxu0 0.0
  %405 = vmatpush2.msra.mxu0 %v170
  %406 = vmatprep.subr.mxu0 0.0
  %407 = vmatpush2.msra.mxu0 %v169
  %408 = vmatprep.subr.mxu0 0.0
  %409 = vmatpush2.msra.mxu0 %v168
  %410 = vmatprep.subr.mxu0 0.0
  %411 = vmatpush2.msra.mxu0 %v167
  %412 = vmatprep.subr.mxu0 0.0
  %413 = vmatpush2.msra.mxu0 %v166
  %414 = vmatprep.subr.mxu0 0.0
  %415 = vmatpush2.msra.mxu0 %v165
  %416 = vmatprep.subr.mxu0 0.0
  %417 = vmatpush2.msra.mxu0 %v164
  %418 = vmatprep.subr.mxu0 0.0
  %419 = vmatpush2.msra.mxu0 %v163
  %420 = vmatprep.subr.mxu0 0.0
  %421 = vmatpush2.msra.mxu0 %v162
  %422 = vmatprep.subr.mxu0 0.0
  %423 = vmatpush2.msra.mxu0 %v161
  %424 = vmatprep.mubr.f32.mxu0 %v42
  %425 = vmatmul.mubr.f32.gmra.mxu0 %v41
  %v426 = vpop.f32.mrf.mxu0
  %v427 = vadd.f32 %v358, %v426
  %v428 = vpop.f32.mrf.mxu0
  %429 = vmatprep.mubr.f32.mxu0 %v55
  %430 = vmatmul.mubr.f32.gmra.mxu0 %v54
  %v431 = vpop.f32.mrf.mxu0
  %v432 = vadd.f32 %v358, %v431
  %v433 = vpop.f32.mrf.mxu0
  %434 = vmatprep.mubr.f32.mxu0 %v68
  %435 = vmatmul.mubr.f32.gmra.mxu0 %v67
  %v436 = vpop.f32.mrf.mxu0
  %v437 = vadd.f32 %v358, %v436
  %v438 = vpop.f32.mrf.mxu0
  %439 = vmatprep.mubr.f32.mxu0 %v81
  %440 = vmatmul.mubr.f32.gmra.mxu0 %v80
  %v441 = vpop.f32.mrf.mxu0
  %v442 = vadd.f32 %v358, %v441
  %v443 = vpop.f32.mrf.mxu0
  %444 = vmatprep.mubr.f32.mxu0 %v94
  %445 = vmatmul.mubr.f32.gmra.mxu0 %v93
  %v446 = vpop.f32.mrf.mxu0
  %v447 = vadd.f32 %v358, %v446
  %v448 = vpop.f32.mrf.mxu0
  %449 = vmatprep.mubr.f32.mxu0 %v107
  %450 = vmatmul.mubr.f32.gmra.mxu0 %v106
  %v451 = vpop.f32.mrf.mxu0
  %v452 = vadd.f32 %v358, %v451
  %v453 = vpop.f32.mrf.mxu0
  %454 = vmatprep.mubr.f32.mxu0 %v120
  %455 = vmatmul.mubr.f32.gmra.mxu0 %v119
  %v456 = vpop.f32.mrf.mxu0
  %v457 = vadd.f32 %v358, %v456
  %v458 = vpop.f32.mrf.mxu0
  %459 = vmatprep.mubr.f32.mxu0 %v133
  %460 = vmatmul.mubr.f32.gmra.mxu0 %v132
  %v461 = vpop.f32.mrf.mxu0
  %v462 = vadd.f32 %v358, %v461
  %v463 = vpop.f32.mrf.mxu0
  %464 = vdwg.mxu0
  %465 = vmatprep.subr.mxu0 0.0
  %466 = vmatpush1.msra.mxu0 %v192
  %467 = vmatprep.subr.mxu0 0.0
  %468 = vmatpush1.msra.mxu0 %v191
  %469 = vmatprep.subr.mxu0 0.0
  %470 = vmatpush1.msra.mxu0 %v190
  %471 = vmatprep.subr.mxu0 0.0
  %472 = vmatpush1.msra.mxu0 %v189
  %473 = vmatprep.subr.mxu0 0.0
  %474 = vmatpush1.msra.mxu0 %v188
  %475 = vmatprep.subr.mxu0 0.0
  %476 = vmatpush1.msra.mxu0 %v187
  %477 = vmatprep.subr.mxu0 0.0
  %478 = vmatpush1.msra.mxu0 %v186
  %479 = vmatprep.subr.mxu0 0.0
  %480 = vmatpush1.msra.mxu0 %v185
  %481 = vmatprep.subr.mxu0 0.0
  %482 = vmatpush1.msra.mxu0 %v184
  %483 = vmatprep.subr.mxu0 0.0
  %484 = vmatpush1.msra.mxu0 %v183
  %485 = vmatprep.subr.mxu0 0.0
  %486 = vmatpush1.msra.mxu0 %v182
  %487 = vmatprep.subr.mxu0 0.0
  %488 = vmatpush1.msra.mxu0 %v181
  %489 = vmatprep.subr.mxu0 0.0
  %490 = vmatpush1.msra.mxu0 %v180
  %491 = vmatprep.subr.mxu0 0.0
  %492 = vmatpush1.msra.mxu0 %v179
  %493 = vmatprep.subr.mxu0 0.0
  %494 = vmatpush1.msra.mxu0 %v178
  %495 = vmatprep.subr.mxu0 0.0
  %496 = vmatpush1.msra.mxu0 %v177
  %497 = vmatprep.subr.mxu0 0.0
  %498 = vmatpush2.msra.mxu0 %v208
  %499 = vmatprep.subr.mxu0 0.0
  %500 = vmatpush2.msra.mxu0 %v207
  %501 = vmatprep.subr.mxu0 0.0
  %502 = vmatpush2.msra.mxu0 %v206
  %503 = vmatprep.subr.mxu0 0.0
  %504 = vmatpush2.msra.mxu0 %v205
  %505 = vmatprep.subr.mxu0 0.0
  %506 = vmatpush2.msra.mxu0 %v204
  %507 = vmatprep.subr.mxu0 0.0
  %508 = vmatpush2.msra.mxu0 %v203
  %509 = vmatprep.subr.mxu0 0.0
  %510 = vmatpush2.msra.mxu0 %v202
  %511 = vmatprep.subr.mxu0 0.0
  %512 = vmatpush2.msra.mxu0 %v201
  %513 = vmatprep.subr.mxu0 0.0
  %514 = vmatpush2.msra.mxu0 %v200
  %515 = vmatprep.subr.mxu0 0.0
  %516 = vmatpush2.msra.mxu0 %v199
  %517 = vmatprep.subr.mxu0 0.0
  %518 = vmatpush2.msra.mxu0 %v198
  %519 = vmatprep.subr.mxu0 0.0
  %520 = vmatpush2.msra.mxu0 %v197
  %521 = vmatprep.subr.mxu0 0.0
  %522 = vmatpush2.msra.mxu0 %v196
  %523 = vmatprep.subr.mxu0 0.0
  %524 = vmatpush2.msra.mxu0 %v195
  %525 = vmatprep.subr.mxu0 0.0
  %526 = vmatpush2.msra.mxu0 %v194
  %527 = vmatprep.subr.mxu0 0.0
  %528 = vmatpush2.msra.mxu0 %v193
  %529 = vmatprep.mubr.f32.mxu0 %v44
  %530 = vmatmul.mubr.f32.gmra.mxu0 %v43
  %v531 = vpop.f32.mrf.mxu0
  %v532 = vadd.f32 %v427, %v531
  %v533 = vpop.f32.mrf.mxu0
  %534 = vmatprep.mubr.f32.mxu0 %v57
  %535 = vmatmul.mubr.f32.gmra.mxu0 %v56
  %v536 = vpop.f32.mrf.mxu0
  %v537 = vadd.f32 %v432, %v536
  %v538 = vpop.f32.mrf.mxu0
  %539 = vmatprep.mubr.f32.mxu0 %v70
  %540 = vmatmul.mubr.f32.gmra.mxu0 %v69
  %v541 = vpop.f32.mrf.mxu0
  %v542 = vadd.f32 %v437, %v541
  %v543 = vpop.f32.mrf.mxu0
  %544 = vmatprep.mubr.f32.mxu0 %v83
  %545 = vmatmul.mubr.f32.gmra.mxu0 %v82
  %v546 = vpop.f32.mrf.mxu0
  %v547 = vadd.f32 %v442, %v546
  %v548 = vpop.f32.mrf.mxu0
  %549 = vmatprep.mubr.f32.mxu0 %v96
  %550 = vmatmul.mubr.f32.gmra.mxu0 %v95
  %v551 = vpop.f32.mrf.mxu0
  %v552 = vadd.f32 %v447, %v551
  %v553 = vpop.f32.mrf.mxu0
  %554 = vmatprep.mubr.f32.mxu0 %v109
  %555 = vmatmul.mubr.f32.gmra.mxu0 %v108
  %v556 = vpop.f32.mrf.mxu0
  %v557 = vadd.f32 %v452, %v556
  %v558 = vpop.f32.mrf.mxu0
  %559 = vmatprep.mubr.f32.mxu0 %v122
  %560 = vmatmul.mubr.f32.gmra.mxu0 %v121
  %v561 = vpop.f32.mrf.mxu0
  %v562 = vadd.f32 %v457, %v561
  %v563 = vpop.f32.mrf.mxu0
  %564 = vmatprep.mubr.f32.mxu0 %v135
  %565 = vmatmul.mubr.f32.gmra.mxu0 %v134
  %v566 = vpop.f32.mrf.mxu0
  %v567 = vadd.f32 %v462, %v566
  %v568 = vpop.f32.mrf.mxu0
  %569 = vdwg.mxu0
  %570 = vmatprep.subr.mxu0 0.0
  %571 = vmatpush1.msra.mxu0 %v224
  %572 = vmatprep.subr.mxu0 0.0
  %573 = vmatpush1.msra.mxu0 %v223
  %574 = vmatprep.subr.mxu0 0.0
  %575 = vmatpush1.msra.mxu0 %v222
  %576 = vmatprep.subr.mxu0 0.0
  %577 = vmatpush1.msra.mxu0 %v221
  %578 = vmatprep.subr.mxu0 0.0
  %579 = vmatpush1.msra.mxu0 %v220
  %580 = vmatprep.subr.mxu0 0.0
  %581 = vmatpush1.msra.mxu0 %v219
  %582 = vmatprep.subr.mxu0 0.0
  %583 = vmatpush1.msra.mxu0 %v218
  %584 = vmatprep.subr.mxu0 0.0
  %585 = vmatpush1.msra.mxu0 %v217
  %586 = vmatprep.subr.mxu0 0.0
  %587 = vmatpush1.msra.mxu0 %v216
  %588 = vmatprep.subr.mxu0 0.0
  %589 = vmatpush1.msra.mxu0 %v215
  %590 = vmatprep.subr.mxu0 0.0
  %591 = vmatpush1.msra.mxu0 %v214
  %592 = vmatprep.subr.mxu0 0.0
  %593 = vmatpush1.msra.mxu0 %v213
  %594 = vmatprep.subr.mxu0 0.0
  %595 = vmatpush1.msra.mxu0 %v212
  %596 = vmatprep.subr.mxu0 0.0
  %597 = vmatpush1.msra.mxu0 %v211
  %598 = vmatprep.subr.mxu0 0.0
  %599 = vmatpush1.msra.mxu0 %v210
  %600 = vmatprep.subr.mxu0 0.0
  %601 = vmatpush1.msra.mxu0 %v209
  %602 = vmatprep.subr.mxu0 0.0
  %603 = vmatpush2.msra.mxu0 %v240
  %604 = vmatprep.subr.mxu0 0.0
  %605 = vmatpush2.msra.mxu0 %v239
  %606 = vmatprep.subr.mxu0 0.0
  %607 = vmatpush2.msra.mxu0 %v238
  %608 = vmatprep.subr.mxu0 0.0
  %609 = vmatpush2.msra.mxu0 %v237
  %610 = vmatprep.subr.mxu0 0.0
  %611 = vmatpush2.msra.mxu0 %v236
  %612 = vmatprep.subr.mxu0 0.0
  %613 = vmatpush2.msra.mxu0 %v235
  %614 = vmatprep.subr.mxu0 0.0
  %615 = vmatpush2.msra.mxu0 %v234
  %616 = vmatprep.subr.mxu0 0.0
  %617 = vmatpush2.msra.mxu0 %v233
  %618 = vmatprep.subr.mxu0 0.0
  %619 = vmatpush2.msra.mxu0 %v232
  %620 = vmatprep.subr.mxu0 0.0
  %621 = vmatpush2.msra.mxu0 %v231
  %622 = vmatprep.subr.mxu0 0.0
  %623 = vmatpush2.msra.mxu0 %v230
  %624 = vmatprep.subr.mxu0 0.0
  %625 = vmatpush2.msra.mxu0 %v229
  %626 = vmatprep.subr.mxu0 0.0
  %627 = vmatpush2.msra.mxu0 %v228
  %628 = vmatprep.subr.mxu0 0.0
  %629 = vmatpush2.msra.mxu0 %v227
  %630 = vmatprep.subr.mxu0 0.0
  %631 = vmatpush2.msra.mxu0 %v226
  %632 = vmatprep.subr.mxu0 0.0
  %633 = vmatpush2.msra.mxu0 %v225
  %634 = vmatprep.mubr.f32.mxu0 %v46
  %635 = vmatmul.mubr.f32.gmra.mxu0 %v45
  %v636 = vpop.f32.mrf.mxu0
  %v637 = vadd.f32 %v532, %v636
  %v638 = vpop.f32.mrf.mxu0
  %639 = vmatprep.mubr.f32.mxu0 %v59
  %640 = vmatmul.mubr.f32.gmra.mxu0 %v58
  %v641 = vpop.f32.mrf.mxu0
  %v642 = vadd.f32 %v537, %v641
  %v643 = vpop.f32.mrf.mxu0
  %644 = vmatprep.mubr.f32.mxu0 %v72
  %645 = vmatmul.mubr.f32.gmra.mxu0 %v71
  %v646 = vpop.f32.mrf.mxu0
  %v647 = vadd.f32 %v542, %v646
  %v648 = vpop.f32.mrf.mxu0
  %649 = vmatprep.mubr.f32.mxu0 %v85
  %650 = vmatmul.mubr.f32.gmra.mxu0 %v84
  %v651 = vpop.f32.mrf.mxu0
  %v652 = vadd.f32 %v547, %v651
  %v653 = vpop.f32.mrf.mxu0
  %654 = vmatprep.mubr.f32.mxu0 %v98
  %655 = vmatmul.mubr.f32.gmra.mxu0 %v97
  %v656 = vpop.f32.mrf.mxu0
  %v657 = vadd.f32 %v552, %v656
  %v658 = vpop.f32.mrf.mxu0
  %659 = vmatprep.mubr.f32.mxu0 %v111
  %660 = vmatmul.mubr.f32.gmra.mxu0 %v110
  %v661 = vpop.f32.mrf.mxu0
  %v662 = vadd.f32 %v557, %v661
  %v663 = vpop.f32.mrf.mxu0
  %664 = vmatprep.mubr.f32.mxu0 %v124
  %665 = vmatmul.mubr.f32.gmra.mxu0 %v123
  %v666 = vpop.f32.mrf.mxu0
  %v667 = vadd.f32 %v562, %v666
  %v668 = vpop.f32.mrf.mxu0
  %669 = vmatprep.mubr.f32.mxu0 %v137
  %670 = vmatmul.mubr.f32.gmra.mxu0 %v136
  %v671 = vpop.f32.mrf.mxu0
  %v672 = vadd.f32 %v567, %v671
  %v673 = vpop.f32.mrf.mxu0
  %674 = vdwg.mxu0
  %675 = vmatprep.subr.mxu0 0.0
  %676 = vmatpush1.msra.mxu0 %v256
  %677 = vmatprep.subr.mxu0 0.0
  %678 = vmatpush1.msra.mxu0 %v255
  %679 = vmatprep.subr.mxu0 0.0
  %680 = vmatpush1.msra.mxu0 %v254
  %681 = vmatprep.subr.mxu0 0.0
  %682 = vmatpush1.msra.mxu0 %v253
  %683 = vmatprep.subr.mxu0 0.0
  %684 = vmatpush1.msra.mxu0 %v252
  %685 = vmatprep.subr.mxu0 0.0
  %686 = vmatpush1.msra.mxu0 %v251
  %687 = vmatprep.subr.mxu0 0.0
  %688 = vmatpush1.msra.mxu0 %v250
  %689 = vmatprep.subr.mxu0 0.0
  %690 = vmatpush1.msra.mxu0 %v249
  %691 = vmatprep.subr.mxu0 0.0
  %692 = vmatpush1.msra.mxu0 %v248
  %693 = vmatprep.subr.mxu0 0.0
  %694 = vmatpush1.msra.mxu0 %v247
  %695 = vmatprep.subr.mxu0 0.0
  %696 = vmatpush1.msra.mxu0 %v246
  %697 = vmatprep.subr.mxu0 0.0
  %698 = vmatpush1.msra.mxu0 %v245
  %699 = vmatprep.subr.mxu0 0.0
  %700 = vmatpush1.msra.mxu0 %v244
  %701 = vmatprep.subr.mxu0 0.0
  %702 = vmatpush1.msra.mxu0 %v243
  %703 = vmatprep.subr.mxu0 0.0
  %704 = vmatpush1.msra.mxu0 %v242
  %705 = vmatprep.subr.mxu0 0.0
  %706 = vmatpush1.msra.mxu0 %v241
  %707 = vmatprep.subr.mxu0 0.0
  %708 = vmatpush2.msra.mxu0 %v272
  %709 = vmatprep.subr.mxu0 0.0
  %710 = vmatpush2.msra.mxu0 %v271
  %711 = vmatprep.subr.mxu0 0.0
  %712 = vmatpush2.msra.mxu0 %v270
  %713 = vmatprep.subr.mxu0 0.0
  %714 = vmatpush2.msra.mxu0 %v269
  %715 = vmatprep.subr.mxu0 0.0
  %716 = vmatpush2.msra.mxu0 %v268
  %717 = vmatprep.subr.mxu0 0.0
  %718 = vmatpush2.msra.mxu0 %v267
  %719 = vmatprep.subr.mxu0 0.0
  %720 = vmatpush2.msra.mxu0 %v266
  %721 = vmatprep.subr.mxu0 0.0
  %722 = vmatpush2.msra.mxu0 %v265
  %723 = vmatprep.subr.mxu0 0.0
  %724 = vmatpush2.msra.mxu0 %v264
  %725 = vmatprep.subr.mxu0 0.0
  %726 = vmatpush2.msra.mxu0 %v263
  %727 = vmatprep.subr.mxu0 0.0
  %728 = vmatpush2.msra.mxu0 %v262
  %729 = vmatprep.subr.mxu0 0.0
  %730 = vmatpush2.msra.mxu0 %v261
  %731 = vmatprep.subr.mxu0 0.0
  %732 = vmatpush2.msra.mxu0 %v260
  %733 = vmatprep.subr.mxu0 0.0
  %734 = vmatpush2.msra.mxu0 %v259
  %735 = vmatprep.subr.mxu0 0.0
  %736 = vmatpush2.msra.mxu0 %v258
  %737 = vmatprep.subr.mxu0 0.0
  %738 = vmatpush2.msra.mxu0 %v257
  %739 = vmatprep.mubr.f32.mxu0 %v48
  %740 = vmatmul.mubr.f32.gmra.mxu0 %v47
  %v741 = vpop.f32.mrf.mxu0
  %v742 = vadd.f32 %v637, %v741
  %v743 = vpop.f32.mrf.mxu0
  %744 = vmatprep.mubr.f32.mxu0 %v61
  %745 = vmatmul.mubr.f32.gmra.mxu0 %v60
  %v746 = vpop.f32.mrf.mxu0
  %v747 = vadd.f32 %v642, %v746
  %v748 = vpop.f32.mrf.mxu0
  %749 = vmatprep.mubr.f32.mxu0 %v74
  %750 = vmatmul.mubr.f32.gmra.mxu0 %v73
  %v751 = vpop.f32.mrf.mxu0
  %v752 = vadd.f32 %v647, %v751
  %v753 = vpop.f32.mrf.mxu0
  %754 = vmatprep.mubr.f32.mxu0 %v87
  %755 = vmatmul.mubr.f32.gmra.mxu0 %v86
  %v756 = vpop.f32.mrf.mxu0
  %v757 = vadd.f32 %v652, %v756
  %v758 = vpop.f32.mrf.mxu0
  %759 = vmatprep.mubr.f32.mxu0 %v100
  %760 = vmatmul.mubr.f32.gmra.mxu0 %v99
  %v761 = vpop.f32.mrf.mxu0
  %v762 = vadd.f32 %v657, %v761
  %v763 = vpop.f32.mrf.mxu0
  %764 = vmatprep.mubr.f32.mxu0 %v113
  %765 = vmatmul.mubr.f32.gmra.mxu0 %v112
  %v766 = vpop.f32.mrf.mxu0
  %v767 = vadd.f32 %v662, %v766
  %v768 = vpop.f32.mrf.mxu0
  %769 = vmatprep.mubr.f32.mxu0 %v126
  %770 = vmatmul.mubr.f32.gmra.mxu0 %v125
  %v771 = vpop.f32.mrf.mxu0
  %v772 = vadd.f32 %v667, %v771
  %v773 = vpop.f32.mrf.mxu0
  %774 = vmatprep.mubr.f32.mxu0 %v139
  %775 = vmatmul.mubr.f32.gmra.mxu0 %v138
  %v776 = vpop.f32.mrf.mxu0
  %v777 = vadd.f32 %v672, %v776
  %v778 = vpop.f32.mrf.mxu0
  %779 = vdwg.mxu0
  %780 = vmatprep.subr.mxu0 0.0
  %781 = vmatpush1.msra.mxu0 %v288
  %782 = vmatprep.subr.mxu0 0.0
  %783 = vmatpush1.msra.mxu0 %v287
  %784 = vmatprep.subr.mxu0 0.0
  %785 = vmatpush1.msra.mxu0 %v286
  %786 = vmatprep.subr.mxu0 0.0
  %787 = vmatpush1.msra.mxu0 %v285
  %788 = vmatprep.subr.mxu0 0.0
  %789 = vmatpush1.msra.mxu0 %v284
  %790 = vmatprep.subr.mxu0 0.0
  %791 = vmatpush1.msra.mxu0 %v283
  %792 = vmatprep.subr.mxu0 0.0
  %793 = vmatpush1.msra.mxu0 %v282
  %794 = vmatprep.subr.mxu0 0.0
  %795 = vmatpush1.msra.mxu0 %v281
  %796 = vmatprep.subr.mxu0 0.0
  %797 = vmatpush1.msra.mxu0 %v280
  %798 = vmatprep.subr.mxu0 0.0
  %799 = vmatpush1.msra.mxu0 %v279
  %800 = vmatprep.subr.mxu0 0.0
  %801 = vmatpush1.msra.mxu0 %v278
  %802 = vmatprep.subr.mxu0 0.0
  %803 = vmatpush1.msra.mxu0 %v277
  %804 = vmatprep.subr.mxu0 0.0
  %805 = vmatpush1.msra.mxu0 %v276
  %806 = vmatprep.subr.mxu0 0.0
  %807 = vmatpush1.msra.mxu0 %v275
  %808 = vmatprep.subr.mxu0 0.0
  %809 = vmatpush1.msra.mxu0 %v274
  %810 = vmatprep.subr.mxu0 0.0
  %811 = vmatpush1.msra.mxu0 %v273
  %812 = vmatprep.subr.mxu0 0.0
  %813 = vmatpush2.msra.mxu0 %v304
  %814 = vmatprep.subr.mxu0 0.0
  %815 = vmatpush2.msra.mxu0 %v303
  %816 = vmatprep.subr.mxu0 0.0
  %817 = vmatpush2.msra.mxu0 %v302
  %818 = vmatprep.subr.mxu0 0.0
  %819 = vmatpush2.msra.mxu0 %v301
  %820 = vmatprep.subr.mxu0 0.0
  %821 = vmatpush2.msra.mxu0 %v300
  %822 = vmatprep.subr.mxu0 0.0
  %823 = vmatpush2.msra.mxu0 %v299
  %824 = vmatprep.subr.mxu0 0.0
  %825 = vmatpush2.msra.mxu0 %v298
  %826 = vmatprep.subr.mxu0 0.0
  %827 = vmatpush2.msra.mxu0 %v297
  %828 = vmatprep.subr.mxu0 0.0
  %829 = vmatpush2.msra.mxu0 %v296
  %830 = vmatprep.subr.mxu0 0.0
  %831 = vmatpush2.msra.mxu0 %v295
  %832 = vmatprep.subr.mxu0 0.0
  %833 = vmatpush2.msra.mxu0 %v294
  %834 = vmatprep.subr.mxu0 0.0
  %835 = vmatpush2.msra.mxu0 %v293
  %836 = vmatprep.subr.mxu0 0.0
  %837 = vmatpush2.msra.mxu0 %v292
  %838 = vmatprep.subr.mxu0 0.0
  %839 = vmatpush2.msra.mxu0 %v291
  %840 = vmatprep.subr.mxu0 0.0
  %841 = vmatpush2.msra.mxu0 %v290
  %842 = vmatprep.subr.mxu0 0.0
  %843 = vmatpush2.msra.mxu0 %v289
  %844 = vmatprep.mubr.f32.mxu0 %v50
  %845 = vmatmul.mubr.f32.gmra.mxu0 %v49
  %v846 = vpop.f32.mrf.mxu0
  %v847 = vadd.f32 %v742, %v846
  %v848 = vpop.f32.mrf.mxu0
  %849 = vmatprep.mubr.f32.mxu0 %v63
  %850 = vmatmul.mubr.f32.gmra.mxu0 %v62
  %v851 = vpop.f32.mrf.mxu0
  %v852 = vadd.f32 %v747, %v851
  %v853 = vpop.f32.mrf.mxu0
  %854 = vmatprep.mubr.f32.mxu0 %v76
  %855 = vmatmul.mubr.f32.gmra.mxu0 %v75
  %v856 = vpop.f32.mrf.mxu0
  %v857 = vadd.f32 %v752, %v856
  %v858 = vpop.f32.mrf.mxu0
  %859 = vmatprep.mubr.f32.mxu0 %v89
  %860 = vmatmul.mubr.f32.gmra.mxu0 %v88
  %v861 = vpop.f32.mrf.mxu0
  %v862 = vadd.f32 %v757, %v861
  %v863 = vpop.f32.mrf.mxu0
  %864 = vmatprep.mubr.f32.mxu0 %v102
  %865 = vmatmul.mubr.f32.gmra.mxu0 %v101
  %v866 = vpop.f32.mrf.mxu0
  %v867 = vadd.f32 %v762, %v866
  %v868 = vpop.f32.mrf.mxu0
  %869 = vmatprep.mubr.f32.mxu0 %v115
  %870 = vmatmul.mubr.f32.gmra.mxu0 %v114
  %v871 = vpop.f32.mrf.mxu0
  %v872 = vadd.f32 %v767, %v871
  %v873 = vpop.f32.mrf.mxu0
  %874 = vmatprep.mubr.f32.mxu0 %v128
  %875 = vmatmul.mubr.f32.gmra.mxu0 %v127
  %v876 = vpop.f32.mrf.mxu0
  %v877 = vadd.f32 %v772, %v876
  %v878 = vpop.f32.mrf.mxu0
  %879 = vmatprep.mubr.f32.mxu0 %v141
  %880 = vmatmul.mubr.f32.gmra.mxu0 %v140
  %v881 = vpop.f32.mrf.mxu0
  %v882 = vadd.f32 %v777, %v881
  %v883 = vpop.f32.mrf.mxu0
  %884 = vdwg.mxu0
  %885 = vmatprep.subr.mxu0 0.0
  %886 = vmatpush1.msra.mxu0 %v320
  %887 = vmatprep.subr.mxu0 0.0
  %888 = vmatpush1.msra.mxu0 %v319
  %889 = vmatprep.subr.mxu0 0.0
  %890 = vmatpush1.msra.mxu0 %v318
  %891 = vmatprep.subr.mxu0 0.0
  %892 = vmatpush1.msra.mxu0 %v317
  %893 = vmatprep.subr.mxu0 0.0
  %894 = vmatpush1.msra.mxu0 %v316
  %895 = vmatprep.subr.mxu0 0.0
  %896 = vmatpush1.msra.mxu0 %v315
  %897 = vmatprep.subr.mxu0 0.0
  %898 = vmatpush1.msra.mxu0 %v314
  %899 = vmatprep.subr.mxu0 0.0
  %900 = vmatpush1.msra.mxu0 %v313
  %901 = vmatprep.subr.mxu0 0.0
  %902 = vmatpush1.msra.mxu0 %v312
  %903 = vmatprep.subr.mxu0 0.0
  %904 = vmatpush1.msra.mxu0 %v311
  %905 = vmatprep.subr.mxu0 0.0
  %906 = vmatpush1.msra.mxu0 %v310
  %907 = vmatprep.subr.mxu0 0.0
  %908 = vmatpush1.msra.mxu0 %v309
  %909 = vmatprep.subr.mxu0 0.0
  %910 = vmatpush1.msra.mxu0 %v308
  %911 = vmatprep.subr.mxu0 0.0
  %912 = vmatpush1.msra.mxu0 %v307
  %913 = vmatprep.subr.mxu0 0.0
  %914 = vmatpush1.msra.mxu0 %v306
  %915 = vmatprep.subr.mxu0 0.0
  %916 = vmatpush1.msra.mxu0 %v305
  %917 = vmatprep.subr.mxu0 0.0
  %918 = vmatpush2.msra.mxu0 %v336
  %919 = vmatprep.subr.mxu0 0.0
  %920 = vmatpush2.msra.mxu0 %v335
  %921 = vmatprep.subr.mxu0 0.0
  %922 = vmatpush2.msra.mxu0 %v334
  %923 = vmatprep.subr.mxu0 0.0
  %924 = vmatpush2.msra.mxu0 %v333
  %925 = vmatprep.subr.mxu0 0.0
  %926 = vmatpush2.msra.mxu0 %v332
  %927 = vmatprep.subr.mxu0 0.0
  %928 = vmatpush2.msra.mxu0 %v331
  %929 = vmatprep.subr.mxu0 0.0
  %930 = vmatpush2.msra.mxu0 %v330
  %931 = vmatprep.subr.mxu0 0.0
  %932 = vmatpush2.msra.mxu0 %v329
  %933 = vmatprep.subr.mxu0 0.0
  %934 = vmatpush2.msra.mxu0 %v328
  %935 = vmatprep.subr.mxu0 0.0
  %936 = vmatpush2.msra.mxu0 %v327
  %937 = vmatprep.subr.mxu0 0.0
  %938 = vmatpush2.msra.mxu0 %v326
  %939 = vmatprep.subr.mxu0 0.0
  %940 = vmatpush2.msra.mxu0 %v325
  %941 = vmatprep.subr.mxu0 0.0
  %942 = vmatpush2.msra.mxu0 %v324
  %943 = vmatprep.subr.mxu0 0.0
  %944 = vmatpush2.msra.mxu0 %v323
  %945 = vmatprep.subr.mxu0 0.0
  %946 = vmatpush2.msra.mxu0 %v322
  %947 = vmatprep.subr.mxu0 0.0
  %948 = vmatpush2.msra.mxu0 %v321
  %949 = vmatprep.mubr.f32.mxu0 %v52
  %950 = vmatmul.mubr.f32.gmra.mxu0 %v51
  %v951 = vpop.f32.mrf.mxu0
  %v952 = vadd.f32 %v847, %v951
  %v953 = vpop.f32.mrf.mxu0
  %954 = vmatprep.mubr.f32.mxu0 %v65
  %955 = vmatmul.mubr.f32.gmra.mxu0 %v64
  %v956 = vpop.f32.mrf.mxu0
  %v957 = vadd.f32 %v852, %v956
  %v958 = vpop.f32.mrf.mxu0
  %959 = vmatprep.mubr.f32.mxu0 %v78
  %960 = vmatmul.mubr.f32.gmra.mxu0 %v77
  %v961 = vpop.f32.mrf.mxu0
  %v962 = vadd.f32 %v857, %v961
  %v963 = vpop.f32.mrf.mxu0
  %964 = vmatprep.mubr.f32.mxu0 %v91
  %965 = vmatmul.mubr.f32.gmra.mxu0 %v90
  %v966 = vpop.f32.mrf.mxu0
  %v967 = vadd.f32 %v862, %v966
  %v968 = vpop.f32.mrf.mxu0
  %969 = vmatprep.mubr.f32.mxu0 %v104
  %970 = vmatmul.mubr.f32.gmra.mxu0 %v103
  %v971 = vpop.f32.mrf.mxu0
  %v972 = vadd.f32 %v867, %v971
  %v973 = vpop.f32.mrf.mxu0
  %974 = vmatprep.mubr.f32.mxu0 %v117
  %975 = vmatmul.mubr.f32.gmra.mxu0 %v116
  %v976 = vpop.f32.mrf.mxu0
  %v977 = vadd.f32 %v872, %v976
  %v978 = vpop.f32.mrf.mxu0
  %979 = vmatprep.mubr.f32.mxu0 %v130
  %980 = vmatmul.mubr.f32.gmra.mxu0 %v129
  %v981 = vpop.f32.mrf.mxu0
  %v982 = vadd.f32 %v877, %v981
  %v983 = vpop.f32.mrf.mxu0
  %984 = vmatprep.mubr.f32.mxu0 %v143
  %985 = vmatmul.mubr.f32.gmra.mxu0 %v142
  %v986 = vpop.f32.mrf.mxu0
  %v987 = vadd.f32 %v882, %v986
  %v988 = vpop.f32.mrf.mxu0
  %989 = vdwg.mxu0
  %990 = vmatprep.subr.mxu0 0.0
  %991 = vmatpush1.msra.mxu0 %v352
  %992 = vmatprep.subr.mxu0 0.0
  %993 = vmatpush1.msra.mxu0 %v351
  %994 = vmatprep.subr.mxu0 0.0
  %995 = vmatpush1.msra.mxu0 %v350
  %996 = vmatprep.subr.mxu0 0.0
  %997 = vmatpush1.msra.mxu0 %v349
  %998 = vmatprep.subr.mxu0 0.0
  %999 = vmatpush1.msra.mxu0 %v348
  %1000 = vmatprep.subr.mxu0 0.0
  %1001 = vmatpush1.msra.mxu0 %v347
  %1002 = vmatprep.subr.mxu0 0.0
  %1003 = vmatpush1.msra.mxu0 %v346
  %1004 = vmatprep.subr.mxu0 0.0
  %1005 = vmatpush1.msra.mxu0 %v345
  %1006 = vmatprep.subr.mxu0 0.0
  %1007 = vmatpush1.msra.mxu0 %v344
  %1008 = vmatprep.subr.mxu0 0.0
  %1009 = vmatpush1.msra.mxu0 %v343
  %1010 = vmatprep.subr.mxu0 0.0
  %1011 = vmatpush1.msra.mxu0 %v342
  %1012 = vmatprep.subr.mxu0 0.0
  %1013 = vmatpush1.msra.mxu0 %v341
  %1014 = vmatprep.subr.mxu0 0.0
  %1015 = vmatpush1.msra.mxu0 %v340
  %1016 = vmatprep.subr.mxu0 0.0
  %1017 = vmatpush1.msra.mxu0 %v339
  %1018 = vmatprep.subr.mxu0 0.0
  %1019 = vmatpush1.msra.mxu0 %v338
  %1020 = vmatprep.subr.mxu0 0.0
  %1021 = vmatpush1.msra.mxu0 %v337
  %1022 = vmatprep.subr.mxu0 0.0
  %1023 = vmatpush2.msra.mxu0 0.0
  %1024 = vmatprep.subr.mxu0 0.0
  %1025 = vmatpush2.msra.mxu0 0.0
  %1026 = vmatprep.subr.mxu0 0.0
  %1027 = vmatpush2.msra.mxu0 0.0
  %1028 = vmatprep.subr.mxu0 0.0
  %1029 = vmatpush2.msra.mxu0 0.0
  %1030 = vmatprep.subr.mxu0 0.0
  %1031 = vmatpush2.msra.mxu0 0.0
  %1032 = vmatprep.subr.mxu0 0.0
  %1033 = vmatpush2.msra.mxu0 0.0
  %1034 = vmatprep.subr.mxu0 0.0
  %1035 = vmatpush2.msra.mxu0 0.0
  %1036 = vmatprep.subr.mxu0 0.0
  %1037 = vmatpush2.msra.mxu0 0.0
  %1038 = vmatprep.subr.mxu0 0.0
  %1039 = vmatpush2.msra.mxu0 0.0
  %1040 = vmatprep.subr.mxu0 0.0
  %1041 = vmatpush2.msra.mxu0 0.0
  %1042 = vmatprep.subr.mxu0 0.0
  %1043 = vmatpush2.msra.mxu0 0.0
  %1044 = vmatprep.subr.mxu0 0.0
  %1045 = vmatpush2.msra.mxu0 0.0
  %1046 = vmatprep.subr.mxu0 0.0
  %1047 = vmatpush2.msra.mxu0 0.0
  %1048 = vmatprep.subr.mxu0 0.0
  %1049 = vmatpush2.msra.mxu0 0.0
  %1050 = vmatprep.subr.mxu0 0.0
  %1051 = vmatpush2.msra.mxu0 0.0
  %1052 = vmatprep.subr.mxu0 0.0
  %1053 = vmatpush2.msra.mxu0 0.0
  %1054 = vmatprep.mubr.f32.mxu0 0.0
  %1055 = vmatmul.mubr.f32.gmra.mxu0 %v53
  %v1056 = vpop.f32.mrf.mxu0
  %v1057 = vadd.f32 %v952, %v1056
  %v1058 = vpop.f32.mrf.mxu0
  %1059 = vmatprep.mubr.f32.mxu0 0.0
  %1060 = vmatmul.mubr.f32.gmra.mxu0 %v66
  %v1061 = vpop.f32.mrf.mxu0
  %v1062 = vadd.f32 %v957, %v1061
  %v1063 = vpop.f32.mrf.mxu0
  %1064 = vmatprep.mubr.f32.mxu0 0.0
  %1065 = vmatmul.mubr.f32.gmra.mxu0 %v79
  %v1066 = vpop.f32.mrf.mxu0
  %v1067 = vadd.f32 %v962, %v1066
  %v1068 = vpop.f32.mrf.mxu0
  %1069 = vmatprep.mubr.f32.mxu0 0.0
  %1070 = vmatmul.mubr.f32.gmra.mxu0 %v92
  %v1071 = vpop.f32.mrf.mxu0
  %v1072 = vadd.f32 %v967, %v1071
  %v1073 = vpop.f32.mrf.mxu0
  %1074 = vmatprep.mubr.f32.mxu0 0.0
  %1075 = vmatmul.mubr.f32.gmra.mxu0 %v105
  %v1076 = vpop.f32.mrf.mxu0
  %v1077 = vadd.f32 %v972, %v1076
  %v1078 = vpop.f32.mrf.mxu0
  %1079 = vmatprep.mubr.f32.mxu0 0.0
  %1080 = vmatmul.mubr.f32.gmra.mxu0 %v118
  %v1081 = vpop.f32.mrf.mxu0
  %v1082 = vadd.f32 %v977, %v1081
  %v1083 = vpop.f32.mrf.mxu0
  %1084 = vmatprep.mubr.f32.mxu0 0.0
  %1085 = vmatmul.mubr.f32.gmra.mxu0 %v131
  %v1086 = vpop.f32.mrf.mxu0
  %v1087 = vadd.f32 %v982, %v1086
  %v1088 = vpop.f32.mrf.mxu0
  %1089 = vmatprep.mubr.f32.mxu0 0.0
  %1090 = vmatmul.mubr.f32.gmra.mxu0 %v144
  %v1091 = vpop.f32.mrf.mxu0
  %v1092 = vadd.f32 %v987, %v1091
  %v1093 = vpop.f32.mrf.mxu0
  %1094 = vdwg.mxu0
  %vm1095 = vcmp.gt.f32.partialorder %v1057, 0.0
  %vm1096 = vcmp.gt.f32.partialorder %v1062, 0.0
  %vm1097 = vcmp.gt.f32.partialorder %v1067, 0.0
  %vm1098 = vcmp.gt.f32.partialorder %v1072, 0.0
  %vm1099 = vcmp.gt.f32.partialorder %v1077, 0.0
  %vm1100 = vcmp.gt.f32.partialorder %v1082, 0.0
  %vm1101 = vcmp.gt.f32.partialorder %v1087, 0.0
  %vm1102 = vcmp.gt.f32.partialorder %v1092, 0.0
  %v1103 = vmul.f32 %v1057, 0.01
  %v1104 = vmul.f32 %v1062, 0.01
  %v1105 = vmul.f32 %v1067, 0.01
  %v1106 = vmul.f32 %v1072, 0.01
  %v1107 = vmul.f32 %v1077, 0.01
  %v1108 = vmul.f32 %v1082, 0.01
  %v1109 = vmul.f32 %v1087, 0.01
  %v1110 = vmul.f32 %v1092, 0.01
  %v1111 = vsel %vm1095, %v1057, %v1103
  %v1112 = vsel %vm1096, %v1062, %v1104
  %v1113 = vsel %vm1097, %v1067, %v1105
  %v1114 = vsel %vm1098, %v1072, %v1106
  %v1115 = vsel %vm1099, %v1077, %v1107
  %v1116 = vsel %vm1100, %v1082, %v1108
  %v1117 = vsel %vm1101, %v1087, %v1109
  %v1118 = vsel %vm1102, %v1092, %v1110
  %v1119 = vld [vmem:[%s4] sm:$0xff]
  %v1120 = vld [vmem:[%s4 + $0x8] sm:$0xff]
  %v1121 = vld [vmem:[%s4 + $0x10] sm:$0xff]
  %v1122 = vld [vmem:[%s4 + $0x18] sm:$0xff]
  %v1123 = vld [vmem:[%s4 + $0x20] sm:$0xff]
  %v1124 = vld [vmem:[%s4 + $0x28] sm:$0xff]
  %v1125 = vld [vmem:[%s4 + $0x30] sm:$0xff]
  %v1126 = vld [vmem:[%s4 + $0x38] sm:$0xff]
  %v1127 = vld [vmem:[%s4 + $0x40] sm:$0xff]
  %v1128 = vld [vmem:[%s4 + $0x48] sm:$0xff]
  %v1129 = vld [vmem:[%s4 + $0x50] sm:$0xff]
  %v1130 = vld [vmem:[%s4 + $0x58] sm:$0xff]
  %v1131 = vld [vmem:[%s4 + $0x60] sm:$0xff]
  %v1132 = vld [vmem:[%s4 + $0x68] sm:$0xff]
  %v1133 = vld [vmem:[%s4 + $0x70] sm:$0xff]
  %v1134 = vld [vmem:[%s4 + $0x78] sm:$0xff]
  %v1135 = vld [vmem:[%s5] sm:$0x1]
  %v1137 = vlaneseq
  %v1138 = vshrl.u32 %v1137, 7
  %v1139 = vsub.s32 0, %v1138
  %v1140 = vrot.slane %v1135, %v1139
  %1142 = vmatprep.subr.mxu0 0.0
  %1143 = vmatpush1.msra.mxu0 %v1134
  %1144 = vmatprep.subr.mxu0 0.0
  %1145 = vmatpush1.msra.mxu0 %v1133
  %1146 = vmatprep.subr.mxu0 0.0
  %1147 = vmatpush1.msra.mxu0 %v1132
  %1148 = vmatprep.subr.mxu0 0.0
  %1149 = vmatpush1.msra.mxu0 %v1131
  %1150 = vmatprep.subr.mxu0 0.0
  %1151 = vmatpush1.msra.mxu0 %v1130
  %1152 = vmatprep.subr.mxu0 0.0
  %1153 = vmatpush1.msra.mxu0 %v1129
  %1154 = vmatprep.subr.mxu0 0.0
  %1155 = vmatpush1.msra.mxu0 %v1128
  %1156 = vmatprep.subr.mxu0 0.0
  %1157 = vmatpush1.msra.mxu0 %v1127
  %1158 = vmatprep.subr.mxu0 0.0
  %1159 = vmatpush1.msra.mxu0 %v1126
  %1160 = vmatprep.subr.mxu0 0.0
  %1161 = vmatpush1.msra.mxu0 %v1125
  %1162 = vmatprep.subr.mxu0 0.0
  %1163 = vmatpush1.msra.mxu0 %v1124
  %1164 = vmatprep.subr.mxu0 0.0
  %1165 = vmatpush1.msra.mxu0 %v1123
  %1166 = vmatprep.subr.mxu0 0.0
  %1167 = vmatpush1.msra.mxu0 %v1122
  %1168 = vmatprep.subr.mxu0 0.0
  %1169 = vmatpush1.msra.mxu0 %v1121
  %1170 = vmatprep.subr.mxu0 0.0
  %1171 = vmatpush1.msra.mxu0 %v1120
  %1172 = vmatprep.subr.mxu0 0.0
  %1173 = vmatpush1.msra.mxu0 %v1119
  %1174 = vmatprep.subr.mxu0 0.0
  %1175 = vmatpush2.msra.mxu0 0.0
  %1176 = vmatprep.subr.mxu0 0.0
  %1177 = vmatpush2.msra.mxu0 0.0
  %1178 = vmatprep.subr.mxu0 0.0
  %1179 = vmatpush2.msra.mxu0 0.0
  %1180 = vmatprep.subr.mxu0 0.0
  %1181 = vmatpush2.msra.mxu0 0.0
  %1182 = vmatprep.subr.mxu0 0.0
  %1183 = vmatpush2.msra.mxu0 0.0
  %1184 = vmatprep.subr.mxu0 0.0
  %1185 = vmatpush2.msra.mxu0 0.0
  %1186 = vmatprep.subr.mxu0 0.0
  %1187 = vmatpush2.msra.mxu0 0.0
  %1188 = vmatprep.subr.mxu0 0.0
  %1189 = vmatpush2.msra.mxu0 0.0
  %1190 = vmatprep.subr.mxu0 0.0
  %1191 = vmatpush2.msra.mxu0 0.0
  %1192 = vmatprep.subr.mxu0 0.0
  %1193 = vmatpush2.msra.mxu0 0.0
  %1194 = vmatprep.subr.mxu0 0.0
  %1195 = vmatpush2.msra.mxu0 0.0
  %1196 = vmatprep.subr.mxu0 0.0
  %1197 = vmatpush2.msra.mxu0 0.0
  %1198 = vmatprep.subr.mxu0 0.0
  %1199 = vmatpush2.msra.mxu0 0.0
  %1200 = vmatprep.subr.mxu0 0.0
  %1201 = vmatpush2.msra.mxu0 0.0
  %1202 = vmatprep.subr.mxu0 0.0
  %1203 = vmatpush2.msra.mxu0 0.0
  %1204 = vmatprep.subr.mxu0 0.0
  %1205 = vmatpush2.msra.mxu0 0.0
  %1206 = vmatprep.mubr.f32.mxu0 0.0
  %1207 = vmatmul.mubr.f32.gmra.mxu0 %v1111
  %v1208 = vpop.f32.mrf.mxu0
  %v1209 = vadd.f32 %v1140, %v1208
  %v1210 = vpop.f32.mrf.mxu0
  %1211 = vmatprep.mubr.f32.mxu0 0.0
  %1212 = vmatmul.mubr.f32.gmra.mxu0 %v1112
  %v1213 = vpop.f32.mrf.mxu0
  %v1214 = vadd.f32 %v1140, %v1213
  %v1215 = vpop.f32.mrf.mxu0
  %1216 = vmatprep.mubr.f32.mxu0 0.0
  %1217 = vmatmul.mubr.f32.gmra.mxu0 %v1113
  %v1218 = vpop.f32.mrf.mxu0
  %v1219 = vadd.f32 %v1140, %v1218
  %v1220 = vpop.f32.mrf.mxu0
  %1221 = vmatprep.mubr.f32.mxu0 0.0
  %1222 = vmatmul.mubr.f32.gmra.mxu0 %v1114
  %v1223 = vpop.f32.mrf.mxu0
  %v1224 = vadd.f32 %v1140, %v1223
  %v1225 = vpop.f32.mrf.mxu0
  %1226 = vmatprep.mubr.f32.mxu0 0.0
  %1227 = vmatmul.mubr.f32.gmra.mxu0 %v1115
  %v1228 = vpop.f32.mrf.mxu0
  %v1229 = vadd.f32 %v1140, %v1228
  %v1230 = vpop.f32.mrf.mxu0
  %1231 = vmatprep.mubr.f32.mxu0 0.0
  %1232 = vmatmul.mubr.f32.gmra.mxu0 %v1116
  %v1233 = vpop.f32.mrf.mxu0
  %v1234 = vadd.f32 %v1140, %v1233
  %v1235 = vpop.f32.mrf.mxu0
  %1236 = vmatprep.mubr.f32.mxu0 0.0
  %1237 = vmatmul.mubr.f32.gmra.mxu0 %v1117
  %v1238 = vpop.f32.mrf.mxu0
  %v1239 = vadd.f32 %v1140, %v1238
  %v1240 = vpop.f32.mrf.mxu0
  %1241 = vmatprep.mubr.f32.mxu0 0.0
  %1242 = vmatmul.mubr.f32.gmra.mxu0 %v1118
  %v1243 = vpop.f32.mrf.mxu0
  %v1244 = vadd.f32 %v1140, %v1243
  %v1245 = vpop.f32.mrf.mxu0
  %1246 = vdwg.mxu0
  %vm1247 = vcmp.gt.f32.partialorder %v1209, 0.0
  %vm1248 = vcmp.gt.f32.partialorder %v1214, 0.0
  %vm1249 = vcmp.gt.f32.partialorder %v1219, 0.0
  %vm1250 = vcmp.gt.f32.partialorder %v1224, 0.0
  %vm1251 = vcmp.gt.f32.partialorder %v1229, 0.0
  %vm1252 = vcmp.gt.f32.partialorder %v1234, 0.0
  %vm1253 = vcmp.gt.f32.partialorder %v1239, 0.0
  %vm1254 = vcmp.gt.f32.partialorder %v1244, 0.0
  %v1255 = vmul.f32 %v1209, 0.01
  %v1256 = vmul.f32 %v1214, 0.01
  %v1257 = vmul.f32 %v1219, 0.01
  %v1258 = vmul.f32 %v1224, 0.01
  %v1259 = vmul.f32 %v1229, 0.01
  %v1260 = vmul.f32 %v1234, 0.01
  %v1261 = vmul.f32 %v1239, 0.01
  %v1262 = vmul.f32 %v1244, 0.01
  %v1263 = vsel %vm1247, %v1209, %v1255
  %v1264 = vsel %vm1248, %v1214, %v1256
  %v1265 = vsel %vm1249, %v1219, %v1257
  %v1266 = vsel %vm1250, %v1224, %v1258
  %v1267 = vsel %vm1251, %v1229, %v1259
  %v1268 = vsel %vm1252, %v1234, %v1260
  %v1269 = vsel %vm1253, %v1239, %v1261
  %v1270 = vsel %vm1254, %v1244, %v1262
  %v1271 = vld [vmem:[%s6] sm:$0xff]
  %v1272 = vld [vmem:[%s6 + $0x8] sm:$0xff]
  %v1273 = vld [vmem:[%s6 + $0x10] sm:$0xff]
  %v1274 = vld [vmem:[%s6 + $0x18] sm:$0xff]
  %v1275 = vld [vmem:[%s6 + $0x20] sm:$0xff]
  %v1276 = vld [vmem:[%s6 + $0x28] sm:$0xff]
  %v1277 = vld [vmem:[%s6 + $0x30] sm:$0xff]
  %v1278 = vld [vmem:[%s6 + $0x38] sm:$0xff]
  %v1279 = vld [vmem:[%s6 + $0x40] sm:$0xff]
  %v1280 = vld [vmem:[%s6 + $0x48] sm:$0xff]
  %v1281 = vld [vmem:[%s6 + $0x50] sm:$0xff]
  %v1282 = vld [vmem:[%s6 + $0x58] sm:$0xff]
  %v1283 = vld [vmem:[%s6 + $0x60] sm:$0xff]
  %v1284 = vld [vmem:[%s6 + $0x68] sm:$0xff]
  %v1285 = vld [vmem:[%s6 + $0x70] sm:$0xff]
  %v1286 = vld [vmem:[%s6 + $0x78] sm:$0xff]
  %v1287 = vld [vmem:[%s6 + $0x80] sm:$0xff]
  %v1288 = vld [vmem:[%s6 + $0x88] sm:$0xff]
  %v1289 = vld [vmem:[%s6 + $0x90] sm:$0xff]
  %v1290 = vld [vmem:[%s6 + $0x98] sm:$0xff]
  %v1291 = vld [vmem:[%s6 + $0xa0] sm:$0xff]
  %v1292 = vld [vmem:[%s6 + $0xa8] sm:$0xff]
  %v1293 = vld [vmem:[%s6 + $0xb0] sm:$0xff]
  %v1294 = vld [vmem:[%s6 + $0xb8] sm:$0xff]
  %v1295 = vld [vmem:[%s6 + $0xc0] sm:$0xff]
  %v1296 = vld [vmem:[%s6 + $0xc8] sm:$0xff]
  %v1297 = vld [vmem:[%s6 + $0xd0] sm:$0xff]
  %v1298 = vld [vmem:[%s6 + $0xd8] sm:$0xff]
  %v1299 = vld [vmem:[%s6 + $0xe0] sm:$0xff]
  %v1300 = vld [vmem:[%s6 + $0xe8] sm:$0xff]
  %v1301 = vld [vmem:[%s6 + $0xf0] sm:$0xff]
  %v1302 = vld [vmem:[%s6 + $0xf8] sm:$0xff]
  %v1303 = vld [vmem:[%s6 + $0x100] sm:$0xff]
  %v1304 = vld [vmem:[%s6 + $0x108] sm:$0xff]
  %v1305 = vld [vmem:[%s6 + $0x110] sm:$0xff]
  %v1306 = vld [vmem:[%s6 + $0x118] sm:$0xff]
  %v1307 = vld [vmem:[%s6 + $0x120] sm:$0xff]
  %v1308 = vld [vmem:[%s6 + $0x128] sm:$0xff]
  %v1309 = vld [vmem:[%s6 + $0x130] sm:$0xff]
  %v1310 = vld [vmem:[%s6 + $0x138] sm:$0xff]
  %v1311 = vld [vmem:[%s6 + $0x140] sm:$0xff]
  %v1312 = vld [vmem:[%s6 + $0x148] sm:$0xff]
  %v1313 = vld [vmem:[%s6 + $0x150] sm:$0xff]
  %v1314 = vld [vmem:[%s6 + $0x158] sm:$0xff]
  %v1315 = vld [vmem:[%s6 + $0x160] sm:$0xff]
  %v1316 = vld [vmem:[%s6 + $0x168] sm:$0xff]
  %v1317 = vld [vmem:[%s6 + $0x170] sm:$0xff]
  %v1318 = vld [vmem:[%s6 + $0x178] sm:$0xff]
  %1319 = vmatprep.subr.mxu0 %v1317
  %1320 = vmatpush1.msra.mxu0 %v1316
  %1321 = vmatprep.subr.mxu0 %v1314
  %1322 = vmatpush1.msra.mxu0 %v1313
  %1323 = vmatprep.subr.mxu0 %v1311
  %1324 = vmatpush1.msra.mxu0 %v1310
  %1325 = vmatprep.subr.mxu0 %v1308
  %1326 = vmatpush1.msra.mxu0 %v1307
  %1327 = vmatprep.subr.mxu0 %v1305
  %1328 = vmatpush1.msra.mxu0 %v1304
  %1329 = vmatprep.subr.mxu0 %v1302
  %1330 = vmatpush1.msra.mxu0 %v1301
  %1331 = vmatprep.subr.mxu0 %v1299
  %1332 = vmatpush1.msra.mxu0 %v1298
  %1333 = vmatprep.subr.mxu0 %v1296
  %1334 = vmatpush1.msra.mxu0 %v1295
  %1335 = vmatprep.subr.mxu0 %v1293
  %1336 = vmatpush1.msra.mxu0 %v1292
  %1337 = vmatprep.subr.mxu0 %v1290
  %1338 = vmatpush1.msra.mxu0 %v1289
  %1339 = vmatprep.subr.mxu0 %v1287
  %1340 = vmatpush1.msra.mxu0 %v1286
  %1341 = vmatprep.subr.mxu0 %v1284
  %1342 = vmatpush1.msra.mxu0 %v1283
  %1343 = vmatprep.subr.mxu0 %v1281
  %1344 = vmatpush1.msra.mxu0 %v1280
  %1345 = vmatprep.subr.mxu0 %v1278
  %1346 = vmatpush1.msra.mxu0 %v1277
  %1347 = vmatprep.subr.mxu0 %v1275
  %1348 = vmatpush1.msra.mxu0 %v1274
  %1349 = vmatprep.subr.mxu0 %v1272
  %1350 = vmatpush1.msra.mxu0 %v1271
  %1351 = vmatprep.subr.mxu0 0.0
  %1352 = vmatpush2.msra.mxu0 0.0
  %1353 = vmatprep.subr.mxu0 0.0
  %1354 = vmatpush2.msra.mxu0 0.0
  %1355 = vmatprep.subr.mxu0 0.0
  %1356 = vmatpush2.msra.mxu0 0.0
  %1357 = vmatprep.subr.mxu0 0.0
  %1358 = vmatpush2.msra.mxu0 0.0
  %1359 = vmatprep.subr.mxu0 0.0
  %1360 = vmatpush2.msra.mxu0 0.0
  %1361 = vmatprep.subr.mxu0 0.0
  %1362 = vmatpush2.msra.mxu0 0.0
  %1363 = vmatprep.subr.mxu0 0.0
  %1364 = vmatpush2.msra.mxu0 0.0
  %1365 = vmatprep.subr.mxu0 0.0
  %1366 = vmatpush2.msra.mxu0 0.0
  %1367 = vmatprep.subr.mxu0 0.0
  %1368 = vmatpush2.msra.mxu0 0.0
  %1369 = vmatprep.subr.mxu0 0.0
  %1370 = vmatpush2.msra.mxu0 0.0
  %1371 = vmatprep.subr.mxu0 0.0
  %1372 = vmatpush2.msra.mxu0 0.0
  %1373 = vmatprep.subr.mxu0 0.0
  %1374 = vmatpush2.msra.mxu0 0.0
  %1375 = vmatprep.subr.mxu0 0.0
  %1376 = vmatpush2.msra.mxu0 0.0
  %1377 = vmatprep.subr.mxu0 0.0
  %1378 = vmatpush2.msra.mxu0 0.0
  %1379 = vmatprep.subr.mxu0 0.0
  %1380 = vmatpush2.msra.mxu0 0.0
  %1381 = vmatprep.subr.mxu0 0.0
  %1382 = vmatpush2.msra.mxu0 0.0
  %1383 = vmatprep.mubr.f32.mxu0 0.0
  %1384 = vmatmul.mubr.f32.gmra.mxu0 %v1263
  %v1385 = vpop.f32.mrf.mxu0
  %v1386 = vadd.f32 0.0, %v1385
  %v1387 = vpop.f32.mrf.mxu0
  %v1388 = vadd.f32 0.0, %v1387
  %1389 = vmatprep.mubr.f32.mxu0 0.0
  %1390 = vmatmul.mubr.f32.gmra.mxu0 %v1264
  %v1391 = vpop.f32.mrf.mxu0
  %v1392 = vadd.f32 0.0, %v1391
  %v1393 = vpop.f32.mrf.mxu0
  %v1394 = vadd.f32 0.0, %v1393
  %1395 = vmatprep.mubr.f32.mxu0 0.0
  %1396 = vmatmul.mubr.f32.gmra.mxu0 %v1265
  %v1397 = vpop.f32.mrf.mxu0
  %v1398 = vadd.f32 0.0, %v1397
  %v1399 = vpop.f32.mrf.mxu0
  %v1400 = vadd.f32 0.0, %v1399
  %1401 = vmatprep.mubr.f32.mxu0 0.0
  %1402 = vmatmul.mubr.f32.gmra.mxu0 %v1266
  %v1403 = vpop.f32.mrf.mxu0
  %v1404 = vadd.f32 0.0, %v1403
  %v1405 = vpop.f32.mrf.mxu0
  %v1406 = vadd.f32 0.0, %v1405
  %1407 = vmatprep.mubr.f32.mxu0 0.0
  %1408 = vmatmul.mubr.f32.gmra.mxu0 %v1267
  %v1409 = vpop.f32.mrf.mxu0
  %v1410 = vadd.f32 0.0, %v1409
  %v1411 = vpop.f32.mrf.mxu0
  %v1412 = vadd.f32 0.0, %v1411
  %1413 = vmatprep.mubr.f32.mxu0 0.0
  %1414 = vmatmul.mubr.f32.gmra.mxu0 %v1268
  %v1415 = vpop.f32.mrf.mxu0
  %v1416 = vadd.f32 0.0, %v1415
  %v1417 = vpop.f32.mrf.mxu0
  %v1418 = vadd.f32 0.0, %v1417
  %1419 = vmatprep.mubr.f32.mxu0 0.0
  %1420 = vmatmul.mubr.f32.gmra.mxu0 %v1269
  %v1421 = vpop.f32.mrf.mxu0
  %v1422 = vadd.f32 0.0, %v1421
  %v1423 = vpop.f32.mrf.mxu0
  %v1424 = vadd.f32 0.0, %v1423
  %1425 = vmatprep.mubr.f32.mxu0 0.0
  %1426 = vmatmul.mubr.f32.gmra.mxu0 %v1270
  %v1427 = vpop.f32.mrf.mxu0
  %v1428 = vadd.f32 0.0, %v1427
  %v1429 = vpop.f32.mrf.mxu0
  %v1430 = vadd.f32 0.0, %v1429
  %1431 = vdwg.mxu0
  %1432 = vmatprep.subr.mxu0 0.0
  %1433 = vmatpush1.msra.mxu0 %v1318
  %1434 = vmatprep.subr.mxu0 0.0
  %1435 = vmatpush1.msra.mxu0 %v1315
  %1436 = vmatprep.subr.mxu0 0.0
  %1437 = vmatpush1.msra.mxu0 %v1312
  %1438 = vmatprep.subr.mxu0 0.0
  %1439 = vmatpush1.msra.mxu0 %v1309
  %1440 = vmatprep.subr.mxu0 0.0
  %1441 = vmatpush1.msra.mxu0 %v1306
  %1442 = vmatprep.subr.mxu0 0.0
  %1443 = vmatpush1.msra.mxu0 %v1303
  %1444 = vmatprep.subr.mxu0 0.0
  %1445 = vmatpush1.msra.mxu0 %v1300
  %1446 = vmatprep.subr.mxu0 0.0
  %1447 = vmatpush1.msra.mxu0 %v1297
  %1448 = vmatprep.subr.mxu0 0.0
  %1449 = vmatpush1.msra.mxu0 %v1294
  %1450 = vmatprep.subr.mxu0 0.0
  %1451 = vmatpush1.msra.mxu0 %v1291
  %1452 = vmatprep.subr.mxu0 0.0
  %1453 = vmatpush1.msra.mxu0 %v1288
  %1454 = vmatprep.subr.mxu0 0.0
  %1455 = vmatpush1.msra.mxu0 %v1285
  %1456 = vmatprep.subr.mxu0 0.0
  %1457 = vmatpush1.msra.mxu0 %v1282
  %1458 = vmatprep.subr.mxu0 0.0
  %1459 = vmatpush1.msra.mxu0 %v1279
  %1460 = vmatprep.subr.mxu0 0.0
  %1461 = vmatpush1.msra.mxu0 %v1276
  %1462 = vmatprep.subr.mxu0 0.0
  %1463 = vmatpush1.msra.mxu0 %v1273
  %1464 = vmatprep.subr.mxu0 0.0
  %1465 = vmatpush2.msra.mxu0 0.0
  %1466 = vmatprep.subr.mxu0 0.0
  %1467 = vmatpush2.msra.mxu0 0.0
  %1468 = vmatprep.subr.mxu0 0.0
  %1469 = vmatpush2.msra.mxu0 0.0
  %1470 = vmatprep.subr.mxu0 0.0
  %1471 = vmatpush2.msra.mxu0 0.0
  %1472 = vmatprep.subr.mxu0 0.0
  %1473 = vmatpush2.msra.mxu0 0.0
  %1474 = vmatprep.subr.mxu0 0.0
  %1475 = vmatpush2.msra.mxu0 0.0
  %1476 = vmatprep.subr.mxu0 0.0
  %1477 = vmatpush2.msra.mxu0 0.0
  %1478 = vmatprep.subr.mxu0 0.0
  %1479 = vmatpush2.msra.mxu0 0.0
  %1480 = vmatprep.subr.mxu0 0.0
  %1481 = vmatpush2.msra.mxu0 0.0
  %1482 = vmatprep.subr.mxu0 0.0
  %1483 = vmatpush2.msra.mxu0 0.0
  %1484 = vmatprep.subr.mxu0 0.0
  %1485 = vmatpush2.msra.mxu0 0.0
  %1486 = vmatprep.subr.mxu0 0.0
  %1487 = vmatpush2.msra.mxu0 0.0
  %1488 = vmatprep.subr.mxu0 0.0
  %1489 = vmatpush2.msra.mxu0 0.0
  %1490 = vmatprep.subr.mxu0 0.0
  %1491 = vmatpush2.msra.mxu0 0.0
  %1492 = vmatprep.subr.mxu0 0.0
  %1493 = vmatpush2.msra.mxu0 0.0
  %1494 = vmatprep.subr.mxu0 0.0
  %1495 = vmatpush2.msra.mxu0 0.0
  %1496 = vmatprep.mubr.f32.mxu0 0.0
  %1497 = vmatmul.mubr.f32.gmra.mxu0 %v1263
  %v1498 = vpop.f32.mrf.mxu0
  %v1499 = vadd.f32 0.0, %v1498
  %v1500 = vpop.f32.mrf.mxu0
  %1501 = vmatprep.mubr.f32.mxu0 0.0
  %1502 = vmatmul.mubr.f32.gmra.mxu0 %v1264
  %v1503 = vpop.f32.mrf.mxu0
  %v1504 = vadd.f32 0.0, %v1503
  %v1505 = vpop.f32.mrf.mxu0
  %1506 = vmatprep.mubr.f32.mxu0 0.0
  %1507 = vmatmul.mubr.f32.gmra.mxu0 %v1265
  %v1508 = vpop.f32.mrf.mxu0
  %v1509 = vadd.f32 0.0, %v1508
  %v1510 = vpop.f32.mrf.mxu0
  %1511 = vmatprep.mubr.f32.mxu0 0.0
  %1512 = vmatmul.mubr.f32.gmra.mxu0 %v1266
  %v1513 = vpop.f32.mrf.mxu0
  %v1514 = vadd.f32 0.0, %v1513
  %v1515 = vpop.f32.mrf.mxu0
  %1516 = vmatprep.mubr.f32.mxu0 0.0
  %1517 = vmatmul.mubr.f32.gmra.mxu0 %v1267
  %v1518 = vpop.f32.mrf.mxu0
  %v1519 = vadd.f32 0.0, %v1518
  %v1520 = vpop.f32.mrf.mxu0
  %1521 = vmatprep.mubr.f32.mxu0 0.0
  %1522 = vmatmul.mubr.f32.gmra.mxu0 %v1268
  %v1523 = vpop.f32.mrf.mxu0
  %v1524 = vadd.f32 0.0, %v1523
  %v1525 = vpop.f32.mrf.mxu0
  %1526 = vmatprep.mubr.f32.mxu0 0.0
  %1527 = vmatmul.mubr.f32.gmra.mxu0 %v1269
  %v1528 = vpop.f32.mrf.mxu0
  %v1529 = vadd.f32 0.0, %v1528
  %v1530 = vpop.f32.mrf.mxu0
  %1531 = vmatprep.mubr.f32.mxu0 0.0
  %1532 = vmatmul.mubr.f32.gmra.mxu0 %v1270
  %v1533 = vpop.f32.mrf.mxu0
  %v1534 = vadd.f32 0.0, %v1533
  %v1535 = vpop.f32.mrf.mxu0
  %1536 = vdwg.mxu0
  %v1537 = vld [vmem:[%s1] sm:$0xff]
  %v1538 = vld [vmem:[%s1 + $0x8] sm:$0xff]
  %v1539 = vld [vmem:[%s1 + $0x10] sm:$0xff]
  %v1540 = vld [vmem:[%s1 + $0x18] sm:$0xff]
  %v1541 = vld [vmem:[%s1 + $0x20] sm:$0xff]
  %v1542 = vld [vmem:[%s1 + $0x28] sm:$0xff]
  %v1543 = vld [vmem:[%s1 + $0x30] sm:$0xff]
  %v1544 = vld [vmem:[%s1 + $0x38] sm:$0xff]
  %1545 = vmatprep.subr.mxu0 0.0
  %1546 = vmatpush1.msra.mxu0 %v1430
  %1547 = vmatprep.subr.mxu0 0.0
  %1548 = vmatpush1.msra.mxu0 %v1424
  %1549 = vmatprep.subr.mxu0 0.0
  %1550 = vmatpush1.msra.mxu0 %v1418
  %1551 = vmatprep.subr.mxu0 0.0
  %1552 = vmatpush1.msra.mxu0 %v1412
  %1553 = vmatprep.subr.mxu0 0.0
  %1554 = vmatpush1.msra.mxu0 %v1406
  %1555 = vmatprep.subr.mxu0 0.0
  %1556 = vmatpush1.msra.mxu0 %v1400
  %1557 = vmatprep.subr.mxu0 0.0
  %1558 = vmatpush1.msra.mxu0 %v1394
  %1559 = vmatprep.subr.mxu0 0.0
  %1560 = vmatpush1.msra.mxu0 %v1388
  %1561 = vmatprep.subr.mxu0 0.0
  %1562 = vmatpush1.msra.mxu0 %v1428
  %1563 = vmatprep.subr.mxu0 0.0
  %1564 = vmatpush1.msra.mxu0 %v1422
  %1565 = vmatprep.subr.mxu0 0.0
  %1566 = vmatpush1.msra.mxu0 %v1416
  %1567 = vmatprep.subr.mxu0 0.0
  %1568 = vmatpush1.msra.mxu0 %v1410
  %1569 = vmatprep.subr.mxu0 0.0
  %1570 = vmatpush1.msra.mxu0 %v1404
  %1571 = vmatprep.subr.mxu0 0.0
  %1572 = vmatpush1.msra.mxu0 %v1398
  %1573 = vmatprep.subr.mxu0 0.0
  %1574 = vmatpush1.msra.mxu0 %v1392
  %1575 = vmatprep.subr.mxu0 0.0
  %1576 = vmatpush1.msra.mxu0 %v1386
  %1577 = vmatprep.subr.mxu0 0.0
  %1578 = vmatpush2.msra.mxu0 0.0
  %1579 = vmatprep.subr.mxu0 0.0
  %1580 = vmatpush2.msra.mxu0 0.0
  %1581 = vmatprep.subr.mxu0 0.0
  %1582 = vmatpush2.msra.mxu0 0.0
  %1583 = vmatprep.subr.mxu0 0.0
  %1584 = vmatpush2.msra.mxu0 0.0
  %1585 = vmatprep.subr.mxu0 0.0
  %1586 = vmatpush2.msra.mxu0 0.0
  %1587 = vmatprep.subr.mxu0 0.0
  %1588 = vmatpush2.msra.mxu0 0.0
  %1589 = vmatprep.subr.mxu0 0.0
  %1590 = vmatpush2.msra.mxu0 0.0
  %1591 = vmatprep.subr.mxu0 0.0
  %1592 = vmatpush2.msra.mxu0 0.0
  %1593 = vmatprep.subr.mxu0 0.0
  %1594 = vmatpush2.msra.mxu0 0.0
  %1595 = vmatprep.subr.mxu0 0.0
  %1596 = vmatpush2.msra.mxu0 0.0
  %1597 = vmatprep.subr.mxu0 0.0
  %1598 = vmatpush2.msra.mxu0 0.0
  %1599 = vmatprep.subr.mxu0 0.0
  %1600 = vmatpush2.msra.mxu0 0.0
  %1601 = vmatprep.subr.mxu0 0.0
  %1602 = vmatpush2.msra.mxu0 0.0
  %1603 = vmatprep.subr.mxu0 0.0
  %1604 = vmatpush2.msra.mxu0 0.0
  %1605 = vmatprep.subr.mxu0 0.0
  %1606 = vmatpush2.msra.mxu0 0.0
  %1607 = vmatprep.subr.mxu0 0.0
  %1608 = vmatpush2.msra.mxu0 0.0
  %1609 = vmatprep.mubr.f32.mxu0 0.0
  %1610 = vmatmul.mubr.f32.gmra.mxu0 %v1537
  %v1611 = vpop.f32.mrf.mxu0
  %v1612 = vadd.f32 %v1499, %v1611
  %v1613 = vpop.f32.mrf.mxu0
  %1614 = vmatprep.mubr.f32.mxu0 0.0
  %1615 = vmatmul.mubr.f32.gmra.mxu0 %v1538
  %v1616 = vpop.f32.mrf.mxu0
  %v1617 = vadd.f32 %v1504, %v1616
  %v1618 = vpop.f32.mrf.mxu0
  %1619 = vmatprep.mubr.f32.mxu0 0.0
  %1620 = vmatmul.mubr.f32.gmra.mxu0 %v1539
  %v1621 = vpop.f32.mrf.mxu0
  %v1622 = vadd.f32 %v1509, %v1621
  %v1623 = vpop.f32.mrf.mxu0
  %1624 = vmatprep.mubr.f32.mxu0 0.0
  %1625 = vmatmul.mubr.f32.gmra.mxu0 %v1540
  %v1626 = vpop.f32.mrf.mxu0
  %v1627 = vadd.f32 %v1514, %v1626
  %v1628 = vpop.f32.mrf.mxu0
  %1629 = vmatprep.mubr.f32.mxu0 0.0
  %1630 = vmatmul.mubr.f32.gmra.mxu0 %v1541
  %v1631 = vpop.f32.mrf.mxu0
  %v1632 = vadd.f32 %v1519, %v1631
  %v1633 = vpop.f32.mrf.mxu0
  %1634 = vmatprep.mubr.f32.mxu0 0.0
  %1635 = vmatmul.mubr.f32.gmra.mxu0 %v1542
  %v1636 = vpop.f32.mrf.mxu0
  %v1637 = vadd.f32 %v1524, %v1636
  %v1638 = vpop.f32.mrf.mxu0
  %1639 = vmatprep.mubr.f32.mxu0 0.0
  %1640 = vmatmul.mubr.f32.gmra.mxu0 %v1543
  %v1641 = vpop.f32.mrf.mxu0
  %v1642 = vadd.f32 %v1529, %v1641
  %v1643 = vpop.f32.mrf.mxu0
  %1644 = vmatprep.mubr.f32.mxu0 0.0
  %1645 = vmatmul.mubr.f32.gmra.mxu0 %v1544
  %v1646 = vpop.f32.mrf.mxu0
  %v1647 = vadd.f32 %v1534, %v1646
  %v1648 = vpop.f32.mrf.mxu0
  %1649 = vdwg.mxu0
  %v1650 = vld [vmem:[%s7] sm:$0x1]
  %v1652 = vlaneseq
  %v1653 = vshrl.u32 %v1652, 7
  %v1654 = vsub.s32 0, %v1653
  %v1655 = vrot.slane %v1650, %v1654
  %v1657 = vadd.f32 %v1612, %v1655
  %v1658 = vadd.f32 %v1617, %v1655
  %v1659 = vadd.f32 %v1622, %v1655
  %v1660 = vadd.f32 %v1627, %v1655
  %v1661 = vadd.f32 %v1632, %v1655
  %v1662 = vadd.f32 %v1637, %v1655
  %v1663 = vadd.f32 %v1642, %v1655
  %v1664 = vadd.f32 %v1647, %v1655
  %1665 = vmatprep.subr.mxu0 %v1317
  %1666 = vmatpush1.msra.mxu0 %v1316
  %1667 = vmatprep.subr.mxu0 %v1314
  %1668 = vmatpush1.msra.mxu0 %v1313
  %1669 = vmatprep.subr.mxu0 %v1311
  %1670 = vmatpush1.msra.mxu0 %v1310
  %1671 = vmatprep.subr.mxu0 %v1308
  %1672 = vmatpush1.msra.mxu0 %v1307
  %1673 = vmatprep.subr.mxu0 %v1305
  %1674 = vmatpush1.msra.mxu0 %v1304
  %1675 = vmatprep.subr.mxu0 %v1302
  %1676 = vmatpush1.msra.mxu0 %v1301
  %1677 = vmatprep.subr.mxu0 %v1299
  %1678 = vmatpush1.msra.mxu0 %v1298
  %1679 = vmatprep.subr.mxu0 %v1296
  %1680 = vmatpush1.msra.mxu0 %v1295
  %1681 = vmatprep.subr.mxu0 %v1293
  %1682 = vmatpush1.msra.mxu0 %v1292
  %1683 = vmatprep.subr.mxu0 %v1290
  %1684 = vmatpush1.msra.mxu0 %v1289
  %1685 = vmatprep.subr.mxu0 %v1287
  %1686 = vmatpush1.msra.mxu0 %v1286
  %1687 = vmatprep.subr.mxu0 %v1284
  %1688 = vmatpush1.msra.mxu0 %v1283
  %1689 = vmatprep.subr.mxu0 %v1281
  %1690 = vmatpush1.msra.mxu0 %v1280
  %1691 = vmatprep.subr.mxu0 %v1278
  %1692 = vmatpush1.msra.mxu0 %v1277
  %1693 = vmatprep.subr.mxu0 %v1275
  %1694 = vmatpush1.msra.mxu0 %v1274
  %1695 = vmatprep.subr.mxu0 %v1272
  %1696 = vmatpush1.msra.mxu0 %v1271
  %1697 = vmatprep.subr.mxu0 0.0
  %1698 = vmatpush2.msra.mxu0 0.0
  %1699 = vmatprep.subr.mxu0 0.0
  %1700 = vmatpush2.msra.mxu0 0.0
  %1701 = vmatprep.subr.mxu0 0.0
  %1702 = vmatpush2.msra.mxu0 0.0
  %1703 = vmatprep.subr.mxu0 0.0
  %1704 = vmatpush2.msra.mxu0 0.0
  %1705 = vmatprep.subr.mxu0 0.0
  %1706 = vmatpush2.msra.mxu0 0.0
  %1707 = vmatprep.subr.mxu0 0.0
  %1708 = vmatpush2.msra.mxu0 0.0
  %1709 = vmatprep.subr.mxu0 0.0
  %1710 = vmatpush2.msra.mxu0 0.0
  %1711 = vmatprep.subr.mxu0 0.0
  %1712 = vmatpush2.msra.mxu0 0.0
  %1713 = vmatprep.subr.mxu0 0.0
  %1714 = vmatpush2.msra.mxu0 0.0
  %1715 = vmatprep.subr.mxu0 0.0
  %1716 = vmatpush2.msra.mxu0 0.0
  %1717 = vmatprep.subr.mxu0 0.0
  %1718 = vmatpush2.msra.mxu0 0.0
  %1719 = vmatprep.subr.mxu0 0.0
  %1720 = vmatpush2.msra.mxu0 0.0
  %1721 = vmatprep.subr.mxu0 0.0
  %1722 = vmatpush2.msra.mxu0 0.0
  %1723 = vmatprep.subr.mxu0 0.0
  %1724 = vmatpush2.msra.mxu0 0.0
  %1725 = vmatprep.subr.mxu0 0.0
  %1726 = vmatpush2.msra.mxu0 0.0
  %1727 = vmatprep.subr.mxu0 0.0
  %1728 = vmatpush2.msra.mxu0 0.0
  %1729 = vmatprep.mubr.f32.mxu0 0.0
  %1730 = vmatmul.mubr.f32.gmra.mxu0 %v1657
  %v1731 = vpop.f32.mrf.mxu0
  %v1732 = vadd.f32 0.0, %v1731
  %v1733 = vpop.f32.mrf.mxu0
  %v1734 = vadd.f32 0.0, %v1733
  %1735 = vmatprep.mubr.f32.mxu0 0.0
  %1736 = vmatmul.mubr.f32.gmra.mxu0 %v1658
  %v1737 = vpop.f32.mrf.mxu0
  %v1738 = vadd.f32 0.0, %v1737
  %v1739 = vpop.f32.mrf.mxu0
  %v1740 = vadd.f32 0.0, %v1739
  %1741 = vmatprep.mubr.f32.mxu0 0.0
  %1742 = vmatmul.mubr.f32.gmra.mxu0 %v1659
  %v1743 = vpop.f32.mrf.mxu0
  %v1744 = vadd.f32 0.0, %v1743
  %v1745 = vpop.f32.mrf.mxu0
  %v1746 = vadd.f32 0.0, %v1745
  %1747 = vmatprep.mubr.f32.mxu0 0.0
  %1748 = vmatmul.mubr.f32.gmra.mxu0 %v1660
  %v1749 = vpop.f32.mrf.mxu0
  %v1750 = vadd.f32 0.0, %v1749
  %v1751 = vpop.f32.mrf.mxu0
  %v1752 = vadd.f32 0.0, %v1751
  %1753 = vmatprep.mubr.f32.mxu0 0.0
  %1754 = vmatmul.mubr.f32.gmra.mxu0 %v1661
  %v1755 = vpop.f32.mrf.mxu0
  %v1756 = vadd.f32 0.0, %v1755
  %v1757 = vpop.f32.mrf.mxu0
  %v1758 = vadd.f32 0.0, %v1757
  %1759 = vmatprep.mubr.f32.mxu0 0.0
  %1760 = vmatmul.mubr.f32.gmra.mxu0 %v1662
  %v1761 = vpop.f32.mrf.mxu0
  %v1762 = vadd.f32 0.0, %v1761
  %v1763 = vpop.f32.mrf.mxu0
  %v1764 = vadd.f32 0.0, %v1763
  %1765 = vmatprep.mubr.f32.mxu0 0.0
  %1766 = vmatmul.mubr.f32.gmra.mxu0 %v1663
  %v1767 = vpop.f32.mrf.mxu0
  %v1768 = vadd.f32 0.0, %v1767
  %v1769 = vpop.f32.mrf.mxu0
  %v1770 = vadd.f32 0.0, %v1769
  %1771 = vmatprep.mubr.f32.mxu0 0.0
  %1772 = vmatmul.mubr.f32.gmra.mxu0 %v1664
  %v1773 = vpop.f32.mrf.mxu0
  %v1774 = vadd.f32 0.0, %v1773
  %v1775 = vpop.f32.mrf.mxu0
  %v1776 = vadd.f32 0.0, %v1775
  %1777 = vdwg.mxu0
  %1778 = vmatprep.subr.mxu0 0.0
  %1779 = vmatpush1.msra.mxu0 %v1318
  %1780 = vmatprep.subr.mxu0 0.0
  %1781 = vmatpush1.msra.mxu0 %v1315
  %1782 = vmatprep.subr.mxu0 0.0
  %1783 = vmatpush1.msra.mxu0 %v1312
  %1784 = vmatprep.subr.mxu0 0.0
  %1785 = vmatpush1.msra.mxu0 %v1309
  %1786 = vmatprep.subr.mxu0 0.0
  %1787 = vmatpush1.msra.mxu0 %v1306
  %1788 = vmatprep.subr.mxu0 0.0
  %1789 = vmatpush1.msra.mxu0 %v1303
  %1790 = vmatprep.subr.mxu0 0.0
  %1791 = vmatpush1.msra.mxu0 %v1300
  %1792 = vmatprep.subr.mxu0 0.0
  %1793 = vmatpush1.msra.mxu0 %v1297
  %1794 = vmatprep.subr.mxu0 0.0
  %1795 = vmatpush1.msra.mxu0 %v1294
  %1796 = vmatprep.subr.mxu0 0.0
  %1797 = vmatpush1.msra.mxu0 %v1291
  %1798 = vmatprep.subr.mxu0 0.0
  %1799 = vmatpush1.msra.mxu0 %v1288
  %1800 = vmatprep.subr.mxu0 0.0
  %1801 = vmatpush1.msra.mxu0 %v1285
  %1802 = vmatprep.subr.mxu0 0.0
  %1803 = vmatpush1.msra.mxu0 %v1282
  %1804 = vmatprep.subr.mxu0 0.0
  %1805 = vmatpush1.msra.mxu0 %v1279
  %1806 = vmatprep.subr.mxu0 0.0
  %1807 = vmatpush1.msra.mxu0 %v1276
  %1808 = vmatprep.subr.mxu0 0.0
  %1809 = vmatpush1.msra.mxu0 %v1273
  %1810 = vmatprep.subr.mxu0 0.0
  %1811 = vmatpush2.msra.mxu0 0.0
  %1812 = vmatprep.subr.mxu0 0.0
  %1813 = vmatpush2.msra.mxu0 0.0
  %1814 = vmatprep.subr.mxu0 0.0
  %1815 = vmatpush2.msra.mxu0 0.0
  %1816 = vmatprep.subr.mxu0 0.0
  %1817 = vmatpush2.msra.mxu0 0.0
  %1818 = vmatprep.subr.mxu0 0.0
  %1819 = vmatpush2.msra.mxu0 0.0
  %1820 = vmatprep.subr.mxu0 0.0
  %1821 = vmatpush2.msra.mxu0 0.0
  %1822 = vmatprep.subr.mxu0 0.0
  %1823 = vmatpush2.msra.mxu0 0.0
  %1824 = vmatprep.subr.mxu0 0.0
  %1825 = vmatpush2.msra.mxu0 0.0
  %1826 = vmatprep.subr.mxu0 0.0
  %1827 = vmatpush2.msra.mxu0 0.0
  %1828 = vmatprep.subr.mxu0 0.0
  %1829 = vmatpush2.msra.mxu0 0.0
  %1830 = vmatprep.subr.mxu0 0.0
  %1831 = vmatpush2.msra.mxu0 0.0
  %1832 = vmatprep.subr.mxu0 0.0
  %1833 = vmatpush2.msra.mxu0 0.0
  %1834 = vmatprep.subr.mxu0 0.0
  %1835 = vmatpush2.msra.mxu0 0.0
  %1836 = vmatprep.subr.mxu0 0.0
  %1837 = vmatpush2.msra.mxu0 0.0
  %1838 = vmatprep.subr.mxu0 0.0
  %1839 = vmatpush2.msra.mxu0 0.0
  %1840 = vmatprep.subr.mxu0 0.0
  %1841 = vmatpush2.msra.mxu0 0.0
  %1842 = vmatprep.mubr.f32.mxu0 0.0
  %1843 = vmatmul.mubr.f32.gmra.mxu0 %v1657
  %v1844 = vpop.f32.mrf.mxu0
  %v1845 = vadd.f32 0.0, %v1844
  %v1846 = vpop.f32.mrf.mxu0
  %1847 = vmatprep.mubr.f32.mxu0 0.0
  %1848 = vmatmul.mubr.f32.gmra.mxu0 %v1658
  %v1849 = vpop.f32.mrf.mxu0
  %v1850 = vadd.f32 0.0, %v1849
  %v1851 = vpop.f32.mrf.mxu0
  %1852 = vmatprep.mubr.f32.mxu0 0.0
  %1853 = vmatmul.mubr.f32.gmra.mxu0 %v1659
  %v1854 = vpop.f32.mrf.mxu0
  %v1855 = vadd.f32 0.0, %v1854
  %v1856 = vpop.f32.mrf.mxu0
  %1857 = vmatprep.mubr.f32.mxu0 0.0
  %1858 = vmatmul.mubr.f32.gmra.mxu0 %v1660
  %v1859 = vpop.f32.mrf.mxu0
  %v1860 = vadd.f32 0.0, %v1859
  %v1861 = vpop.f32.mrf.mxu0
  %1862 = vmatprep.mubr.f32.mxu0 0.0
  %1863 = vmatmul.mubr.f32.gmra.mxu0 %v1661
  %v1864 = vpop.f32.mrf.mxu0
  %v1865 = vadd.f32 0.0, %v1864
  %v1866 = vpop.f32.mrf.mxu0
  %1867 = vmatprep.mubr.f32.mxu0 0.0
  %1868 = vmatmul.mubr.f32.gmra.mxu0 %v1662
  %v1869 = vpop.f32.mrf.mxu0
  %v1870 = vadd.f32 0.0, %v1869
  %v1871 = vpop.f32.mrf.mxu0
  %1872 = vmatprep.mubr.f32.mxu0 0.0
  %1873 = vmatmul.mubr.f32.gmra.mxu0 %v1663
  %v1874 = vpop.f32.mrf.mxu0
  %v1875 = vadd.f32 0.0, %v1874
  %v1876 = vpop.f32.mrf.mxu0
  %1877 = vmatprep.mubr.f32.mxu0 0.0
  %1878 = vmatmul.mubr.f32.gmra.mxu0 %v1664
  %v1879 = vpop.f32.mrf.mxu0
  %v1880 = vadd.f32 0.0, %v1879
  %v1881 = vpop.f32.mrf.mxu0
  %1882 = vdwg.mxu0
  %1883 = vmatprep.subr.mxu0 0.0
  %1884 = vmatpush1.msra.mxu0 %v1776
  %1885 = vmatprep.subr.mxu0 0.0
  %1886 = vmatpush1.msra.mxu0 %v1770
  %1887 = vmatprep.subr.mxu0 0.0
  %1888 = vmatpush1.msra.mxu0 %v1764
  %1889 = vmatprep.subr.mxu0 0.0
  %1890 = vmatpush1.msra.mxu0 %v1758
  %1891 = vmatprep.subr.mxu0 0.0
  %1892 = vmatpush1.msra.mxu0 %v1752
  %1893 = vmatprep.subr.mxu0 0.0
  %1894 = vmatpush1.msra.mxu0 %v1746
  %1895 = vmatprep.subr.mxu0 0.0
  %1896 = vmatpush1.msra.mxu0 %v1740
  %1897 = vmatprep.subr.mxu0 0.0
  %1898 = vmatpush1.msra.mxu0 %v1734
  %1899 = vmatprep.subr.mxu0 0.0
  %1900 = vmatpush1.msra.mxu0 %v1774
  %1901 = vmatprep.subr.mxu0 0.0
  %1902 = vmatpush1.msra.mxu0 %v1768
  %1903 = vmatprep.subr.mxu0 0.0
  %1904 = vmatpush1.msra.mxu0 %v1762
  %1905 = vmatprep.subr.mxu0 0.0
  %1906 = vmatpush1.msra.mxu0 %v1756
  %1907 = vmatprep.subr.mxu0 0.0
  %1908 = vmatpush1.msra.mxu0 %v1750
  %1909 = vmatprep.subr.mxu0 0.0
  %1910 = vmatpush1.msra.mxu0 %v1744
  %1911 = vmatprep.subr.mxu0 0.0
  %1912 = vmatpush1.msra.mxu0 %v1738
  %1913 = vmatprep.subr.mxu0 0.0
  %1914 = vmatpush1.msra.mxu0 %v1732
  %1915 = vmatprep.subr.mxu0 0.0
  %1916 = vmatpush2.msra.mxu0 0.0
  %1917 = vmatprep.subr.mxu0 0.0
  %1918 = vmatpush2.msra.mxu0 0.0
  %1919 = vmatprep.subr.mxu0 0.0
  %1920 = vmatpush2.msra.mxu0 0.0
  %1921 = vmatprep.subr.mxu0 0.0
  %1922 = vmatpush2.msra.mxu0 0.0
  %1923 = vmatprep.subr.mxu0 0.0
  %1924 = vmatpush2.msra.mxu0 0.0
  %1925 = vmatprep.subr.mxu0 0.0
  %1926 = vmatpush2.msra.mxu0 0.0
  %1927 = vmatprep.subr.mxu0 0.0
  %1928 = vmatpush2.msra.mxu0 0.0
  %1929 = vmatprep.subr.mxu0 0.0
  %1930 = vmatpush2.msra.mxu0 0.0
  %1931 = vmatprep.subr.mxu0 0.0
  %1932 = vmatpush2.msra.mxu0 0.0
  %1933 = vmatprep.subr.mxu0 0.0
  %1934 = vmatpush2.msra.mxu0 0.0
  %1935 = vmatprep.subr.mxu0 0.0
  %1936 = vmatpush2.msra.mxu0 0.0
  %1937 = vmatprep.subr.mxu0 0.0
  %1938 = vmatpush2.msra.mxu0 0.0
  %1939 = vmatprep.subr.mxu0 0.0
  %1940 = vmatpush2.msra.mxu0 0.0
  %1941 = vmatprep.subr.mxu0 0.0
  %1942 = vmatpush2.msra.mxu0 0.0
  %1943 = vmatprep.subr.mxu0 0.0
  %1944 = vmatpush2.msra.mxu0 0.0
  %1945 = vmatprep.subr.mxu0 0.0
  %1946 = vmatpush2.msra.mxu0 0.0
  %1947 = vmatprep.mubr.f32.mxu0 0.0
  %1948 = vmatmul.mubr.f32.gmra.mxu0 %v1537
  %v1949 = vpop.f32.mrf.mxu0
  %v1950 = vadd.f32 %v1845, %v1949
  %v1951 = vpop.f32.mrf.mxu0
  %1952 = vmatprep.mubr.f32.mxu0 0.0
  %1953 = vmatmul.mubr.f32.gmra.mxu0 %v1538
  %v1954 = vpop.f32.mrf.mxu0
  %v1955 = vadd.f32 %v1850, %v1954
  %v1956 = vpop.f32.mrf.mxu0
  %1957 = vmatprep.mubr.f32.mxu0 0.0
  %1958 = vmatmul.mubr.f32.gmra.mxu0 %v1539
  %v1959 = vpop.f32.mrf.mxu0
  %v1960 = vadd.f32 %v1855, %v1959
  %v1961 = vpop.f32.mrf.mxu0
  %1962 = vmatprep.mubr.f32.mxu0 0.0
  %1963 = vmatmul.mubr.f32.gmra.mxu0 %v1540
  %v1964 = vpop.f32.mrf.mxu0
  %v1965 = vadd.f32 %v1860, %v1964
  %v1966 = vpop.f32.mrf.mxu0
  %1967 = vmatprep.mubr.f32.mxu0 0.0
  %1968 = vmatmul.mubr.f32.gmra.mxu0 %v1541
  %v1969 = vpop.f32.mrf.mxu0
  %v1970 = vadd.f32 %v1865, %v1969
  %v1971 = vpop.f32.mrf.mxu0
  %1972 = vmatprep.mubr.f32.mxu0 0.0
  %1973 = vmatmul.mubr.f32.gmra.mxu0 %v1542
  %v1974 = vpop.f32.mrf.mxu0
  %v1975 = vadd.f32 %v1870, %v1974
  %v1976 = vpop.f32.mrf.mxu0
  %1977 = vmatprep.mubr.f32.mxu0 0.0
  %1978 = vmatmul.mubr.f32.gmra.mxu0 %v1543
  %v1979 = vpop.f32.mrf.mxu0
  %v1980 = vadd.f32 %v1875, %v1979
  %v1981 = vpop.f32.mrf.mxu0
  %1982 = vmatprep.mubr.f32.mxu0 0.0
  %1983 = vmatmul.mubr.f32.gmra.mxu0 %v1544
  %v1984 = vpop.f32.mrf.mxu0
  %v1985 = vadd.f32 %v1880, %v1984
  %v1986 = vpop.f32.mrf.mxu0
  %1987 = vdwg.mxu0
  %v1988 = vadd.f32 %v1950, %v1655
  %v1989 = vadd.f32 %v1955, %v1655
  %v1990 = vadd.f32 %v1960, %v1655
  %v1991 = vadd.f32 %v1965, %v1655
  %v1992 = vadd.f32 %v1970, %v1655
  %v1993 = vadd.f32 %v1975, %v1655
  %v1994 = vadd.f32 %v1980, %v1655
  %v1995 = vadd.f32 %v1985, %v1655
  %1996 = vmatprep.subr.mxu0 %v1317
  %1997 = vmatpush1.msra.mxu0 %v1316
  %1998 = vmatprep.subr.mxu0 %v1314
  %1999 = vmatpush1.msra.mxu0 %v1313
  %2000 = vmatprep.subr.mxu0 %v1311
  %2001 = vmatpush1.msra.mxu0 %v1310
  %2002 = vmatprep.subr.mxu0 %v1308
  %2003 = vmatpush1.msra.mxu0 %v1307
  %2004 = vmatprep.subr.mxu0 %v1305
  %2005 = vmatpush1.msra.mxu0 %v1304
  %2006 = vmatprep.subr.mxu0 %v1302
  %2007 = vmatpush1.msra.mxu0 %v1301
  %2008 = vmatprep.subr.mxu0 %v1299
  %2009 = vmatpush1.msra.mxu0 %v1298
  %2010 = vmatprep.subr.mxu0 %v1296
  %2011 = vmatpush1.msra.mxu0 %v1295
  %2012 = vmatprep.subr.mxu0 %v1293
  %2013 = vmatpush1.msra.mxu0 %v1292
  %2014 = vmatprep.subr.mxu0 %v1290
  %2015 = vmatpush1.msra.mxu0 %v1289
  %2016 = vmatprep.subr.mxu0 %v1287
  %2017 = vmatpush1.msra.mxu0 %v1286
  %2018 = vmatprep.subr.mxu0 %v1284
  %2019 = vmatpush1.msra.mxu0 %v1283
  %2020 = vmatprep.subr.mxu0 %v1281
  %2021 = vmatpush1.msra.mxu0 %v1280
  %2022 = vmatprep.subr.mxu0 %v1278
  %2023 = vmatpush1.msra.mxu0 %v1277
  %2024 = vmatprep.subr.mxu0 %v1275
  %2025 = vmatpush1.msra.mxu0 %v1274
  %2026 = vmatprep.subr.mxu0 %v1272
  %2027 = vmatpush1.msra.mxu0 %v1271
  %2028 = vmatprep.subr.mxu0 0.0
  %2029 = vmatpush2.msra.mxu0 0.0
  %2030 = vmatprep.subr.mxu0 0.0
  %2031 = vmatpush2.msra.mxu0 0.0
  %2032 = vmatprep.subr.mxu0 0.0
  %2033 = vmatpush2.msra.mxu0 0.0
  %2034 = vmatprep.subr.mxu0 0.0
  %2035 = vmatpush2.msra.mxu0 0.0
  %2036 = vmatprep.subr.mxu0 0.0
  %2037 = vmatpush2.msra.mxu0 0.0
  %2038 = vmatprep.subr.mxu0 0.0
  %2039 = vmatpush2.msra.mxu0 0.0
  %2040 = vmatprep.subr.mxu0 0.0
  %2041 = vmatpush2.msra.mxu0 0.0
  %2042 = vmatprep.subr.mxu0 0.0
  %2043 = vmatpush2.msra.mxu0 0.0
  %2044 = vmatprep.subr.mxu0 0.0
  %2045 = vmatpush2.msra.mxu0 0.0
  %2046 = vmatprep.subr.mxu0 0.0
  %2047 = vmatpush2.msra.mxu0 0.0
  %2048 = vmatprep.subr.mxu0 0.0
  %2049 = vmatpush2.msra.mxu0 0.0
  %2050 = vmatprep.subr.mxu0 0.0
  %2051 = vmatpush2.msra.mxu0 0.0
  %2052 = vmatprep.subr.mxu0 0.0
  %2053 = vmatpush2.msra.mxu0 0.0
  %2054 = vmatprep.subr.mxu0 0.0
  %2055 = vmatpush2.msra.mxu0 0.0
  %2056 = vmatprep.subr.mxu0 0.0
  %2057 = vmatpush2.msra.mxu0 0.0
  %2058 = vmatprep.subr.mxu0 0.0
  %2059 = vmatpush2.msra.mxu0 0.0
  %2060 = vmatprep.mubr.f32.mxu0 0.0
  %2061 = vmatmul.mubr.f32.gmra.mxu0 %v1988
  %v2062 = vpop.f32.mrf.mxu0
  %v2063 = vadd.f32 0.0, %v2062
  %v2064 = vpop.f32.mrf.mxu0
  %v2065 = vadd.f32 0.0, %v2064
  %2066 = vmatprep.mubr.f32.mxu0 0.0
  %2067 = vmatmul.mubr.f32.gmra.mxu0 %v1989
  %v2068 = vpop.f32.mrf.mxu0
  %v2069 = vadd.f32 0.0, %v2068
  %v2070 = vpop.f32.mrf.mxu0
  %v2071 = vadd.f32 0.0, %v2070
  %2072 = vmatprep.mubr.f32.mxu0 0.0
  %2073 = vmatmul.mubr.f32.gmra.mxu0 %v1990
  %v2074 = vpop.f32.mrf.mxu0
  %v2075 = vadd.f32 0.0, %v2074
  %v2076 = vpop.f32.mrf.mxu0
  %v2077 = vadd.f32 0.0, %v2076
  %2078 = vmatprep.mubr.f32.mxu0 0.0
  %2079 = vmatmul.mubr.f32.gmra.mxu0 %v1991
  %v2080 = vpop.f32.mrf.mxu0
  %v2081 = vadd.f32 0.0, %v2080
  %v2082 = vpop.f32.mrf.mxu0
  %v2083 = vadd.f32 0.0, %v2082
  %2084 = vmatprep.mubr.f32.mxu0 0.0
  %2085 = vmatmul.mubr.f32.gmra.mxu0 %v1992
  %v2086 = vpop.f32.mrf.mxu0
  %v2087 = vadd.f32 0.0, %v2086
  %v2088 = vpop.f32.mrf.mxu0
  %v2089 = vadd.f32 0.0, %v2088
  %2090 = vmatprep.mubr.f32.mxu0 0.0
  %2091 = vmatmul.mubr.f32.gmra.mxu0 %v1993
  %v2092 = vpop.f32.mrf.mxu0
  %v2093 = vadd.f32 0.0, %v2092
  %v2094 = vpop.f32.mrf.mxu0
  %v2095 = vadd.f32 0.0, %v2094
  %2096 = vmatprep.mubr.f32.mxu0 0.0
  %2097 = vmatmul.mubr.f32.gmra.mxu0 %v1994
  %v2098 = vpop.f32.mrf.mxu0
  %v2099 = vadd.f32 0.0, %v2098
  %v2100 = vpop.f32.mrf.mxu0
  %v2101 = vadd.f32 0.0, %v2100
  %2102 = vmatprep.mubr.f32.mxu0 0.0
  %2103 = vmatmul.mubr.f32.gmra.mxu0 %v1995
  %v2104 = vpop.f32.mrf.mxu0
  %v2105 = vadd.f32 0.0, %v2104
  %v2106 = vpop.f32.mrf.mxu0
  %v2107 = vadd.f32 0.0, %v2106
  %2108 = vdwg.mxu0
  %2109 = vmatprep.subr.mxu0 0.0
  %2110 = vmatpush1.msra.mxu0 %v1318
  %2111 = vmatprep.subr.mxu0 0.0
  %2112 = vmatpush1.msra.mxu0 %v1315
  %2113 = vmatprep.subr.mxu0 0.0
  %2114 = vmatpush1.msra.mxu0 %v1312
  %2115 = vmatprep.subr.mxu0 0.0
  %2116 = vmatpush1.msra.mxu0 %v1309
  %2117 = vmatprep.subr.mxu0 0.0
  %2118 = vmatpush1.msra.mxu0 %v1306
  %2119 = vmatprep.subr.mxu0 0.0
  %2120 = vmatpush1.msra.mxu0 %v1303
  %2121 = vmatprep.subr.mxu0 0.0
  %2122 = vmatpush1.msra.mxu0 %v1300
  %2123 = vmatprep.subr.mxu0 0.0
  %2124 = vmatpush1.msra.mxu0 %v1297
  %2125 = vmatprep.subr.mxu0 0.0
  %2126 = vmatpush1.msra.mxu0 %v1294
  %2127 = vmatprep.subr.mxu0 0.0
  %2128 = vmatpush1.msra.mxu0 %v1291
  %2129 = vmatprep.subr.mxu0 0.0
  %2130 = vmatpush1.msra.mxu0 %v1288
  %2131 = vmatprep.subr.mxu0 0.0
  %2132 = vmatpush1.msra.mxu0 %v1285
  %2133 = vmatprep.subr.mxu0 0.0
  %2134 = vmatpush1.msra.mxu0 %v1282
  %2135 = vmatprep.subr.mxu0 0.0
  %2136 = vmatpush1.msra.mxu0 %v1279
  %2137 = vmatprep.subr.mxu0 0.0
  %2138 = vmatpush1.msra.mxu0 %v1276
  %2139 = vmatprep.subr.mxu0 0.0
  %2140 = vmatpush1.msra.mxu0 %v1273
  %2141 = vmatprep.subr.mxu0 0.0
  %2142 = vmatpush2.msra.mxu0 0.0
  %2143 = vmatprep.subr.mxu0 0.0
  %2144 = vmatpush2.msra.mxu0 0.0
  %2145 = vmatprep.subr.mxu0 0.0
  %2146 = vmatpush2.msra.mxu0 0.0
  %2147 = vmatprep.subr.mxu0 0.0
  %2148 = vmatpush2.msra.mxu0 0.0
  %2149 = vmatprep.subr.mxu0 0.0
  %2150 = vmatpush2.msra.mxu0 0.0
  %2151 = vmatprep.subr.mxu0 0.0
  %2152 = vmatpush2.msra.mxu0 0.0
  %2153 = vmatprep.subr.mxu0 0.0
  %2154 = vmatpush2.msra.mxu0 0.0
  %2155 = vmatprep.subr.mxu0 0.0
  %2156 = vmatpush2.msra.mxu0 0.0
  %2157 = vmatprep.subr.mxu0 0.0
  %2158 = vmatpush2.msra.mxu0 0.0
  %2159 = vmatprep.subr.mxu0 0.0
  %2160 = vmatpush2.msra.mxu0 0.0
  %2161 = vmatprep.subr.mxu0 0.0
  %2162 = vmatpush2.msra.mxu0 0.0
  %2163 = vmatprep.subr.mxu0 0.0
  %2164 = vmatpush2.msra.mxu0 0.0
  %2165 = vmatprep.subr.mxu0 0.0
  %2166 = vmatpush2.msra.mxu0 0.0
  %2167 = vmatprep.subr.mxu0 0.0
  %2168 = vmatpush2.msra.mxu0 0.0
  %2169 = vmatprep.subr.mxu0 0.0
  %2170 = vmatpush2.msra.mxu0 0.0
  %2171 = vmatprep.subr.mxu0 0.0
  %2172 = vmatpush2.msra.mxu0 0.0
  %2173 = vmatprep.mubr.f32.mxu0 0.0
  %2174 = vmatmul.mubr.f32.gmra.mxu0 %v1988
  %v2175 = vpop.f32.mrf.mxu0
  %v2176 = vadd.f32 0.0, %v2175
  %v2177 = vpop.f32.mrf.mxu0
  %2178 = vmatprep.mubr.f32.mxu0 0.0
  %2179 = vmatmul.mubr.f32.gmra.mxu0 %v1989
  %v2180 = vpop.f32.mrf.mxu0
  %v2181 = vadd.f32 0.0, %v2180
  %v2182 = vpop.f32.mrf.mxu0
  %2183 = vmatprep.mubr.f32.mxu0 0.0
  %2184 = vmatmul.mubr.f32.gmra.mxu0 %v1990
  %v2185 = vpop.f32.mrf.mxu0
  %v2186 = vadd.f32 0.0, %v2185
  %v2187 = vpop.f32.mrf.mxu0
  %2188 = vmatprep.mubr.f32.mxu0 0.0
  %2189 = vmatmul.mubr.f32.gmra.mxu0 %v1991
  %v2190 = vpop.f32.mrf.mxu0
  %v2191 = vadd.f32 0.0, %v2190
  %v2192 = vpop.f32.mrf.mxu0
  %2193 = vmatprep.mubr.f32.mxu0 0.0
  %2194 = vmatmul.mubr.f32.gmra.mxu0 %v1992
  %v2195 = vpop.f32.mrf.mxu0
  %v2196 = vadd.f32 0.0, %v2195
  %v2197 = vpop.f32.mrf.mxu0
  %2198 = vmatprep.mubr.f32.mxu0 0.0
  %2199 = vmatmul.mubr.f32.gmra.mxu0 %v1993
  %v2200 = vpop.f32.mrf.mxu0
  %v2201 = vadd.f32 0.0, %v2200
  %v2202 = vpop.f32.mrf.mxu0
  %2203 = vmatprep.mubr.f32.mxu0 0.0
  %2204 = vmatmul.mubr.f32.gmra.mxu0 %v1994
  %v2205 = vpop.f32.mrf.mxu0
  %v2206 = vadd.f32 0.0, %v2205
  %v2207 = vpop.f32.mrf.mxu0
  %2208 = vmatprep.mubr.f32.mxu0 0.0
  %2209 = vmatmul.mubr.f32.gmra.mxu0 %v1995
  %v2210 = vpop.f32.mrf.mxu0
  %v2211 = vadd.f32 0.0, %v2210
  %v2212 = vpop.f32.mrf.mxu0
  %2213 = vdwg.mxu0
  %2214 = vmatprep.subr.mxu0 0.0
  %2215 = vmatpush1.msra.mxu0 %v2107
  %2216 = vmatprep.subr.mxu0 0.0
  %2217 = vmatpush1.msra.mxu0 %v2101
  %2218 = vmatprep.subr.mxu0 0.0
  %2219 = vmatpush1.msra.mxu0 %v2095
  %2220 = vmatprep.subr.mxu0 0.0
  %2221 = vmatpush1.msra.mxu0 %v2089
  %2222 = vmatprep.subr.mxu0 0.0
  %2223 = vmatpush1.msra.mxu0 %v2083
  %2224 = vmatprep.subr.mxu0 0.0
  %2225 = vmatpush1.msra.mxu0 %v2077
  %2226 = vmatprep.subr.mxu0 0.0
  %2227 = vmatpush1.msra.mxu0 %v2071
  %2228 = vmatprep.subr.mxu0 0.0
  %2229 = vmatpush1.msra.mxu0 %v2065
  %2230 = vmatprep.subr.mxu0 0.0
  %2231 = vmatpush1.msra.mxu0 %v2105
  %2232 = vmatprep.subr.mxu0 0.0
  %2233 = vmatpush1.msra.mxu0 %v2099
  %2234 = vmatprep.subr.mxu0 0.0
  %2235 = vmatpush1.msra.mxu0 %v2093
  %2236 = vmatprep.subr.mxu0 0.0
  %2237 = vmatpush1.msra.mxu0 %v2087
  %2238 = vmatprep.subr.mxu0 0.0
  %2239 = vmatpush1.msra.mxu0 %v2081
  %2240 = vmatprep.subr.mxu0 0.0
  %2241 = vmatpush1.msra.mxu0 %v2075
  %2242 = vmatprep.subr.mxu0 0.0
  %2243 = vmatpush1.msra.mxu0 %v2069
  %2244 = vmatprep.subr.mxu0 0.0
  %2245 = vmatpush1.msra.mxu0 %v2063
  %2246 = vmatprep.subr.mxu0 0.0
  %2247 = vmatpush2.msra.mxu0 0.0
  %2248 = vmatprep.subr.mxu0 0.0
  %2249 = vmatpush2.msra.mxu0 0.0
  %2250 = vmatprep.subr.mxu0 0.0
  %2251 = vmatpush2.msra.mxu0 0.0
  %2252 = vmatprep.subr.mxu0 0.0
  %2253 = vmatpush2.msra.mxu0 0.0
  %2254 = vmatprep.subr.mxu0 0.0
  %2255 = vmatpush2.msra.mxu0 0.0
  %2256 = vmatprep.subr.mxu0 0.0
  %2257 = vmatpush2.msra.mxu0 0.0
  %2258 = vmatprep.subr.mxu0 0.0
  %2259 = vmatpush2.msra.mxu0 0.0
  %2260 = vmatprep.subr.mxu0 0.0
  %2261 = vmatpush2.msra.mxu0 0.0
  %2262 = vmatprep.subr.mxu0 0.0
  %2263 = vmatpush2.msra.mxu0 0.0
  %2264 = vmatprep.subr.mxu0 0.0
  %2265 = vmatpush2.msra.mxu0 0.0
  %2266 = vmatprep.subr.mxu0 0.0
  %2267 = vmatpush2.msra.mxu0 0.0
  %2268 = vmatprep.subr.mxu0 0.0
  %2269 = vmatpush2.msra.mxu0 0.0
  %2270 = vmatprep.subr.mxu0 0.0
  %2271 = vmatpush2.msra.mxu0 0.0
  %2272 = vmatprep.subr.mxu0 0.0
  %2273 = vmatpush2.msra.mxu0 0.0
  %2274 = vmatprep.subr.mxu0 0.0
  %2275 = vmatpush2.msra.mxu0 0.0
  %2276 = vmatprep.subr.mxu0 0.0
  %2277 = vmatpush2.msra.mxu0 0.0
  %2278 = vmatprep.mubr.f32.mxu0 0.0
  %2279 = vmatmul.mubr.f32.gmra.mxu0 %v1537
  %v2280 = vpop.f32.mrf.mxu0
  %v2281 = vadd.f32 %v2176, %v2280
  %v2282 = vpop.f32.mrf.mxu0
  %2283 = vmatprep.mubr.f32.mxu0 0.0
  %2284 = vmatmul.mubr.f32.gmra.mxu0 %v1538
  %v2285 = vpop.f32.mrf.mxu0
  %v2286 = vadd.f32 %v2181, %v2285
  %v2287 = vpop.f32.mrf.mxu0
  %2288 = vmatprep.mubr.f32.mxu0 0.0
  %2289 = vmatmul.mubr.f32.gmra.mxu0 %v1539
  %v2290 = vpop.f32.mrf.mxu0
  %v2291 = vadd.f32 %v2186, %v2290
  %v2292 = vpop.f32.mrf.mxu0
  %2293 = vmatprep.mubr.f32.mxu0 0.0
  %2294 = vmatmul.mubr.f32.gmra.mxu0 %v1540
  %v2295 = vpop.f32.mrf.mxu0
  %v2296 = vadd.f32 %v2191, %v2295
  %v2297 = vpop.f32.mrf.mxu0
  %2298 = vmatprep.mubr.f32.mxu0 0.0
  %2299 = vmatmul.mubr.f32.gmra.mxu0 %v1541
  %v2300 = vpop.f32.mrf.mxu0
  %v2301 = vadd.f32 %v2196, %v2300
  %v2302 = vpop.f32.mrf.mxu0
  %2303 = vmatprep.mubr.f32.mxu0 0.0
  %2304 = vmatmul.mubr.f32.gmra.mxu0 %v1542
  %v2305 = vpop.f32.mrf.mxu0
  %v2306 = vadd.f32 %v2201, %v2305
  %v2307 = vpop.f32.mrf.mxu0
  %2308 = vmatprep.mubr.f32.mxu0 0.0
  %2309 = vmatmul.mubr.f32.gmra.mxu0 %v1543
  %v2310 = vpop.f32.mrf.mxu0
  %v2311 = vadd.f32 %v2206, %v2310
  %v2312 = vpop.f32.mrf.mxu0
  %2313 = vmatprep.mubr.f32.mxu0 0.0
  %2314 = vmatmul.mubr.f32.gmra.mxu0 %v1544
  %v2315 = vpop.f32.mrf.mxu0
  %v2316 = vadd.f32 %v2211, %v2315
  %v2317 = vpop.f32.mrf.mxu0
  %2318 = vdwg.mxu0
  %v2319 = vadd.f32 %v2281, %v1655
  %v2320 = vadd.f32 %v2286, %v1655
  %v2321 = vadd.f32 %v2291, %v1655
  %v2322 = vadd.f32 %v2296, %v1655
  %v2323 = vadd.f32 %v2301, %v1655
  %v2324 = vadd.f32 %v2306, %v1655
  %v2325 = vadd.f32 %v2311, %v1655
  %v2326 = vadd.f32 %v2316, %v1655
  %2327 = vmatprep.subr.mxu0 %v1317
  %2328 = vmatpush1.msra.mxu0 %v1316
  %2329 = vmatprep.subr.mxu0 %v1314
  %2330 = vmatpush1.msra.mxu0 %v1313
  %2331 = vmatprep.subr.mxu0 %v1311
  %2332 = vmatpush1.msra.mxu0 %v1310
  %2333 = vmatprep.subr.mxu0 %v1308
  %2334 = vmatpush1.msra.mxu0 %v1307
  %2335 = vmatprep.subr.mxu0 %v1305
  %2336 = vmatpush1.msra.mxu0 %v1304
  %2337 = vmatprep.subr.mxu0 %v1302
  %2338 = vmatpush1.msra.mxu0 %v1301
  %2339 = vmatprep.subr.mxu0 %v1299
  %2340 = vmatpush1.msra.mxu0 %v1298
  %2341 = vmatprep.subr.mxu0 %v1296
  %2342 = vmatpush1.msra.mxu0 %v1295
  %2343 = vmatprep.subr.mxu0 %v1293
  %2344 = vmatpush1.msra.mxu0 %v1292
  %2345 = vmatprep.subr.mxu0 %v1290
  %2346 = vmatpush1.msra.mxu0 %v1289
  %2347 = vmatprep.subr.mxu0 %v1287
  %2348 = vmatpush1.msra.mxu0 %v1286
  %2349 = vmatprep.subr.mxu0 %v1284
  %2350 = vmatpush1.msra.mxu0 %v1283
  %2351 = vmatprep.subr.mxu0 %v1281
  %2352 = vmatpush1.msra.mxu0 %v1280
  %2353 = vmatprep.subr.mxu0 %v1278
  %2354 = vmatpush1.msra.mxu0 %v1277
  %2355 = vmatprep.subr.mxu0 %v1275
  %2356 = vmatpush1.msra.mxu0 %v1274
  %2357 = vmatprep.subr.mxu0 %v1272
  %2358 = vmatpush1.msra.mxu0 %v1271
  %2359 = vmatprep.subr.mxu0 0.0
  %2360 = vmatpush2.msra.mxu0 0.0
  %2361 = vmatprep.subr.mxu0 0.0
  %2362 = vmatpush2.msra.mxu0 0.0
  %2363 = vmatprep.subr.mxu0 0.0
  %2364 = vmatpush2.msra.mxu0 0.0
  %2365 = vmatprep.subr.mxu0 0.0
  %2366 = vmatpush2.msra.mxu0 0.0
  %2367 = vmatprep.subr.mxu0 0.0
  %2368 = vmatpush2.msra.mxu0 0.0
  %2369 = vmatprep.subr.mxu0 0.0
  %2370 = vmatpush2.msra.mxu0 0.0
  %2371 = vmatprep.subr.mxu0 0.0
  %2372 = vmatpush2.msra.mxu0 0.0
  %2373 = vmatprep.subr.mxu0 0.0
  %2374 = vmatpush2.msra.mxu0 0.0
  %2375 = vmatprep.subr.mxu0 0.0
  %2376 = vmatpush2.msra.mxu0 0.0
  %2377 = vmatprep.subr.mxu0 0.0
  %2378 = vmatpush2.msra.mxu0 0.0
  %2379 = vmatprep.subr.mxu0 0.0
  %2380 = vmatpush2.msra.mxu0 0.0
  %2381 = vmatprep.subr.mxu0 0.0
  %2382 = vmatpush2.msra.mxu0 0.0
  %2383 = vmatprep.subr.mxu0 0.0
  %2384 = vmatpush2.msra.mxu0 0.0
  %2385 = vmatprep.subr.mxu0 0.0
  %2386 = vmatpush2.msra.mxu0 0.0
  %2387 = vmatprep.subr.mxu0 0.0
  %2388 = vmatpush2.msra.mxu0 0.0
  %2389 = vmatprep.subr.mxu0 0.0
  %2390 = vmatpush2.msra.mxu0 0.0
  %2391 = vmatprep.mubr.f32.mxu0 0.0
  %2392 = vmatmul.mubr.f32.gmra.mxu0 %v2319
  %v2393 = vpop.f32.mrf.mxu0
  %v2394 = vadd.f32 0.0, %v2393
  %v2395 = vpop.f32.mrf.mxu0
  %v2396 = vadd.f32 0.0, %v2395
  %2397 = vmatprep.mubr.f32.mxu0 0.0
  %2398 = vmatmul.mubr.f32.gmra.mxu0 %v2320
  %v2399 = vpop.f32.mrf.mxu0
  %v2400 = vadd.f32 0.0, %v2399
  %v2401 = vpop.f32.mrf.mxu0
  %v2402 = vadd.f32 0.0, %v2401
  %2403 = vmatprep.mubr.f32.mxu0 0.0
  %2404 = vmatmul.mubr.f32.gmra.mxu0 %v2321
  %v2405 = vpop.f32.mrf.mxu0
  %v2406 = vadd.f32 0.0, %v2405
  %v2407 = vpop.f32.mrf.mxu0
  %v2408 = vadd.f32 0.0, %v2407
  %2409 = vmatprep.mubr.f32.mxu0 0.0
  %2410 = vmatmul.mubr.f32.gmra.mxu0 %v2322
  %v2411 = vpop.f32.mrf.mxu0
  %v2412 = vadd.f32 0.0, %v2411
  %v2413 = vpop.f32.mrf.mxu0
  %v2414 = vadd.f32 0.0, %v2413
  %2415 = vmatprep.mubr.f32.mxu0 0.0
  %2416 = vmatmul.mubr.f32.gmra.mxu0 %v2323
  %v2417 = vpop.f32.mrf.mxu0
  %v2418 = vadd.f32 0.0, %v2417
  %v2419 = vpop.f32.mrf.mxu0
  %v2420 = vadd.f32 0.0, %v2419
  %2421 = vmatprep.mubr.f32.mxu0 0.0
  %2422 = vmatmul.mubr.f32.gmra.mxu0 %v2324
  %v2423 = vpop.f32.mrf.mxu0
  %v2424 = vadd.f32 0.0, %v2423
  %v2425 = vpop.f32.mrf.mxu0
  %v2426 = vadd.f32 0.0, %v2425
  %2427 = vmatprep.mubr.f32.mxu0 0.0
  %2428 = vmatmul.mubr.f32.gmra.mxu0 %v2325
  %v2429 = vpop.f32.mrf.mxu0
  %v2430 = vadd.f32 0.0, %v2429
  %v2431 = vpop.f32.mrf.mxu0
  %v2432 = vadd.f32 0.0, %v2431
  %2433 = vmatprep.mubr.f32.mxu0 0.0
  %2434 = vmatmul.mubr.f32.gmra.mxu0 %v2326
  %v2435 = vpop.f32.mrf.mxu0
  %v2436 = vadd.f32 0.0, %v2435
  %v2437 = vpop.f32.mrf.mxu0
  %v2438 = vadd.f32 0.0, %v2437
  %2439 = vdwg.mxu0
  %2440 = vmatprep.subr.mxu0 0.0
  %2441 = vmatpush1.msra.mxu0 %v1318
  %2442 = vmatprep.subr.mxu0 0.0
  %2443 = vmatpush1.msra.mxu0 %v1315
  %2444 = vmatprep.subr.mxu0 0.0
  %2445 = vmatpush1.msra.mxu0 %v1312
  %2446 = vmatprep.subr.mxu0 0.0
  %2447 = vmatpush1.msra.mxu0 %v1309
  %2448 = vmatprep.subr.mxu0 0.0
  %2449 = vmatpush1.msra.mxu0 %v1306
  %2450 = vmatprep.subr.mxu0 0.0
  %2451 = vmatpush1.msra.mxu0 %v1303
  %2452 = vmatprep.subr.mxu0 0.0
  %2453 = vmatpush1.msra.mxu0 %v1300
  %2454 = vmatprep.subr.mxu0 0.0
  %2455 = vmatpush1.msra.mxu0 %v1297
  %2456 = vmatprep.subr.mxu0 0.0
  %2457 = vmatpush1.msra.mxu0 %v1294
  %2458 = vmatprep.subr.mxu0 0.0
  %2459 = vmatpush1.msra.mxu0 %v1291
  %2460 = vmatprep.subr.mxu0 0.0
  %2461 = vmatpush1.msra.mxu0 %v1288
  %2462 = vmatprep.subr.mxu0 0.0
  %2463 = vmatpush1.msra.mxu0 %v1285
  %2464 = vmatprep.subr.mxu0 0.0
  %2465 = vmatpush1.msra.mxu0 %v1282
  %2466 = vmatprep.subr.mxu0 0.0
  %2467 = vmatpush1.msra.mxu0 %v1279
  %2468 = vmatprep.subr.mxu0 0.0
  %2469 = vmatpush1.msra.mxu0 %v1276
  %2470 = vmatprep.subr.mxu0 0.0
  %2471 = vmatpush1.msra.mxu0 %v1273
  %2472 = vmatprep.subr.mxu0 0.0
  %2473 = vmatpush2.msra.mxu0 0.0
  %2474 = vmatprep.subr.mxu0 0.0
  %2475 = vmatpush2.msra.mxu0 0.0
  %2476 = vmatprep.subr.mxu0 0.0
  %2477 = vmatpush2.msra.mxu0 0.0
  %2478 = vmatprep.subr.mxu0 0.0
  %2479 = vmatpush2.msra.mxu0 0.0
  %2480 = vmatprep.subr.mxu0 0.0
  %2481 = vmatpush2.msra.mxu0 0.0
  %2482 = vmatprep.subr.mxu0 0.0
  %2483 = vmatpush2.msra.mxu0 0.0
  %2484 = vmatprep.subr.mxu0 0.0
  %2485 = vmatpush2.msra.mxu0 0.0
  %2486 = vmatprep.subr.mxu0 0.0
  %2487 = vmatpush2.msra.mxu0 0.0
  %2488 = vmatprep.subr.mxu0 0.0
  %2489 = vmatpush2.msra.mxu0 0.0
  %2490 = vmatprep.subr.mxu0 0.0
  %2491 = vmatpush2.msra.mxu0 0.0
  %2492 = vmatprep.subr.mxu0 0.0
  %2493 = vmatpush2.msra.mxu0 0.0
  %2494 = vmatprep.subr.mxu0 0.0
  %2495 = vmatpush2.msra.mxu0 0.0
  %2496 = vmatprep.subr.mxu0 0.0
  %2497 = vmatpush2.msra.mxu0 0.0
  %2498 = vmatprep.subr.mxu0 0.0
  %2499 = vmatpush2.msra.mxu0 0.0
  %2500 = vmatprep.subr.mxu0 0.0
  %2501 = vmatpush2.msra.mxu0 0.0
  %2502 = vmatprep.subr.mxu0 0.0
  %2503 = vmatpush2.msra.mxu0 0.0
  %2504 = vmatprep.mubr.f32.mxu0 0.0
  %2505 = vmatmul.mubr.f32.gmra.mxu0 %v2319
  %v2506 = vpop.f32.mrf.mxu0
  %v2507 = vadd.f32 0.0, %v2506
  %v2508 = vpop.f32.mrf.mxu0
  %2509 = vmatprep.mubr.f32.mxu0 0.0
  %2510 = vmatmul.mubr.f32.gmra.mxu0 %v2320
  %v2511 = vpop.f32.mrf.mxu0
  %v2512 = vadd.f32 0.0, %v2511
  %v2513 = vpop.f32.mrf.mxu0
  %2514 = vmatprep.mubr.f32.mxu0 0.0
  %2515 = vmatmul.mubr.f32.gmra.mxu0 %v2321
  %v2516 = vpop.f32.mrf.mxu0
  %v2517 = vadd.f32 0.0, %v2516
  %v2518 = vpop.f32.mrf.mxu0
  %2519 = vmatprep.mubr.f32.mxu0 0.0
  %2520 = vmatmul.mubr.f32.gmra.mxu0 %v2322
  %v2521 = vpop.f32.mrf.mxu0
  %v2522 = vadd.f32 0.0, %v2521
  %v2523 = vpop.f32.mrf.mxu0
  %2524 = vmatprep.mubr.f32.mxu0 0.0
  %2525 = vmatmul.mubr.f32.gmra.mxu0 %v2323
  %v2526 = vpop.f32.mrf.mxu0
  %v2527 = vadd.f32 0.0, %v2526
  %v2528 = vpop.f32.mrf.mxu0
  %2529 = vmatprep.mubr.f32.mxu0 0.0
  %2530 = vmatmul.mubr.f32.gmra.mxu0 %v2324
  %v2531 = vpop.f32.mrf.mxu0
  %v2532 = vadd.f32 0.0, %v2531
  %v2533 = vpop.f32.mrf.mxu0
  %2534 = vmatprep.mubr.f32.mxu0 0.0
  %2535 = vmatmul.mubr.f32.gmra.mxu0 %v2325
  %v2536 = vpop.f32.mrf.mxu0
  %v2537 = vadd.f32 0.0, %v2536
  %v2538 = vpop.f32.mrf.mxu0
  %2539 = vmatprep.mubr.f32.mxu0 0.0
  %2540 = vmatmul.mubr.f32.gmra.mxu0 %v2326
  %v2541 = vpop.f32.mrf.mxu0
  %v2542 = vadd.f32 0.0, %v2541
  %v2543 = vpop.f32.mrf.mxu0
  %2544 = vdwg.mxu0
  %2545 = vmatprep.subr.mxu0 0.0
  %2546 = vmatpush1.msra.mxu0 %v2438
  %2547 = vmatprep.subr.mxu0 0.0
  %2548 = vmatpush1.msra.mxu0 %v2432
  %2549 = vmatprep.subr.mxu0 0.0
  %2550 = vmatpush1.msra.mxu0 %v2426
  %2551 = vmatprep.subr.mxu0 0.0
  %2552 = vmatpush1.msra.mxu0 %v2420
  %2553 = vmatprep.subr.mxu0 0.0
  %2554 = vmatpush1.msra.mxu0 %v2414
  %2555 = vmatprep.subr.mxu0 0.0
  %2556 = vmatpush1.msra.mxu0 %v2408
  %2557 = vmatprep.subr.mxu0 0.0
  %2558 = vmatpush1.msra.mxu0 %v2402
  %2559 = vmatprep.subr.mxu0 0.0
  %2560 = vmatpush1.msra.mxu0 %v2396
  %2561 = vmatprep.subr.mxu0 0.0
  %2562 = vmatpush1.msra.mxu0 %v2436
  %2563 = vmatprep.subr.mxu0 0.0
  %2564 = vmatpush1.msra.mxu0 %v2430
  %2565 = vmatprep.subr.mxu0 0.0
  %2566 = vmatpush1.msra.mxu0 %v2424
  %2567 = vmatprep.subr.mxu0 0.0
  %2568 = vmatpush1.msra.mxu0 %v2418
  %2569 = vmatprep.subr.mxu0 0.0
  %2570 = vmatpush1.msra.mxu0 %v2412
  %2571 = vmatprep.subr.mxu0 0.0
  %2572 = vmatpush1.msra.mxu0 %v2406
  %2573 = vmatprep.subr.mxu0 0.0
  %2574 = vmatpush1.msra.mxu0 %v2400
  %2575 = vmatprep.subr.mxu0 0.0
  %2576 = vmatpush1.msra.mxu0 %v2394
  %2577 = vmatprep.subr.mxu0 0.0
  %2578 = vmatpush2.msra.mxu0 0.0
  %2579 = vmatprep.subr.mxu0 0.0
  %2580 = vmatpush2.msra.mxu0 0.0
  %2581 = vmatprep.subr.mxu0 0.0
  %2582 = vmatpush2.msra.mxu0 0.0
  %2583 = vmatprep.subr.mxu0 0.0
  %2584 = vmatpush2.msra.mxu0 0.0
  %2585 = vmatprep.subr.mxu0 0.0
  %2586 = vmatpush2.msra.mxu0 0.0
  %2587 = vmatprep.subr.mxu0 0.0
  %2588 = vmatpush2.msra.mxu0 0.0
  %2589 = vmatprep.subr.mxu0 0.0
  %2590 = vmatpush2.msra.mxu0 0.0
  %2591 = vmatprep.subr.mxu0 0.0
  %2592 = vmatpush2.msra.mxu0 0.0
  %2593 = vmatprep.subr.mxu0 0.0
  %2594 = vmatpush2.msra.mxu0 0.0
  %2595 = vmatprep.subr.mxu0 0.0
  %2596 = vmatpush2.msra.mxu0 0.0
  %2597 = vmatprep.subr.mxu0 0.0
  %2598 = vmatpush2.msra.mxu0 0.0
  %2599 = vmatprep.subr.mxu0 0.0
  %2600 = vmatpush2.msra.mxu0 0.0
  %2601 = vmatprep.subr.mxu0 0.0
  %2602 = vmatpush2.msra.mxu0 0.0
  %2603 = vmatprep.subr.mxu0 0.0
  %2604 = vmatpush2.msra.mxu0 0.0
  %2605 = vmatprep.subr.mxu0 0.0
  %2606 = vmatpush2.msra.mxu0 0.0
  %2607 = vmatprep.subr.mxu0 0.0
  %2608 = vmatpush2.msra.mxu0 0.0
  %2609 = vmatprep.mubr.f32.mxu0 0.0
  %2610 = vmatmul.mubr.f32.gmra.mxu0 %v1537
  %v2611 = vpop.f32.mrf.mxu0
  %v2612 = vadd.f32 %v2507, %v2611
  %v2613 = vpop.f32.mrf.mxu0
  %2614 = vmatprep.mubr.f32.mxu0 0.0
  %2615 = vmatmul.mubr.f32.gmra.mxu0 %v1538
  %v2616 = vpop.f32.mrf.mxu0
  %v2617 = vadd.f32 %v2512, %v2616
  %v2618 = vpop.f32.mrf.mxu0
  %2619 = vmatprep.mubr.f32.mxu0 0.0
  %2620 = vmatmul.mubr.f32.gmra.mxu0 %v1539
  %v2621 = vpop.f32.mrf.mxu0
  %v2622 = vadd.f32 %v2517, %v2621
  %v2623 = vpop.f32.mrf.mxu0
  %2624 = vmatprep.mubr.f32.mxu0 0.0
  %2625 = vmatmul.mubr.f32.gmra.mxu0 %v1540
  %v2626 = vpop.f32.mrf.mxu0
  %v2627 = vadd.f32 %v2522, %v2626
  %v2628 = vpop.f32.mrf.mxu0
  %2629 = vmatprep.mubr.f32.mxu0 0.0
  %2630 = vmatmul.mubr.f32.gmra.mxu0 %v1541
  %v2631 = vpop.f32.mrf.mxu0
  %v2632 = vadd.f32 %v2527, %v2631
  %v2633 = vpop.f32.mrf.mxu0
  %2634 = vmatprep.mubr.f32.mxu0 0.0
  %2635 = vmatmul.mubr.f32.gmra.mxu0 %v1542
  %v2636 = vpop.f32.mrf.mxu0
  %v2637 = vadd.f32 %v2532, %v2636
  %v2638 = vpop.f32.mrf.mxu0
  %2639 = vmatprep.mubr.f32.mxu0 0.0
  %2640 = vmatmul.mubr.f32.gmra.mxu0 %v1543
  %v2641 = vpop.f32.mrf.mxu0
  %v2642 = vadd.f32 %v2537, %v2641
  %v2643 = vpop.f32.mrf.mxu0
  %2644 = vmatprep.mubr.f32.mxu0 0.0
  %2645 = vmatmul.mubr.f32.gmra.mxu0 %v1544
  %v2646 = vpop.f32.mrf.mxu0
  %v2647 = vadd.f32 %v2542, %v2646
  %v2648 = vpop.f32.mrf.mxu0
  %2649 = vdwg.mxu0
  %v2650 = vadd.f32 %v2612, %v1655
  %v2651 = vadd.f32 %v2617, %v1655
  %v2652 = vadd.f32 %v2622, %v1655
  %v2653 = vadd.f32 %v2627, %v1655
  %v2654 = vadd.f32 %v2632, %v1655
  %v2655 = vadd.f32 %v2637, %v1655
  %v2656 = vadd.f32 %v2642, %v1655
  %v2657 = vadd.f32 %v2647, %v1655
  %2658 = vmatprep.subr.mxu0 %v1317
  %2659 = vmatpush1.msra.mxu0 %v1316
  %2660 = vmatprep.subr.mxu0 %v1314
  %2661 = vmatpush1.msra.mxu0 %v1313
  %2662 = vmatprep.subr.mxu0 %v1311
  %2663 = vmatpush1.msra.mxu0 %v1310
  %2664 = vmatprep.subr.mxu0 %v1308
  %2665 = vmatpush1.msra.mxu0 %v1307
  %2666 = vmatprep.subr.mxu0 %v1305
  %2667 = vmatpush1.msra.mxu0 %v1304
  %2668 = vmatprep.subr.mxu0 %v1302
  %2669 = vmatpush1.msra.mxu0 %v1301
  %2670 = vmatprep.subr.mxu0 %v1299
  %2671 = vmatpush1.msra.mxu0 %v1298
  %2672 = vmatprep.subr.mxu0 %v1296
  %2673 = vmatpush1.msra.mxu0 %v1295
  %2674 = vmatprep.subr.mxu0 %v1293
  %2675 = vmatpush1.msra.mxu0 %v1292
  %2676 = vmatprep.subr.mxu0 %v1290
  %2677 = vmatpush1.msra.mxu0 %v1289
  %2678 = vmatprep.subr.mxu0 %v1287
  %2679 = vmatpush1.msra.mxu0 %v1286
  %2680 = vmatprep.subr.mxu0 %v1284
  %2681 = vmatpush1.msra.mxu0 %v1283
  %2682 = vmatprep.subr.mxu0 %v1281
  %2683 = vmatpush1.msra.mxu0 %v1280
  %2684 = vmatprep.subr.mxu0 %v1278
  %2685 = vmatpush1.msra.mxu0 %v1277
  %2686 = vmatprep.subr.mxu0 %v1275
  %2687 = vmatpush1.msra.mxu0 %v1274
  %2688 = vmatprep.subr.mxu0 %v1272
  %2689 = vmatpush1.msra.mxu0 %v1271
  %2690 = vmatprep.subr.mxu0 0.0
  %2691 = vmatpush2.msra.mxu0 0.0
  %2692 = vmatprep.subr.mxu0 0.0
  %2693 = vmatpush2.msra.mxu0 0.0
  %2694 = vmatprep.subr.mxu0 0.0
  %2695 = vmatpush2.msra.mxu0 0.0
  %2696 = vmatprep.subr.mxu0 0.0
  %2697 = vmatpush2.msra.mxu0 0.0
  %2698 = vmatprep.subr.mxu0 0.0
  %2699 = vmatpush2.msra.mxu0 0.0
  %2700 = vmatprep.subr.mxu0 0.0
  %2701 = vmatpush2.msra.mxu0 0.0
  %2702 = vmatprep.subr.mxu0 0.0
  %2703 = vmatpush2.msra.mxu0 0.0
  %2704 = vmatprep.subr.mxu0 0.0
  %2705 = vmatpush2.msra.mxu0 0.0
  %2706 = vmatprep.subr.mxu0 0.0
  %2707 = vmatpush2.msra.mxu0 0.0
  %2708 = vmatprep.subr.mxu0 0.0
  %2709 = vmatpush2.msra.mxu0 0.0
  %2710 = vmatprep.subr.mxu0 0.0
  %2711 = vmatpush2.msra.mxu0 0.0
  %2712 = vmatprep.subr.mxu0 0.0
  %2713 = vmatpush2.msra.mxu0 0.0
  %2714 = vmatprep.subr.mxu0 0.0
  %2715 = vmatpush2.msra.mxu0 0.0
  %2716 = vmatprep.subr.mxu0 0.0
  %2717 = vmatpush2.msra.mxu0 0.0
  %2718 = vmatprep.subr.mxu0 0.0
  %2719 = vmatpush2.msra.mxu0 0.0
  %2720 = vmatprep.subr.mxu0 0.0
  %2721 = vmatpush2.msra.mxu0 0.0
  %2722 = vmatprep.mubr.f32.mxu0 0.0
  %2723 = vmatmul.mubr.f32.gmra.mxu0 %v2650
  %v2724 = vpop.f32.mrf.mxu0
  %v2725 = vadd.f32 0.0, %v2724
  %v2726 = vpop.f32.mrf.mxu0
  %v2727 = vadd.f32 0.0, %v2726
  %2728 = vmatprep.mubr.f32.mxu0 0.0
  %2729 = vmatmul.mubr.f32.gmra.mxu0 %v2651
  %v2730 = vpop.f32.mrf.mxu0
  %v2731 = vadd.f32 0.0, %v2730
  %v2732 = vpop.f32.mrf.mxu0
  %v2733 = vadd.f32 0.0, %v2732
  %2734 = vmatprep.mubr.f32.mxu0 0.0
  %2735 = vmatmul.mubr.f32.gmra.mxu0 %v2652
  %v2736 = vpop.f32.mrf.mxu0
  %v2737 = vadd.f32 0.0, %v2736
  %v2738 = vpop.f32.mrf.mxu0
  %v2739 = vadd.f32 0.0, %v2738
  %2740 = vmatprep.mubr.f32.mxu0 0.0
  %2741 = vmatmul.mubr.f32.gmra.mxu0 %v2653
  %v2742 = vpop.f32.mrf.mxu0
  %v2743 = vadd.f32 0.0, %v2742
  %v2744 = vpop.f32.mrf.mxu0
  %v2745 = vadd.f32 0.0, %v2744
  %2746 = vmatprep.mubr.f32.mxu0 0.0
  %2747 = vmatmul.mubr.f32.gmra.mxu0 %v2654
  %v2748 = vpop.f32.mrf.mxu0
  %v2749 = vadd.f32 0.0, %v2748
  %v2750 = vpop.f32.mrf.mxu0
  %v2751 = vadd.f32 0.0, %v2750
  %2752 = vmatprep.mubr.f32.mxu0 0.0
  %2753 = vmatmul.mubr.f32.gmra.mxu0 %v2655
  %v2754 = vpop.f32.mrf.mxu0
  %v2755 = vadd.f32 0.0, %v2754
  %v2756 = vpop.f32.mrf.mxu0
  %v2757 = vadd.f32 0.0, %v2756
  %2758 = vmatprep.mubr.f32.mxu0 0.0
  %2759 = vmatmul.mubr.f32.gmra.mxu0 %v2656
  %v2760 = vpop.f32.mrf.mxu0
  %v2761 = vadd.f32 0.0, %v2760
  %v2762 = vpop.f32.mrf.mxu0
  %v2763 = vadd.f32 0.0, %v2762
  %2764 = vmatprep.mubr.f32.mxu0 0.0
  %2765 = vmatmul.mubr.f32.gmra.mxu0 %v2657
  %v2766 = vpop.f32.mrf.mxu0
  %v2767 = vadd.f32 0.0, %v2766
  %v2768 = vpop.f32.mrf.mxu0
  %v2769 = vadd.f32 0.0, %v2768
  %2770 = vdwg.mxu0
  %2771 = vmatprep.subr.mxu0 0.0
  %2772 = vmatpush1.msra.mxu0 %v1318
  %2773 = vmatprep.subr.mxu0 0.0
  %2774 = vmatpush1.msra.mxu0 %v1315
  %2775 = vmatprep.subr.mxu0 0.0
  %2776 = vmatpush1.msra.mxu0 %v1312
  %2777 = vmatprep.subr.mxu0 0.0
  %2778 = vmatpush1.msra.mxu0 %v1309
  %2779 = vmatprep.subr.mxu0 0.0
  %2780 = vmatpush1.msra.mxu0 %v1306
  %2781 = vmatprep.subr.mxu0 0.0
  %2782 = vmatpush1.msra.mxu0 %v1303
  %2783 = vmatprep.subr.mxu0 0.0
  %2784 = vmatpush1.msra.mxu0 %v1300
  %2785 = vmatprep.subr.mxu0 0.0
  %2786 = vmatpush1.msra.mxu0 %v1297
  %2787 = vmatprep.subr.mxu0 0.0
  %2788 = vmatpush1.msra.mxu0 %v1294
  %2789 = vmatprep.subr.mxu0 0.0
  %2790 = vmatpush1.msra.mxu0 %v1291
  %2791 = vmatprep.subr.mxu0 0.0
  %2792 = vmatpush1.msra.mxu0 %v1288
  %2793 = vmatprep.subr.mxu0 0.0
  %2794 = vmatpush1.msra.mxu0 %v1285
  %2795 = vmatprep.subr.mxu0 0.0
  %2796 = vmatpush1.msra.mxu0 %v1282
  %2797 = vmatprep.subr.mxu0 0.0
  %2798 = vmatpush1.msra.mxu0 %v1279
  %2799 = vmatprep.subr.mxu0 0.0
  %2800 = vmatpush1.msra.mxu0 %v1276
  %2801 = vmatprep.subr.mxu0 0.0
  %2802 = vmatpush1.msra.mxu0 %v1273
  %2803 = vmatprep.subr.mxu0 0.0
  %2804 = vmatpush2.msra.mxu0 0.0
  %2805 = vmatprep.subr.mxu0 0.0
  %2806 = vmatpush2.msra.mxu0 0.0
  %2807 = vmatprep.subr.mxu0 0.0
  %2808 = vmatpush2.msra.mxu0 0.0
  %2809 = vmatprep.subr.mxu0 0.0
  %2810 = vmatpush2.msra.mxu0 0.0
  %2811 = vmatprep.subr.mxu0 0.0
  %2812 = vmatpush2.msra.mxu0 0.0
  %2813 = vmatprep.subr.mxu0 0.0
  %2814 = vmatpush2.msra.mxu0 0.0
  %2815 = vmatprep.subr.mxu0 0.0
  %2816 = vmatpush2.msra.mxu0 0.0
  %2817 = vmatprep.subr.mxu0 0.0
  %2818 = vmatpush2.msra.mxu0 0.0
  %2819 = vmatprep.subr.mxu0 0.0
  %2820 = vmatpush2.msra.mxu0 0.0
  %2821 = vmatprep.subr.mxu0 0.0
  %2822 = vmatpush2.msra.mxu0 0.0
  %2823 = vmatprep.subr.mxu0 0.0
  %2824 = vmatpush2.msra.mxu0 0.0
  %2825 = vmatprep.subr.mxu0 0.0
  %2826 = vmatpush2.msra.mxu0 0.0
  %2827 = vmatprep.subr.mxu0 0.0
  %2828 = vmatpush2.msra.mxu0 0.0
  %2829 = vmatprep.subr.mxu0 0.0
  %2830 = vmatpush2.msra.mxu0 0.0
  %2831 = vmatprep.subr.mxu0 0.0
  %2832 = vmatpush2.msra.mxu0 0.0
  %2833 = vmatprep.subr.mxu0 0.0
  %2834 = vmatpush2.msra.mxu0 0.0
  %2835 = vmatprep.mubr.f32.mxu0 0.0
  %2836 = vmatmul.mubr.f32.gmra.mxu0 %v2650
  %v2837 = vpop.f32.mrf.mxu0
  %v2838 = vadd.f32 0.0, %v2837
  %v2839 = vpop.f32.mrf.mxu0
  %2840 = vmatprep.mubr.f32.mxu0 0.0
  %2841 = vmatmul.mubr.f32.gmra.mxu0 %v2651
  %v2842 = vpop.f32.mrf.mxu0
  %v2843 = vadd.f32 0.0, %v2842
  %v2844 = vpop.f32.mrf.mxu0
  %2845 = vmatprep.mubr.f32.mxu0 0.0
  %2846 = vmatmul.mubr.f32.gmra.mxu0 %v2652
  %v2847 = vpop.f32.mrf.mxu0
  %v2848 = vadd.f32 0.0, %v2847
  %v2849 = vpop.f32.mrf.mxu0
  %2850 = vmatprep.mubr.f32.mxu0 0.0
  %2851 = vmatmul.mubr.f32.gmra.mxu0 %v2653
  %v2852 = vpop.f32.mrf.mxu0
  %v2853 = vadd.f32 0.0, %v2852
  %v2854 = vpop.f32.mrf.mxu0
  %2855 = vmatprep.mubr.f32.mxu0 0.0
  %2856 = vmatmul.mubr.f32.gmra.mxu0 %v2654
  %v2857 = vpop.f32.mrf.mxu0
  %v2858 = vadd.f32 0.0, %v2857
  %v2859 = vpop.f32.mrf.mxu0
  %2860 = vmatprep.mubr.f32.mxu0 0.0
  %2861 = vmatmul.mubr.f32.gmra.mxu0 %v2655
  %v2862 = vpop.f32.mrf.mxu0
  %v2863 = vadd.f32 0.0, %v2862
  %v2864 = vpop.f32.mrf.mxu0
  %2865 = vmatprep.mubr.f32.mxu0 0.0
  %2866 = vmatmul.mubr.f32.gmra.mxu0 %v2656
  %v2867 = vpop.f32.mrf.mxu0
  %v2868 = vadd.f32 0.0, %v2867
  %v2869 = vpop.f32.mrf.mxu0
  %2870 = vmatprep.mubr.f32.mxu0 0.0
  %2871 = vmatmul.mubr.f32.gmra.mxu0 %v2657
  %v2872 = vpop.f32.mrf.mxu0
  %v2873 = vadd.f32 0.0, %v2872
  %v2874 = vpop.f32.mrf.mxu0
  %2875 = vdwg.mxu0
  %2876 = vmatprep.subr.mxu0 0.0
  %2877 = vmatpush1.msra.mxu0 %v2769
  %2878 = vmatprep.subr.mxu0 0.0
  %2879 = vmatpush1.msra.mxu0 %v2763
  %2880 = vmatprep.subr.mxu0 0.0
  %2881 = vmatpush1.msra.mxu0 %v2757
  %2882 = vmatprep.subr.mxu0 0.0
  %2883 = vmatpush1.msra.mxu0 %v2751
  %2884 = vmatprep.subr.mxu0 0.0
  %2885 = vmatpush1.msra.mxu0 %v2745
  %2886 = vmatprep.subr.mxu0 0.0
  %2887 = vmatpush1.msra.mxu0 %v2739
  %2888 = vmatprep.subr.mxu0 0.0
  %2889 = vmatpush1.msra.mxu0 %v2733
  %2890 = vmatprep.subr.mxu0 0.0
  %2891 = vmatpush1.msra.mxu0 %v2727
  %2892 = vmatprep.subr.mxu0 0.0
  %2893 = vmatpush1.msra.mxu0 %v2767
  %2894 = vmatprep.subr.mxu0 0.0
  %2895 = vmatpush1.msra.mxu0 %v2761
  %2896 = vmatprep.subr.mxu0 0.0
  %2897 = vmatpush1.msra.mxu0 %v2755
  %2898 = vmatprep.subr.mxu0 0.0
  %2899 = vmatpush1.msra.mxu0 %v2749
  %2900 = vmatprep.subr.mxu0 0.0
  %2901 = vmatpush1.msra.mxu0 %v2743
  %2902 = vmatprep.subr.mxu0 0.0
  %2903 = vmatpush1.msra.mxu0 %v2737
  %2904 = vmatprep.subr.mxu0 0.0
  %2905 = vmatpush1.msra.mxu0 %v2731
  %2906 = vmatprep.subr.mxu0 0.0
  %2907 = vmatpush1.msra.mxu0 %v2725
  %2908 = vmatprep.subr.mxu0 0.0
  %2909 = vmatpush2.msra.mxu0 0.0
  %2910 = vmatprep.subr.mxu0 0.0
  %2911 = vmatpush2.msra.mxu0 0.0
  %2912 = vmatprep.subr.mxu0 0.0
  %2913 = vmatpush2.msra.mxu0 0.0
  %2914 = vmatprep.subr.mxu0 0.0
  %2915 = vmatpush2.msra.mxu0 0.0
  %2916 = vmatprep.subr.mxu0 0.0
  %2917 = vmatpush2.msra.mxu0 0.0
  %2918 = vmatprep.subr.mxu0 0.0
  %2919 = vmatpush2.msra.mxu0 0.0
  %2920 = vmatprep.subr.mxu0 0.0
  %2921 = vmatpush2.msra.mxu0 0.0
  %2922 = vmatprep.subr.mxu0 0.0
  %2923 = vmatpush2.msra.mxu0 0.0
  %2924 = vmatprep.subr.mxu0 0.0
  %2925 = vmatpush2.msra.mxu0 0.0
  %2926 = vmatprep.subr.mxu0 0.0
  %2927 = vmatpush2.msra.mxu0 0.0
  %2928 = vmatprep.subr.mxu0 0.0
  %2929 = vmatpush2.msra.mxu0 0.0
  %2930 = vmatprep.subr.mxu0 0.0
  %2931 = vmatpush2.msra.mxu0 0.0
  %2932 = vmatprep.subr.mxu0 0.0
  %2933 = vmatpush2.msra.mxu0 0.0
  %2934 = vmatprep.subr.mxu0 0.0
  %2935 = vmatpush2.msra.mxu0 0.0
  %2936 = vmatprep.subr.mxu0 0.0
  %2937 = vmatpush2.msra.mxu0 0.0
  %2938 = vmatprep.subr.mxu0 0.0
  %2939 = vmatpush2.msra.mxu0 0.0
  %2940 = vmatprep.mubr.f32.mxu0 0.0
  %2941 = vmatmul.mubr.f32.gmra.mxu0 %v1537
  %v2942 = vpop.f32.mrf.mxu0
  %v2943 = vadd.f32 %v2838, %v2942
  %v2944 = vpop.f32.mrf.mxu0
  %2945 = vmatprep.mubr.f32.mxu0 0.0
  %2946 = vmatmul.mubr.f32.gmra.mxu0 %v1538
  %v2947 = vpop.f32.mrf.mxu0
  %v2948 = vadd.f32 %v2843, %v2947
  %v2949 = vpop.f32.mrf.mxu0
  %2950 = vmatprep.mubr.f32.mxu0 0.0
  %2951 = vmatmul.mubr.f32.gmra.mxu0 %v1539
  %v2952 = vpop.f32.mrf.mxu0
  %v2953 = vadd.f32 %v2848, %v2952
  %v2954 = vpop.f32.mrf.mxu0
  %2955 = vmatprep.mubr.f32.mxu0 0.0
  %2956 = vmatmul.mubr.f32.gmra.mxu0 %v1540
  %v2957 = vpop.f32.mrf.mxu0
  %v2958 = vadd.f32 %v2853, %v2957
  %v2959 = vpop.f32.mrf.mxu0
  %2960 = vmatprep.mubr.f32.mxu0 0.0
  %2961 = vmatmul.mubr.f32.gmra.mxu0 %v1541
  %v2962 = vpop.f32.mrf.mxu0
  %v2963 = vadd.f32 %v2858, %v2962
  %v2964 = vpop.f32.mrf.mxu0
  %2965 = vmatprep.mubr.f32.mxu0 0.0
  %2966 = vmatmul.mubr.f32.gmra.mxu0 %v1542
  %v2967 = vpop.f32.mrf.mxu0
  %v2968 = vadd.f32 %v2863, %v2967
  %v2969 = vpop.f32.mrf.mxu0
  %2970 = vmatprep.mubr.f32.mxu0 0.0
  %2971 = vmatmul.mubr.f32.gmra.mxu0 %v1543
  %v2972 = vpop.f32.mrf.mxu0
  %v2973 = vadd.f32 %v2868, %v2972
  %v2974 = vpop.f32.mrf.mxu0
  %2975 = vmatprep.mubr.f32.mxu0 0.0
  %2976 = vmatmul.mubr.f32.gmra.mxu0 %v1544
  %v2977 = vpop.f32.mrf.mxu0
  %v2978 = vadd.f32 %v2873, %v2977
  %v2979 = vpop.f32.mrf.mxu0
  %2980 = vdwg.mxu0
  %v2981 = vadd.f32 %v2943, %v1655
  %v2982 = vadd.f32 %v2948, %v1655
  %v2983 = vadd.f32 %v2953, %v1655
  %v2984 = vadd.f32 %v2958, %v1655
  %v2985 = vadd.f32 %v2963, %v1655
  %v2986 = vadd.f32 %v2968, %v1655
  %v2987 = vadd.f32 %v2973, %v1655
  %v2988 = vadd.f32 %v2978, %v1655
  %2989 = vmatprep.subr.mxu0 %v1317
  %2990 = vmatpush1.msra.mxu0 %v1316
  %2991 = vmatprep.subr.mxu0 %v1314
  %2992 = vmatpush1.msra.mxu0 %v1313
  %2993 = vmatprep.subr.mxu0 %v1311
  %2994 = vmatpush1.msra.mxu0 %v1310
  %2995 = vmatprep.subr.mxu0 %v1308
  %2996 = vmatpush1.msra.mxu0 %v1307
  %2997 = vmatprep.subr.mxu0 %v1305
  %2998 = vmatpush1.msra.mxu0 %v1304
  %2999 = vmatprep.subr.mxu0 %v1302
  %3000 = vmatpush1.msra.mxu0 %v1301
  %3001 = vmatprep.subr.mxu0 %v1299
  %3002 = vmatpush1.msra.mxu0 %v1298
  %3003 = vmatprep.subr.mxu0 %v1296
  %3004 = vmatpush1.msra.mxu0 %v1295
  %3005 = vmatprep.subr.mxu0 %v1293
  %3006 = vmatpush1.msra.mxu0 %v1292
  %3007 = vmatprep.subr.mxu0 %v1290
  %3008 = vmatpush1.msra.mxu0 %v1289
  %3009 = vmatprep.subr.mxu0 %v1287
  %3010 = vmatpush1.msra.mxu0 %v1286
  %3011 = vmatprep.subr.mxu0 %v1284
  %3012 = vmatpush1.msra.mxu0 %v1283
  %3013 = vmatprep.subr.mxu0 %v1281
  %3014 = vmatpush1.msra.mxu0 %v1280
  %3015 = vmatprep.subr.mxu0 %v1278
  %3016 = vmatpush1.msra.mxu0 %v1277
  %3017 = vmatprep.subr.mxu0 %v1275
  %3018 = vmatpush1.msra.mxu0 %v1274
  %3019 = vmatprep.subr.mxu0 %v1272
  %3020 = vmatpush1.msra.mxu0 %v1271
  %3021 = vmatprep.subr.mxu0 0.0
  %3022 = vmatpush2.msra.mxu0 0.0
  %3023 = vmatprep.subr.mxu0 0.0
  %3024 = vmatpush2.msra.mxu0 0.0
  %3025 = vmatprep.subr.mxu0 0.0
  %3026 = vmatpush2.msra.mxu0 0.0
  %3027 = vmatprep.subr.mxu0 0.0
  %3028 = vmatpush2.msra.mxu0 0.0
  %3029 = vmatprep.subr.mxu0 0.0
  %3030 = vmatpush2.msra.mxu0 0.0
  %3031 = vmatprep.subr.mxu0 0.0
  %3032 = vmatpush2.msra.mxu0 0.0
  %3033 = vmatprep.subr.mxu0 0.0
  %3034 = vmatpush2.msra.mxu0 0.0
  %3035 = vmatprep.subr.mxu0 0.0
  %3036 = vmatpush2.msra.mxu0 0.0
  %3037 = vmatprep.subr.mxu0 0.0
  %3038 = vmatpush2.msra.mxu0 0.0
  %3039 = vmatprep.subr.mxu0 0.0
  %3040 = vmatpush2.msra.mxu0 0.0
  %3041 = vmatprep.subr.mxu0 0.0
  %3042 = vmatpush2.msra.mxu0 0.0
  %3043 = vmatprep.subr.mxu0 0.0
  %3044 = vmatpush2.msra.mxu0 0.0
  %3045 = vmatprep.subr.mxu0 0.0
  %3046 = vmatpush2.msra.mxu0 0.0
  %3047 = vmatprep.subr.mxu0 0.0
  %3048 = vmatpush2.msra.mxu0 0.0
  %3049 = vmatprep.subr.mxu0 0.0
  %3050 = vmatpush2.msra.mxu0 0.0
  %3051 = vmatprep.subr.mxu0 0.0
  %3052 = vmatpush2.msra.mxu0 0.0
  %3053 = vmatprep.mubr.f32.mxu0 0.0
  %3054 = vmatmul.mubr.f32.gmra.mxu0 %v2981
  %v3055 = vpop.f32.mrf.mxu0
  %v3056 = vadd.f32 0.0, %v3055
  %v3057 = vpop.f32.mrf.mxu0
  %v3058 = vadd.f32 0.0, %v3057
  %3059 = vmatprep.mubr.f32.mxu0 0.0
  %3060 = vmatmul.mubr.f32.gmra.mxu0 %v2982
  %v3061 = vpop.f32.mrf.mxu0
  %v3062 = vadd.f32 0.0, %v3061
  %v3063 = vpop.f32.mrf.mxu0
  %v3064 = vadd.f32 0.0, %v3063
  %3065 = vmatprep.mubr.f32.mxu0 0.0
  %3066 = vmatmul.mubr.f32.gmra.mxu0 %v2983
  %v3067 = vpop.f32.mrf.mxu0
  %v3068 = vadd.f32 0.0, %v3067
  %v3069 = vpop.f32.mrf.mxu0
  %v3070 = vadd.f32 0.0, %v3069
  %3071 = vmatprep.mubr.f32.mxu0 0.0
  %3072 = vmatmul.mubr.f32.gmra.mxu0 %v2984
  %v3073 = vpop.f32.mrf.mxu0
  %v3074 = vadd.f32 0.0, %v3073
  %v3075 = vpop.f32.mrf.mxu0
  %v3076 = vadd.f32 0.0, %v3075
  %3077 = vmatprep.mubr.f32.mxu0 0.0
  %3078 = vmatmul.mubr.f32.gmra.mxu0 %v2985
  %v3079 = vpop.f32.mrf.mxu0
  %v3080 = vadd.f32 0.0, %v3079
  %v3081 = vpop.f32.mrf.mxu0
  %v3082 = vadd.f32 0.0, %v3081
  %3083 = vmatprep.mubr.f32.mxu0 0.0
  %3084 = vmatmul.mubr.f32.gmra.mxu0 %v2986
  %v3085 = vpop.f32.mrf.mxu0
  %v3086 = vadd.f32 0.0, %v3085
  %v3087 = vpop.f32.mrf.mxu0
  %v3088 = vadd.f32 0.0, %v3087
  %3089 = vmatprep.mubr.f32.mxu0 0.0
  %3090 = vmatmul.mubr.f32.gmra.mxu0 %v2987
  %v3091 = vpop.f32.mrf.mxu0
  %v3092 = vadd.f32 0.0, %v3091
  %v3093 = vpop.f32.mrf.mxu0
  %v3094 = vadd.f32 0.0, %v3093
  %3095 = vmatprep.mubr.f32.mxu0 0.0
  %3096 = vmatmul.mubr.f32.gmra.mxu0 %v2988
  %v3097 = vpop.f32.mrf.mxu0
  %v3098 = vadd.f32 0.0, %v3097
  %v3099 = vpop.f32.mrf.mxu0
  %v3100 = vadd.f32 0.0, %v3099
  %3101 = vdwg.mxu0
  %3102 = vmatprep.subr.mxu0 0.0
  %3103 = vmatpush1.msra.mxu0 %v1318
  %3104 = vmatprep.subr.mxu0 0.0
  %3105 = vmatpush1.msra.mxu0 %v1315
  %3106 = vmatprep.subr.mxu0 0.0
  %3107 = vmatpush1.msra.mxu0 %v1312
  %3108 = vmatprep.subr.mxu0 0.0
  %3109 = vmatpush1.msra.mxu0 %v1309
  %3110 = vmatprep.subr.mxu0 0.0
  %3111 = vmatpush1.msra.mxu0 %v1306
  %3112 = vmatprep.subr.mxu0 0.0
  %3113 = vmatpush1.msra.mxu0 %v1303
  %3114 = vmatprep.subr.mxu0 0.0
  %3115 = vmatpush1.msra.mxu0 %v1300
  %3116 = vmatprep.subr.mxu0 0.0
  %3117 = vmatpush1.msra.mxu0 %v1297
  %3118 = vmatprep.subr.mxu0 0.0
  %3119 = vmatpush1.msra.mxu0 %v1294
  %3120 = vmatprep.subr.mxu0 0.0
  %3121 = vmatpush1.msra.mxu0 %v1291
  %3122 = vmatprep.subr.mxu0 0.0
  %3123 = vmatpush1.msra.mxu0 %v1288
  %3124 = vmatprep.subr.mxu0 0.0
  %3125 = vmatpush1.msra.mxu0 %v1285
  %3126 = vmatprep.subr.mxu0 0.0
  %3127 = vmatpush1.msra.mxu0 %v1282
  %3128 = vmatprep.subr.mxu0 0.0
  %3129 = vmatpush1.msra.mxu0 %v1279
  %3130 = vmatprep.subr.mxu0 0.0
  %3131 = vmatpush1.msra.mxu0 %v1276
  %3132 = vmatprep.subr.mxu0 0.0
  %3133 = vmatpush1.msra.mxu0 %v1273
  %3134 = vmatprep.subr.mxu0 0.0
  %3135 = vmatpush2.msra.mxu0 0.0
  %3136 = vmatprep.subr.mxu0 0.0
  %3137 = vmatpush2.msra.mxu0 0.0
  %3138 = vmatprep.subr.mxu0 0.0
  %3139 = vmatpush2.msra.mxu0 0.0
  %3140 = vmatprep.subr.mxu0 0.0
  %3141 = vmatpush2.msra.mxu0 0.0
  %3142 = vmatprep.subr.mxu0 0.0
  %3143 = vmatpush2.msra.mxu0 0.0
  %3144 = vmatprep.subr.mxu0 0.0
  %3145 = vmatpush2.msra.mxu0 0.0
  %3146 = vmatprep.subr.mxu0 0.0
  %3147 = vmatpush2.msra.mxu0 0.0
  %3148 = vmatprep.subr.mxu0 0.0
  %3149 = vmatpush2.msra.mxu0 0.0
  %3150 = vmatprep.subr.mxu0 0.0
  %3151 = vmatpush2.msra.mxu0 0.0
  %3152 = vmatprep.subr.mxu0 0.0
  %3153 = vmatpush2.msra.mxu0 0.0
  %3154 = vmatprep.subr.mxu0 0.0
  %3155 = vmatpush2.msra.mxu0 0.0
  %3156 = vmatprep.subr.mxu0 0.0
  %3157 = vmatpush2.msra.mxu0 0.0
  %3158 = vmatprep.subr.mxu0 0.0
  %3159 = vmatpush2.msra.mxu0 0.0
  %3160 = vmatprep.subr.mxu0 0.0
  %3161 = vmatpush2.msra.mxu0 0.0
  %3162 = vmatprep.subr.mxu0 0.0
  %3163 = vmatpush2.msra.mxu0 0.0
  %3164 = vmatprep.subr.mxu0 0.0
  %3165 = vmatpush2.msra.mxu0 0.0
  %3166 = vmatprep.mubr.f32.mxu0 0.0
  %3167 = vmatmul.mubr.f32.gmra.mxu0 %v2981
  %v3168 = vpop.f32.mrf.mxu0
  %v3169 = vadd.f32 0.0, %v3168
  %v3170 = vpop.f32.mrf.mxu0
  %3171 = vmatprep.mubr.f32.mxu0 0.0
  %3172 = vmatmul.mubr.f32.gmra.mxu0 %v2982
  %v3173 = vpop.f32.mrf.mxu0
  %v3174 = vadd.f32 0.0, %v3173
  %v3175 = vpop.f32.mrf.mxu0
  %3176 = vmatprep.mubr.f32.mxu0 0.0
  %3177 = vmatmul.mubr.f32.gmra.mxu0 %v2983
  %v3178 = vpop.f32.mrf.mxu0
  %v3179 = vadd.f32 0.0, %v3178
  %v3180 = vpop.f32.mrf.mxu0
  %3181 = vmatprep.mubr.f32.mxu0 0.0
  %3182 = vmatmul.mubr.f32.gmra.mxu0 %v2984
  %v3183 = vpop.f32.mrf.mxu0
  %v3184 = vadd.f32 0.0, %v3183
  %v3185 = vpop.f32.mrf.mxu0
  %3186 = vmatprep.mubr.f32.mxu0 0.0
  %3187 = vmatmul.mubr.f32.gmra.mxu0 %v2985
  %v3188 = vpop.f32.mrf.mxu0
  %v3189 = vadd.f32 0.0, %v3188
  %v3190 = vpop.f32.mrf.mxu0
  %3191 = vmatprep.mubr.f32.mxu0 0.0
  %3192 = vmatmul.mubr.f32.gmra.mxu0 %v2986
  %v3193 = vpop.f32.mrf.mxu0
  %v3194 = vadd.f32 0.0, %v3193
  %v3195 = vpop.f32.mrf.mxu0
  %3196 = vmatprep.mubr.f32.mxu0 0.0
  %3197 = vmatmul.mubr.f32.gmra.mxu0 %v2987
  %v3198 = vpop.f32.mrf.mxu0
  %v3199 = vadd.f32 0.0, %v3198
  %v3200 = vpop.f32.mrf.mxu0
  %3201 = vmatprep.mubr.f32.mxu0 0.0
  %3202 = vmatmul.mubr.f32.gmra.mxu0 %v2988
  %v3203 = vpop.f32.mrf.mxu0
  %v3204 = vadd.f32 0.0, %v3203
  %v3205 = vpop.f32.mrf.mxu0
  %3206 = vdwg.mxu0
  %3207 = vmatprep.subr.mxu0 0.0
  %3208 = vmatpush1.msra.mxu0 %v3100
  %3209 = vmatprep.subr.mxu0 0.0
  %3210 = vmatpush1.msra.mxu0 %v3094
  %3211 = vmatprep.subr.mxu0 0.0
  %3212 = vmatpush1.msra.mxu0 %v3088
  %3213 = vmatprep.subr.mxu0 0.0
  %3214 = vmatpush1.msra.mxu0 %v3082
  %3215 = vmatprep.subr.mxu0 0.0
  %3216 = vmatpush1.msra.mxu0 %v3076
  %3217 = vmatprep.subr.mxu0 0.0
  %3218 = vmatpush1.msra.mxu0 %v3070
  %3219 = vmatprep.subr.mxu0 0.0
  %3220 = vmatpush1.msra.mxu0 %v3064
  %3221 = vmatprep.subr.mxu0 0.0
  %3222 = vmatpush1.msra.mxu0 %v3058
  %3223 = vmatprep.subr.mxu0 0.0
  %3224 = vmatpush1.msra.mxu0 %v3098
  %3225 = vmatprep.subr.mxu0 0.0
  %3226 = vmatpush1.msra.mxu0 %v3092
  %3227 = vmatprep.subr.mxu0 0.0
  %3228 = vmatpush1.msra.mxu0 %v3086
  %3229 = vmatprep.subr.mxu0 0.0
  %3230 = vmatpush1.msra.mxu0 %v3080
  %3231 = vmatprep.subr.mxu0 0.0
  %3232 = vmatpush1.msra.mxu0 %v3074
  %3233 = vmatprep.subr.mxu0 0.0
  %3234 = vmatpush1.msra.mxu0 %v3068
  %3235 = vmatprep.subr.mxu0 0.0
  %3236 = vmatpush1.msra.mxu0 %v3062
  %3237 = vmatprep.subr.mxu0 0.0
  %3238 = vmatpush1.msra.mxu0 %v3056
  %3239 = vmatprep.subr.mxu0 0.0
  %3240 = vmatpush2.msra.mxu0 0.0
  %3241 = vmatprep.subr.mxu0 0.0
  %3242 = vmatpush2.msra.mxu0 0.0
  %3243 = vmatprep.subr.mxu0 0.0
  %3244 = vmatpush2.msra.mxu0 0.0
  %3245 = vmatprep.subr.mxu0 0.0
  %3246 = vmatpush2.msra.mxu0 0.0
  %3247 = vmatprep.subr.mxu0 0.0
  %3248 = vmatpush2.msra.mxu0 0.0
  %3249 = vmatprep.subr.mxu0 0.0
  %3250 = vmatpush2.msra.mxu0 0.0
  %3251 = vmatprep.subr.mxu0 0.0
  %3252 = vmatpush2.msra.mxu0 0.0
  %3253 = vmatprep.subr.mxu0 0.0
  %3254 = vmatpush2.msra.mxu0 0.0
  %3255 = vmatprep.subr.mxu0 0.0
  %3256 = vmatpush2.msra.mxu0 0.0
  %3257 = vmatprep.subr.mxu0 0.0
  %3258 = vmatpush2.msra.mxu0 0.0
  %3259 = vmatprep.subr.mxu0 0.0
  %3260 = vmatpush2.msra.mxu0 0.0
  %3261 = vmatprep.subr.mxu0 0.0
  %3262 = vmatpush2.msra.mxu0 0.0
  %3263 = vmatprep.subr.mxu0 0.0
  %3264 = vmatpush2.msra.mxu0 0.0
  %3265 = vmatprep.subr.mxu0 0.0
  %3266 = vmatpush2.msra.mxu0 0.0
  %3267 = vmatprep.subr.mxu0 0.0
  %3268 = vmatpush2.msra.mxu0 0.0
  %3269 = vmatprep.subr.mxu0 0.0
  %3270 = vmatpush2.msra.mxu0 0.0
  %3271 = vmatprep.mubr.f32.mxu0 0.0
  %3272 = vmatmul.mubr.f32.gmra.mxu0 %v1537
  %v3273 = vpop.f32.mrf.mxu0
  %v3274 = vadd.f32 %v3169, %v3273
  %v3275 = vpop.f32.mrf.mxu0
  %3276 = vmatprep.mubr.f32.mxu0 0.0
  %3277 = vmatmul.mubr.f32.gmra.mxu0 %v1538
  %v3278 = vpop.f32.mrf.mxu0
  %v3279 = vadd.f32 %v3174, %v3278
  %v3280 = vpop.f32.mrf.mxu0
  %3281 = vmatprep.mubr.f32.mxu0 0.0
  %3282 = vmatmul.mubr.f32.gmra.mxu0 %v1539
  %v3283 = vpop.f32.mrf.mxu0
  %v3284 = vadd.f32 %v3179, %v3283
  %v3285 = vpop.f32.mrf.mxu0
  %3286 = vmatprep.mubr.f32.mxu0 0.0
  %3287 = vmatmul.mubr.f32.gmra.mxu0 %v1540
  %v3288 = vpop.f32.mrf.mxu0
  %v3289 = vadd.f32 %v3184, %v3288
  %v3290 = vpop.f32.mrf.mxu0
  %3291 = vmatprep.mubr.f32.mxu0 0.0
  %3292 = vmatmul.mubr.f32.gmra.mxu0 %v1541
  %v3293 = vpop.f32.mrf.mxu0
  %v3294 = vadd.f32 %v3189, %v3293
  %v3295 = vpop.f32.mrf.mxu0
  %3296 = vmatprep.mubr.f32.mxu0 0.0
  %3297 = vmatmul.mubr.f32.gmra.mxu0 %v1542
  %v3298 = vpop.f32.mrf.mxu0
  %v3299 = vadd.f32 %v3194, %v3298
  %v3300 = vpop.f32.mrf.mxu0
  %3301 = vmatprep.mubr.f32.mxu0 0.0
  %3302 = vmatmul.mubr.f32.gmra.mxu0 %v1543
  %v3303 = vpop.f32.mrf.mxu0
  %v3304 = vadd.f32 %v3199, %v3303
  %v3305 = vpop.f32.mrf.mxu0
  %3306 = vmatprep.mubr.f32.mxu0 0.0
  %3307 = vmatmul.mubr.f32.gmra.mxu0 %v1544
  %v3308 = vpop.f32.mrf.mxu0
  %v3309 = vadd.f32 %v3204, %v3308
  %v3310 = vpop.f32.mrf.mxu0
  %3311 = vdwg.mxu0
  %v3312 = vadd.f32 %v3274, %v1655
  %v3313 = vadd.f32 %v3279, %v1655
  %v3314 = vadd.f32 %v3284, %v1655
  %v3315 = vadd.f32 %v3289, %v1655
  %v3316 = vadd.f32 %v3294, %v1655
  %v3317 = vadd.f32 %v3299, %v1655
  %v3318 = vadd.f32 %v3304, %v1655
  %v3319 = vadd.f32 %v3309, %v1655
  %3320 = vmatprep.subr.mxu0 %v1317
  %3321 = vmatpush1.msra.mxu0 %v1316
  %3322 = vmatprep.subr.mxu0 %v1314
  %3323 = vmatpush1.msra.mxu0 %v1313
  %3324 = vmatprep.subr.mxu0 %v1311
  %3325 = vmatpush1.msra.mxu0 %v1310
  %3326 = vmatprep.subr.mxu0 %v1308
  %3327 = vmatpush1.msra.mxu0 %v1307
  %3328 = vmatprep.subr.mxu0 %v1305
  %3329 = vmatpush1.msra.mxu0 %v1304
  %3330 = vmatprep.subr.mxu0 %v1302
  %3331 = vmatpush1.msra.mxu0 %v1301
  %3332 = vmatprep.subr.mxu0 %v1299
  %3333 = vmatpush1.msra.mxu0 %v1298
  %3334 = vmatprep.subr.mxu0 %v1296
  %3335 = vmatpush1.msra.mxu0 %v1295
  %3336 = vmatprep.subr.mxu0 %v1293
  %3337 = vmatpush1.msra.mxu0 %v1292
  %3338 = vmatprep.subr.mxu0 %v1290
  %3339 = vmatpush1.msra.mxu0 %v1289
  %3340 = vmatprep.subr.mxu0 %v1287
  %3341 = vmatpush1.msra.mxu0 %v1286
  %3342 = vmatprep.subr.mxu0 %v1284
  %3343 = vmatpush1.msra.mxu0 %v1283
  %3344 = vmatprep.subr.mxu0 %v1281
  %3345 = vmatpush1.msra.mxu0 %v1280
  %3346 = vmatprep.subr.mxu0 %v1278
  %3347 = vmatpush1.msra.mxu0 %v1277
  %3348 = vmatprep.subr.mxu0 %v1275
  %3349 = vmatpush1.msra.mxu0 %v1274
  %3350 = vmatprep.subr.mxu0 %v1272
  %3351 = vmatpush1.msra.mxu0 %v1271
  %3352 = vmatprep.subr.mxu0 0.0
  %3353 = vmatpush2.msra.mxu0 0.0
  %3354 = vmatprep.subr.mxu0 0.0
  %3355 = vmatpush2.msra.mxu0 0.0
  %3356 = vmatprep.subr.mxu0 0.0
  %3357 = vmatpush2.msra.mxu0 0.0
  %3358 = vmatprep.subr.mxu0 0.0
  %3359 = vmatpush2.msra.mxu0 0.0
  %3360 = vmatprep.subr.mxu0 0.0
  %3361 = vmatpush2.msra.mxu0 0.0
  %3362 = vmatprep.subr.mxu0 0.0
  %3363 = vmatpush2.msra.mxu0 0.0
  %3364 = vmatprep.subr.mxu0 0.0
  %3365 = vmatpush2.msra.mxu0 0.0
  %3366 = vmatprep.subr.mxu0 0.0
  %3367 = vmatpush2.msra.mxu0 0.0
  %3368 = vmatprep.subr.mxu0 0.0
  %3369 = vmatpush2.msra.mxu0 0.0
  %3370 = vmatprep.subr.mxu0 0.0
  %3371 = vmatpush2.msra.mxu0 0.0
  %3372 = vmatprep.subr.mxu0 0.0
  %3373 = vmatpush2.msra.mxu0 0.0
  %3374 = vmatprep.subr.mxu0 0.0
  %3375 = vmatpush2.msra.mxu0 0.0
  %3376 = vmatprep.subr.mxu0 0.0
  %3377 = vmatpush2.msra.mxu0 0.0
  %3378 = vmatprep.subr.mxu0 0.0
  %3379 = vmatpush2.msra.mxu0 0.0
  %3380 = vmatprep.subr.mxu0 0.0
  %3381 = vmatpush2.msra.mxu0 0.0
  %3382 = vmatprep.subr.mxu0 0.0
  %3383 = vmatpush2.msra.mxu0 0.0
  %3384 = vmatprep.mubr.f32.mxu0 0.0
  %3385 = vmatmul.mubr.f32.gmra.mxu0 %v3312
  %v3386 = vpop.f32.mrf.mxu0
  %v3387 = vadd.f32 0.0, %v3386
  %v3388 = vpop.f32.mrf.mxu0
  %v3389 = vadd.f32 0.0, %v3388
  %3390 = vmatprep.mubr.f32.mxu0 0.0
  %3391 = vmatmul.mubr.f32.gmra.mxu0 %v3313
  %v3392 = vpop.f32.mrf.mxu0
  %v3393 = vadd.f32 0.0, %v3392
  %v3394 = vpop.f32.mrf.mxu0
  %v3395 = vadd.f32 0.0, %v3394
  %3396 = vmatprep.mubr.f32.mxu0 0.0
  %3397 = vmatmul.mubr.f32.gmra.mxu0 %v3314
  %v3398 = vpop.f32.mrf.mxu0
  %v3399 = vadd.f32 0.0, %v3398
  %v3400 = vpop.f32.mrf.mxu0
  %v3401 = vadd.f32 0.0, %v3400
  %3402 = vmatprep.mubr.f32.mxu0 0.0
  %3403 = vmatmul.mubr.f32.gmra.mxu0 %v3315
  %v3404 = vpop.f32.mrf.mxu0
  %v3405 = vadd.f32 0.0, %v3404
  %v3406 = vpop.f32.mrf.mxu0
  %v3407 = vadd.f32 0.0, %v3406
  %3408 = vmatprep.mubr.f32.mxu0 0.0
  %3409 = vmatmul.mubr.f32.gmra.mxu0 %v3316
  %v3410 = vpop.f32.mrf.mxu0
  %v3411 = vadd.f32 0.0, %v3410
  %v3412 = vpop.f32.mrf.mxu0
  %v3413 = vadd.f32 0.0, %v3412
  %3414 = vmatprep.mubr.f32.mxu0 0.0
  %3415 = vmatmul.mubr.f32.gmra.mxu0 %v3317
  %v3416 = vpop.f32.mrf.mxu0
  %v3417 = vadd.f32 0.0, %v3416
  %v3418 = vpop.f32.mrf.mxu0
  %v3419 = vadd.f32 0.0, %v3418
  %3420 = vmatprep.mubr.f32.mxu0 0.0
  %3421 = vmatmul.mubr.f32.gmra.mxu0 %v3318
  %v3422 = vpop.f32.mrf.mxu0
  %v3423 = vadd.f32 0.0, %v3422
  %v3424 = vpop.f32.mrf.mxu0
  %v3425 = vadd.f32 0.0, %v3424
  %3426 = vmatprep.mubr.f32.mxu0 0.0
  %3427 = vmatmul.mubr.f32.gmra.mxu0 %v3319
  %v3428 = vpop.f32.mrf.mxu0
  %v3429 = vadd.f32 0.0, %v3428
  %v3430 = vpop.f32.mrf.mxu0
  %v3431 = vadd.f32 0.0, %v3430
  %3432 = vdwg.mxu0
  %3433 = vmatprep.subr.mxu0 0.0
  %3434 = vmatpush1.msra.mxu0 %v1318
  %3435 = vmatprep.subr.mxu0 0.0
  %3436 = vmatpush1.msra.mxu0 %v1315
  %3437 = vmatprep.subr.mxu0 0.0
  %3438 = vmatpush1.msra.mxu0 %v1312
  %3439 = vmatprep.subr.mxu0 0.0
  %3440 = vmatpush1.msra.mxu0 %v1309
  %3441 = vmatprep.subr.mxu0 0.0
  %3442 = vmatpush1.msra.mxu0 %v1306
  %3443 = vmatprep.subr.mxu0 0.0
  %3444 = vmatpush1.msra.mxu0 %v1303
  %3445 = vmatprep.subr.mxu0 0.0
  %3446 = vmatpush1.msra.mxu0 %v1300
  %3447 = vmatprep.subr.mxu0 0.0
  %3448 = vmatpush1.msra.mxu0 %v1297
  %3449 = vmatprep.subr.mxu0 0.0
  %3450 = vmatpush1.msra.mxu0 %v1294
  %3451 = vmatprep.subr.mxu0 0.0
  %3452 = vmatpush1.msra.mxu0 %v1291
  %3453 = vmatprep.subr.mxu0 0.0
  %3454 = vmatpush1.msra.mxu0 %v1288
  %3455 = vmatprep.subr.mxu0 0.0
  %3456 = vmatpush1.msra.mxu0 %v1285
  %3457 = vmatprep.subr.mxu0 0.0
  %3458 = vmatpush1.msra.mxu0 %v1282
  %3459 = vmatprep.subr.mxu0 0.0
  %3460 = vmatpush1.msra.mxu0 %v1279
  %3461 = vmatprep.subr.mxu0 0.0
  %3462 = vmatpush1.msra.mxu0 %v1276
  %3463 = vmatprep.subr.mxu0 0.0
  %3464 = vmatpush1.msra.mxu0 %v1273
  %3465 = vmatprep.subr.mxu0 0.0
  %3466 = vmatpush2.msra.mxu0 0.0
  %3467 = vmatprep.subr.mxu0 0.0
  %3468 = vmatpush2.msra.mxu0 0.0
  %3469 = vmatprep.subr.mxu0 0.0
  %3470 = vmatpush2.msra.mxu0 0.0
  %3471 = vmatprep.subr.mxu0 0.0
  %3472 = vmatpush2.msra.mxu0 0.0
  %3473 = vmatprep.subr.mxu0 0.0
  %3474 = vmatpush2.msra.mxu0 0.0
  %3475 = vmatprep.subr.mxu0 0.0
  %3476 = vmatpush2.msra.mxu0 0.0
  %3477 = vmatprep.subr.mxu0 0.0
  %3478 = vmatpush2.msra.mxu0 0.0
  %3479 = vmatprep.subr.mxu0 0.0
  %3480 = vmatpush2.msra.mxu0 0.0
  %3481 = vmatprep.subr.mxu0 0.0
  %3482 = vmatpush2.msra.mxu0 0.0
  %3483 = vmatprep.subr.mxu0 0.0
  %3484 = vmatpush2.msra.mxu0 0.0
  %3485 = vmatprep.subr.mxu0 0.0
  %3486 = vmatpush2.msra.mxu0 0.0
  %3487 = vmatprep.subr.mxu0 0.0
  %3488 = vmatpush2.msra.mxu0 0.0
  %3489 = vmatprep.subr.mxu0 0.0
  %3490 = vmatpush2.msra.mxu0 0.0
  %3491 = vmatprep.subr.mxu0 0.0
  %3492 = vmatpush2.msra.mxu0 0.0
  %3493 = vmatprep.subr.mxu0 0.0
  %3494 = vmatpush2.msra.mxu0 0.0
  %3495 = vmatprep.subr.mxu0 0.0
  %3496 = vmatpush2.msra.mxu0 0.0
  %3497 = vmatprep.mubr.f32.mxu0 0.0
  %3498 = vmatmul.mubr.f32.gmra.mxu0 %v3312
  %v3499 = vpop.f32.mrf.mxu0
  %v3500 = vadd.f32 0.0, %v3499
  %v3501 = vpop.f32.mrf.mxu0
  %3502 = vmatprep.mubr.f32.mxu0 0.0
  %3503 = vmatmul.mubr.f32.gmra.mxu0 %v3313
  %v3504 = vpop.f32.mrf.mxu0
  %v3505 = vadd.f32 0.0, %v3504
  %v3506 = vpop.f32.mrf.mxu0
  %3507 = vmatprep.mubr.f32.mxu0 0.0
  %3508 = vmatmul.mubr.f32.gmra.mxu0 %v3314
  %v3509 = vpop.f32.mrf.mxu0
  %v3510 = vadd.f32 0.0, %v3509
  %v3511 = vpop.f32.mrf.mxu0
  %3512 = vmatprep.mubr.f32.mxu0 0.0
  %3513 = vmatmul.mubr.f32.gmra.mxu0 %v3315
  %v3514 = vpop.f32.mrf.mxu0
  %v3515 = vadd.f32 0.0, %v3514
  %v3516 = vpop.f32.mrf.mxu0
  %3517 = vmatprep.mubr.f32.mxu0 0.0
  %3518 = vmatmul.mubr.f32.gmra.mxu0 %v3316
  %v3519 = vpop.f32.mrf.mxu0
  %v3520 = vadd.f32 0.0, %v3519
  %v3521 = vpop.f32.mrf.mxu0
  %3522 = vmatprep.mubr.f32.mxu0 0.0
  %3523 = vmatmul.mubr.f32.gmra.mxu0 %v3317
  %v3524 = vpop.f32.mrf.mxu0
  %v3525 = vadd.f32 0.0, %v3524
  %v3526 = vpop.f32.mrf.mxu0
  %3527 = vmatprep.mubr.f32.mxu0 0.0
  %3528 = vmatmul.mubr.f32.gmra.mxu0 %v3318
  %v3529 = vpop.f32.mrf.mxu0
  %v3530 = vadd.f32 0.0, %v3529
  %v3531 = vpop.f32.mrf.mxu0
  %3532 = vmatprep.mubr.f32.mxu0 0.0
  %3533 = vmatmul.mubr.f32.gmra.mxu0 %v3319
  %v3534 = vpop.f32.mrf.mxu0
  %v3535 = vadd.f32 0.0, %v3534
  %v3536 = vpop.f32.mrf.mxu0
  %3537 = vdwg.mxu0
  %3538 = vmatprep.subr.mxu0 0.0
  %3539 = vmatpush1.msra.mxu0 %v3431
  %3540 = vmatprep.subr.mxu0 0.0
  %3541 = vmatpush1.msra.mxu0 %v3425
  %3542 = vmatprep.subr.mxu0 0.0
  %3543 = vmatpush1.msra.mxu0 %v3419
  %3544 = vmatprep.subr.mxu0 0.0
  %3545 = vmatpush1.msra.mxu0 %v3413
  %3546 = vmatprep.subr.mxu0 0.0
  %3547 = vmatpush1.msra.mxu0 %v3407
  %3548 = vmatprep.subr.mxu0 0.0
  %3549 = vmatpush1.msra.mxu0 %v3401
  %3550 = vmatprep.subr.mxu0 0.0
  %3551 = vmatpush1.msra.mxu0 %v3395
  %3552 = vmatprep.subr.mxu0 0.0
  %3553 = vmatpush1.msra.mxu0 %v3389
  %3554 = vmatprep.subr.mxu0 0.0
  %3555 = vmatpush1.msra.mxu0 %v3429
  %3556 = vmatprep.subr.mxu0 0.0
  %3557 = vmatpush1.msra.mxu0 %v3423
  %3558 = vmatprep.subr.mxu0 0.0
  %3559 = vmatpush1.msra.mxu0 %v3417
  %3560 = vmatprep.subr.mxu0 0.0
  %3561 = vmatpush1.msra.mxu0 %v3411
  %3562 = vmatprep.subr.mxu0 0.0
  %3563 = vmatpush1.msra.mxu0 %v3405
  %3564 = vmatprep.subr.mxu0 0.0
  %3565 = vmatpush1.msra.mxu0 %v3399
  %3566 = vmatprep.subr.mxu0 0.0
  %3567 = vmatpush1.msra.mxu0 %v3393
  %3568 = vmatprep.subr.mxu0 0.0
  %3569 = vmatpush1.msra.mxu0 %v3387
  %3570 = vmatprep.subr.mxu0 0.0
  %3571 = vmatpush2.msra.mxu0 0.0
  %3572 = vmatprep.subr.mxu0 0.0
  %3573 = vmatpush2.msra.mxu0 0.0
  %3574 = vmatprep.subr.mxu0 0.0
  %3575 = vmatpush2.msra.mxu0 0.0
  %3576 = vmatprep.subr.mxu0 0.0
  %3577 = vmatpush2.msra.mxu0 0.0
  %3578 = vmatprep.subr.mxu0 0.0
  %3579 = vmatpush2.msra.mxu0 0.0
  %3580 = vmatprep.subr.mxu0 0.0
  %3581 = vmatpush2.msra.mxu0 0.0
  %3582 = vmatprep.subr.mxu0 0.0
  %3583 = vmatpush2.msra.mxu0 0.0
  %3584 = vmatprep.subr.mxu0 0.0
  %3585 = vmatpush2.msra.mxu0 0.0
  %3586 = vmatprep.subr.mxu0 0.0
  %3587 = vmatpush2.msra.mxu0 0.0
  %3588 = vmatprep.subr.mxu0 0.0
  %3589 = vmatpush2.msra.mxu0 0.0
  %3590 = vmatprep.subr.mxu0 0.0
  %3591 = vmatpush2.msra.mxu0 0.0
  %3592 = vmatprep.subr.mxu0 0.0
  %3593 = vmatpush2.msra.mxu0 0.0
  %3594 = vmatprep.subr.mxu0 0.0
  %3595 = vmatpush2.msra.mxu0 0.0
  %3596 = vmatprep.subr.mxu0 0.0
  %3597 = vmatpush2.msra.mxu0 0.0
  %3598 = vmatprep.subr.mxu0 0.0
  %3599 = vmatpush2.msra.mxu0 0.0
  %3600 = vmatprep.subr.mxu0 0.0
  %3601 = vmatpush2.msra.mxu0 0.0
  %3602 = vmatprep.mubr.f32.mxu0 0.0
  %3603 = vmatmul.mubr.f32.gmra.mxu0 %v1537
  %v3604 = vpop.f32.mrf.mxu0
  %v3605 = vadd.f32 %v3500, %v3604
  %v3606 = vpop.f32.mrf.mxu0
  %3607 = vmatprep.mubr.f32.mxu0 0.0
  %3608 = vmatmul.mubr.f32.gmra.mxu0 %v1538
  %v3609 = vpop.f32.mrf.mxu0
  %v3610 = vadd.f32 %v3505, %v3609
  %v3611 = vpop.f32.mrf.mxu0
  %3612 = vmatprep.mubr.f32.mxu0 0.0
  %3613 = vmatmul.mubr.f32.gmra.mxu0 %v1539
  %v3614 = vpop.f32.mrf.mxu0
  %v3615 = vadd.f32 %v3510, %v3614
  %v3616 = vpop.f32.mrf.mxu0
  %3617 = vmatprep.mubr.f32.mxu0 0.0
  %3618 = vmatmul.mubr.f32.gmra.mxu0 %v1540
  %v3619 = vpop.f32.mrf.mxu0
  %v3620 = vadd.f32 %v3515, %v3619
  %v3621 = vpop.f32.mrf.mxu0
  %3622 = vmatprep.mubr.f32.mxu0 0.0
  %3623 = vmatmul.mubr.f32.gmra.mxu0 %v1541
  %v3624 = vpop.f32.mrf.mxu0
  %v3625 = vadd.f32 %v3520, %v3624
  %v3626 = vpop.f32.mrf.mxu0
  %3627 = vmatprep.mubr.f32.mxu0 0.0
  %3628 = vmatmul.mubr.f32.gmra.mxu0 %v1542
  %v3629 = vpop.f32.mrf.mxu0
  %v3630 = vadd.f32 %v3525, %v3629
  %v3631 = vpop.f32.mrf.mxu0
  %3632 = vmatprep.mubr.f32.mxu0 0.0
  %3633 = vmatmul.mubr.f32.gmra.mxu0 %v1543
  %v3634 = vpop.f32.mrf.mxu0
  %v3635 = vadd.f32 %v3530, %v3634
  %v3636 = vpop.f32.mrf.mxu0
  %3637 = vmatprep.mubr.f32.mxu0 0.0
  %3638 = vmatmul.mubr.f32.gmra.mxu0 %v1544
  %v3639 = vpop.f32.mrf.mxu0
  %v3640 = vadd.f32 %v3535, %v3639
  %v3641 = vpop.f32.mrf.mxu0
  %3642 = vdwg.mxu0
  %v3643 = vadd.f32 %v3605, %v1655
  %v3644 = vadd.f32 %v3610, %v1655
  %v3645 = vadd.f32 %v3615, %v1655
  %v3646 = vadd.f32 %v3620, %v1655
  %v3647 = vadd.f32 %v3625, %v1655
  %v3648 = vadd.f32 %v3630, %v1655
  %v3649 = vadd.f32 %v3635, %v1655
  %v3650 = vadd.f32 %v3640, %v1655
  %3651 = vmatprep.subr.mxu0 %v1317
  %3652 = vmatpush1.msra.mxu0 %v1316
  %3653 = vmatprep.subr.mxu0 %v1314
  %3654 = vmatpush1.msra.mxu0 %v1313
  %3655 = vmatprep.subr.mxu0 %v1311
  %3656 = vmatpush1.msra.mxu0 %v1310
  %3657 = vmatprep.subr.mxu0 %v1308
  %3658 = vmatpush1.msra.mxu0 %v1307
  %3659 = vmatprep.subr.mxu0 %v1305
  %3660 = vmatpush1.msra.mxu0 %v1304
  %3661 = vmatprep.subr.mxu0 %v1302
  %3662 = vmatpush1.msra.mxu0 %v1301
  %3663 = vmatprep.subr.mxu0 %v1299
  %3664 = vmatpush1.msra.mxu0 %v1298
  %3665 = vmatprep.subr.mxu0 %v1296
  %3666 = vmatpush1.msra.mxu0 %v1295
  %3667 = vmatprep.subr.mxu0 %v1293
  %3668 = vmatpush1.msra.mxu0 %v1292
  %3669 = vmatprep.subr.mxu0 %v1290
  %3670 = vmatpush1.msra.mxu0 %v1289
  %3671 = vmatprep.subr.mxu0 %v1287
  %3672 = vmatpush1.msra.mxu0 %v1286
  %3673 = vmatprep.subr.mxu0 %v1284
  %3674 = vmatpush1.msra.mxu0 %v1283
  %3675 = vmatprep.subr.mxu0 %v1281
  %3676 = vmatpush1.msra.mxu0 %v1280
  %3677 = vmatprep.subr.mxu0 %v1278
  %3678 = vmatpush1.msra.mxu0 %v1277
  %3679 = vmatprep.subr.mxu0 %v1275
  %3680 = vmatpush1.msra.mxu0 %v1274
  %3681 = vmatprep.subr.mxu0 %v1272
  %3682 = vmatpush1.msra.mxu0 %v1271
  %3683 = vmatprep.subr.mxu0 0.0
  %3684 = vmatpush2.msra.mxu0 0.0
  %3685 = vmatprep.subr.mxu0 0.0
  %3686 = vmatpush2.msra.mxu0 0.0
  %3687 = vmatprep.subr.mxu0 0.0
  %3688 = vmatpush2.msra.mxu0 0.0
  %3689 = vmatprep.subr.mxu0 0.0
  %3690 = vmatpush2.msra.mxu0 0.0
  %3691 = vmatprep.subr.mxu0 0.0
  %3692 = vmatpush2.msra.mxu0 0.0
  %3693 = vmatprep.subr.mxu0 0.0
  %3694 = vmatpush2.msra.mxu0 0.0
  %3695 = vmatprep.subr.mxu0 0.0
  %3696 = vmatpush2.msra.mxu0 0.0
  %3697 = vmatprep.subr.mxu0 0.0
  %3698 = vmatpush2.msra.mxu0 0.0
  %3699 = vmatprep.subr.mxu0 0.0
  %3700 = vmatpush2.msra.mxu0 0.0
  %3701 = vmatprep.subr.mxu0 0.0
  %3702 = vmatpush2.msra.mxu0 0.0
  %3703 = vmatprep.subr.mxu0 0.0
  %3704 = vmatpush2.msra.mxu0 0.0
  %3705 = vmatprep.subr.mxu0 0.0
  %3706 = vmatpush2.msra.mxu0 0.0
  %3707 = vmatprep.subr.mxu0 0.0
  %3708 = vmatpush2.msra.mxu0 0.0
  %3709 = vmatprep.subr.mxu0 0.0
  %3710 = vmatpush2.msra.mxu0 0.0
  %3711 = vmatprep.subr.mxu0 0.0
  %3712 = vmatpush2.msra.mxu0 0.0
  %3713 = vmatprep.subr.mxu0 0.0
  %3714 = vmatpush2.msra.mxu0 0.0
  %3715 = vmatprep.mubr.f32.mxu0 0.0
  %3716 = vmatmul.mubr.f32.gmra.mxu0 %v3643
  %v3717 = vpop.f32.mrf.mxu0
  %v3718 = vadd.f32 0.0, %v3717
  %v3719 = vpop.f32.mrf.mxu0
  %v3720 = vadd.f32 0.0, %v3719
  %3721 = vmatprep.mubr.f32.mxu0 0.0
  %3722 = vmatmul.mubr.f32.gmra.mxu0 %v3644
  %v3723 = vpop.f32.mrf.mxu0
  %v3724 = vadd.f32 0.0, %v3723
  %v3725 = vpop.f32.mrf.mxu0
  %v3726 = vadd.f32 0.0, %v3725
  %3727 = vmatprep.mubr.f32.mxu0 0.0
  %3728 = vmatmul.mubr.f32.gmra.mxu0 %v3645
  %v3729 = vpop.f32.mrf.mxu0
  %v3730 = vadd.f32 0.0, %v3729
  %v3731 = vpop.f32.mrf.mxu0
  %v3732 = vadd.f32 0.0, %v3731
  %3733 = vmatprep.mubr.f32.mxu0 0.0
  %3734 = vmatmul.mubr.f32.gmra.mxu0 %v3646
  %v3735 = vpop.f32.mrf.mxu0
  %v3736 = vadd.f32 0.0, %v3735
  %v3737 = vpop.f32.mrf.mxu0
  %v3738 = vadd.f32 0.0, %v3737
  %3739 = vmatprep.mubr.f32.mxu0 0.0
  %3740 = vmatmul.mubr.f32.gmra.mxu0 %v3647
  %v3741 = vpop.f32.mrf.mxu0
  %v3742 = vadd.f32 0.0, %v3741
  %v3743 = vpop.f32.mrf.mxu0
  %v3744 = vadd.f32 0.0, %v3743
  %3745 = vmatprep.mubr.f32.mxu0 0.0
  %3746 = vmatmul.mubr.f32.gmra.mxu0 %v3648
  %v3747 = vpop.f32.mrf.mxu0
  %v3748 = vadd.f32 0.0, %v3747
  %v3749 = vpop.f32.mrf.mxu0
  %v3750 = vadd.f32 0.0, %v3749
  %3751 = vmatprep.mubr.f32.mxu0 0.0
  %3752 = vmatmul.mubr.f32.gmra.mxu0 %v3649
  %v3753 = vpop.f32.mrf.mxu0
  %v3754 = vadd.f32 0.0, %v3753
  %v3755 = vpop.f32.mrf.mxu0
  %v3756 = vadd.f32 0.0, %v3755
  %3757 = vmatprep.mubr.f32.mxu0 0.0
  %3758 = vmatmul.mubr.f32.gmra.mxu0 %v3650
  %v3759 = vpop.f32.mrf.mxu0
  %v3760 = vadd.f32 0.0, %v3759
  %v3761 = vpop.f32.mrf.mxu0
  %v3762 = vadd.f32 0.0, %v3761
  %3763 = vdwg.mxu0
  %3764 = vmatprep.subr.mxu0 0.0
  %3765 = vmatpush1.msra.mxu0 %v1318
  %3766 = vmatprep.subr.mxu0 0.0
  %3767 = vmatpush1.msra.mxu0 %v1315
  %3768 = vmatprep.subr.mxu0 0.0
  %3769 = vmatpush1.msra.mxu0 %v1312
  %3770 = vmatprep.subr.mxu0 0.0
  %3771 = vmatpush1.msra.mxu0 %v1309
  %3772 = vmatprep.subr.mxu0 0.0
  %3773 = vmatpush1.msra.mxu0 %v1306
  %3774 = vmatprep.subr.mxu0 0.0
  %3775 = vmatpush1.msra.mxu0 %v1303
  %3776 = vmatprep.subr.mxu0 0.0
  %3777 = vmatpush1.msra.mxu0 %v1300
  %3778 = vmatprep.subr.mxu0 0.0
  %3779 = vmatpush1.msra.mxu0 %v1297
  %3780 = vmatprep.subr.mxu0 0.0
  %3781 = vmatpush1.msra.mxu0 %v1294
  %3782 = vmatprep.subr.mxu0 0.0
  %3783 = vmatpush1.msra.mxu0 %v1291
  %3784 = vmatprep.subr.mxu0 0.0
  %3785 = vmatpush1.msra.mxu0 %v1288
  %3786 = vmatprep.subr.mxu0 0.0
  %3787 = vmatpush1.msra.mxu0 %v1285
  %3788 = vmatprep.subr.mxu0 0.0
  %3789 = vmatpush1.msra.mxu0 %v1282
  %3790 = vmatprep.subr.mxu0 0.0
  %3791 = vmatpush1.msra.mxu0 %v1279
  %3792 = vmatprep.subr.mxu0 0.0
  %3793 = vmatpush1.msra.mxu0 %v1276
  %3794 = vmatprep.subr.mxu0 0.0
  %3795 = vmatpush1.msra.mxu0 %v1273
  %3796 = vmatprep.subr.mxu0 0.0
  %3797 = vmatpush2.msra.mxu0 0.0
  %3798 = vmatprep.subr.mxu0 0.0
  %3799 = vmatpush2.msra.mxu0 0.0
  %3800 = vmatprep.subr.mxu0 0.0
  %3801 = vmatpush2.msra.mxu0 0.0
  %3802 = vmatprep.subr.mxu0 0.0
  %3803 = vmatpush2.msra.mxu0 0.0
  %3804 = vmatprep.subr.mxu0 0.0
  %3805 = vmatpush2.msra.mxu0 0.0
  %3806 = vmatprep.subr.mxu0 0.0
  %3807 = vmatpush2.msra.mxu0 0.0
  %3808 = vmatprep.subr.mxu0 0.0
  %3809 = vmatpush2.msra.mxu0 0.0
  %3810 = vmatprep.subr.mxu0 0.0
  %3811 = vmatpush2.msra.mxu0 0.0
  %3812 = vmatprep.subr.mxu0 0.0
  %3813 = vmatpush2.msra.mxu0 0.0
  %3814 = vmatprep.subr.mxu0 0.0
  %3815 = vmatpush2.msra.mxu0 0.0
  %3816 = vmatprep.subr.mxu0 0.0
  %3817 = vmatpush2.msra.mxu0 0.0
  %3818 = vmatprep.subr.mxu0 0.0
  %3819 = vmatpush2.msra.mxu0 0.0
  %3820 = vmatprep.subr.mxu0 0.0
  %3821 = vmatpush2.msra.mxu0 0.0
  %3822 = vmatprep.subr.mxu0 0.0
  %3823 = vmatpush2.msra.mxu0 0.0
  %3824 = vmatprep.subr.mxu0 0.0
  %3825 = vmatpush2.msra.mxu0 0.0
  %3826 = vmatprep.subr.mxu0 0.0
  %3827 = vmatpush2.msra.mxu0 0.0
  %3828 = vmatprep.mubr.f32.mxu0 0.0
  %3829 = vmatmul.mubr.f32.gmra.mxu0 %v3643
  %v3830 = vpop.f32.mrf.mxu0
  %v3831 = vadd.f32 0.0, %v3830
  %v3832 = vpop.f32.mrf.mxu0
  %3833 = vmatprep.mubr.f32.mxu0 0.0
  %3834 = vmatmul.mubr.f32.gmra.mxu0 %v3644
  %v3835 = vpop.f32.mrf.mxu0
  %v3836 = vadd.f32 0.0, %v3835
  %v3837 = vpop.f32.mrf.mxu0
  %3838 = vmatprep.mubr.f32.mxu0 0.0
  %3839 = vmatmul.mubr.f32.gmra.mxu0 %v3645
  %v3840 = vpop.f32.mrf.mxu0
  %v3841 = vadd.f32 0.0, %v3840
  %v3842 = vpop.f32.mrf.mxu0
  %3843 = vmatprep.mubr.f32.mxu0 0.0
  %3844 = vmatmul.mubr.f32.gmra.mxu0 %v3646
  %v3845 = vpop.f32.mrf.mxu0
  %v3846 = vadd.f32 0.0, %v3845
  %v3847 = vpop.f32.mrf.mxu0
  %3848 = vmatprep.mubr.f32.mxu0 0.0
  %3849 = vmatmul.mubr.f32.gmra.mxu0 %v3647
  %v3850 = vpop.f32.mrf.mxu0
  %v3851 = vadd.f32 0.0, %v3850
  %v3852 = vpop.f32.mrf.mxu0
  %3853 = vmatprep.mubr.f32.mxu0 0.0
  %3854 = vmatmul.mubr.f32.gmra.mxu0 %v3648
  %v3855 = vpop.f32.mrf.mxu0
  %v3856 = vadd.f32 0.0, %v3855
  %v3857 = vpop.f32.mrf.mxu0
  %3858 = vmatprep.mubr.f32.mxu0 0.0
  %3859 = vmatmul.mubr.f32.gmra.mxu0 %v3649
  %v3860 = vpop.f32.mrf.mxu0
  %v3861 = vadd.f32 0.0, %v3860
  %v3862 = vpop.f32.mrf.mxu0
  %3863 = vmatprep.mubr.f32.mxu0 0.0
  %3864 = vmatmul.mubr.f32.gmra.mxu0 %v3650
  %v3865 = vpop.f32.mrf.mxu0
  %v3866 = vadd.f32 0.0, %v3865
  %v3867 = vpop.f32.mrf.mxu0
  %3868 = vdwg.mxu0
  %3869 = vmatprep.subr.mxu0 0.0
  %3870 = vmatpush1.msra.mxu0 %v3762
  %3871 = vmatprep.subr.mxu0 0.0
  %3872 = vmatpush1.msra.mxu0 %v3756
  %3873 = vmatprep.subr.mxu0 0.0
  %3874 = vmatpush1.msra.mxu0 %v3750
  %3875 = vmatprep.subr.mxu0 0.0
  %3876 = vmatpush1.msra.mxu0 %v3744
  %3877 = vmatprep.subr.mxu0 0.0
  %3878 = vmatpush1.msra.mxu0 %v3738
  %3879 = vmatprep.subr.mxu0 0.0
  %3880 = vmatpush1.msra.mxu0 %v3732
  %3881 = vmatprep.subr.mxu0 0.0
  %3882 = vmatpush1.msra.mxu0 %v3726
  %3883 = vmatprep.subr.mxu0 0.0
  %3884 = vmatpush1.msra.mxu0 %v3720
  %3885 = vmatprep.subr.mxu0 0.0
  %3886 = vmatpush1.msra.mxu0 %v3760
  %3887 = vmatprep.subr.mxu0 0.0
  %3888 = vmatpush1.msra.mxu0 %v3754
  %3889 = vmatprep.subr.mxu0 0.0
  %3890 = vmatpush1.msra.mxu0 %v3748
  %3891 = vmatprep.subr.mxu0 0.0
  %3892 = vmatpush1.msra.mxu0 %v3742
  %3893 = vmatprep.subr.mxu0 0.0
  %3894 = vmatpush1.msra.mxu0 %v3736
  %3895 = vmatprep.subr.mxu0 0.0
  %3896 = vmatpush1.msra.mxu0 %v3730
  %3897 = vmatprep.subr.mxu0 0.0
  %3898 = vmatpush1.msra.mxu0 %v3724
  %3899 = vmatprep.subr.mxu0 0.0
  %3900 = vmatpush1.msra.mxu0 %v3718
  %3901 = vmatprep.subr.mxu0 0.0
  %3902 = vmatpush2.msra.mxu0 0.0
  %3903 = vmatprep.subr.mxu0 0.0
  %3904 = vmatpush2.msra.mxu0 0.0
  %3905 = vmatprep.subr.mxu0 0.0
  %3906 = vmatpush2.msra.mxu0 0.0
  %3907 = vmatprep.subr.mxu0 0.0
  %3908 = vmatpush2.msra.mxu0 0.0
  %3909 = vmatprep.subr.mxu0 0.0
  %3910 = vmatpush2.msra.mxu0 0.0
  %3911 = vmatprep.subr.mxu0 0.0
  %3912 = vmatpush2.msra.mxu0 0.0
  %3913 = vmatprep.subr.mxu0 0.0
  %3914 = vmatpush2.msra.mxu0 0.0
  %3915 = vmatprep.subr.mxu0 0.0
  %3916 = vmatpush2.msra.mxu0 0.0
  %3917 = vmatprep.subr.mxu0 0.0
  %3918 = vmatpush2.msra.mxu0 0.0
  %3919 = vmatprep.subr.mxu0 0.0
  %3920 = vmatpush2.msra.mxu0 0.0
  %3921 = vmatprep.subr.mxu0 0.0
  %3922 = vmatpush2.msra.mxu0 0.0
  %3923 = vmatprep.subr.mxu0 0.0
  %3924 = vmatpush2.msra.mxu0 0.0
  %3925 = vmatprep.subr.mxu0 0.0
  %3926 = vmatpush2.msra.mxu0 0.0
  %3927 = vmatprep.subr.mxu0 0.0
  %3928 = vmatpush2.msra.mxu0 0.0
  %3929 = vmatprep.subr.mxu0 0.0
  %3930 = vmatpush2.msra.mxu0 0.0
  %3931 = vmatprep.subr.mxu0 0.0
  %3932 = vmatpush2.msra.mxu0 0.0
  %3933 = vmatprep.mubr.f32.mxu0 0.0
  %3934 = vmatmul.mubr.f32.gmra.mxu0 %v1537
  %v3935 = vpop.f32.mrf.mxu0
  %v3936 = vadd.f32 %v3831, %v3935
  %v3937 = vpop.f32.mrf.mxu0
  %3938 = vmatprep.mubr.f32.mxu0 0.0
  %3939 = vmatmul.mubr.f32.gmra.mxu0 %v1538
  %v3940 = vpop.f32.mrf.mxu0
  %v3941 = vadd.f32 %v3836, %v3940
  %v3942 = vpop.f32.mrf.mxu0
  %3943 = vmatprep.mubr.f32.mxu0 0.0
  %3944 = vmatmul.mubr.f32.gmra.mxu0 %v1539
  %v3945 = vpop.f32.mrf.mxu0
  %v3946 = vadd.f32 %v3841, %v3945
  %v3947 = vpop.f32.mrf.mxu0
  %3948 = vmatprep.mubr.f32.mxu0 0.0
  %3949 = vmatmul.mubr.f32.gmra.mxu0 %v1540
  %v3950 = vpop.f32.mrf.mxu0
  %v3951 = vadd.f32 %v3846, %v3950
  %v3952 = vpop.f32.mrf.mxu0
  %3953 = vmatprep.mubr.f32.mxu0 0.0
  %3954 = vmatmul.mubr.f32.gmra.mxu0 %v1541
  %v3955 = vpop.f32.mrf.mxu0
  %v3956 = vadd.f32 %v3851, %v3955
  %v3957 = vpop.f32.mrf.mxu0
  %3958 = vmatprep.mubr.f32.mxu0 0.0
  %3959 = vmatmul.mubr.f32.gmra.mxu0 %v1542
  %v3960 = vpop.f32.mrf.mxu0
  %v3961 = vadd.f32 %v3856, %v3960
  %v3962 = vpop.f32.mrf.mxu0
  %3963 = vmatprep.mubr.f32.mxu0 0.0
  %3964 = vmatmul.mubr.f32.gmra.mxu0 %v1543
  %v3965 = vpop.f32.mrf.mxu0
  %v3966 = vadd.f32 %v3861, %v3965
  %v3967 = vpop.f32.mrf.mxu0
  %3968 = vmatprep.mubr.f32.mxu0 0.0
  %3969 = vmatmul.mubr.f32.gmra.mxu0 %v1544
  %v3970 = vpop.f32.mrf.mxu0
  %v3971 = vadd.f32 %v3866, %v3970
  %v3972 = vpop.f32.mrf.mxu0
  %3973 = vdwg.mxu0
  %v3974 = vadd.f32 %v3936, %v1655
  %v3975 = vadd.f32 %v3941, %v1655
  %v3976 = vadd.f32 %v3946, %v1655
  %v3977 = vadd.f32 %v3951, %v1655
  %v3978 = vadd.f32 %v3956, %v1655
  %v3979 = vadd.f32 %v3961, %v1655
  %v3980 = vadd.f32 %v3966, %v1655
  %v3981 = vadd.f32 %v3971, %v1655
  %v3982 = vld [vmem:[%s8] sm:$0xff]
  %v3983 = vld [vmem:[%s8 + $0x8] sm:$0xff]
  %v3984 = vld [vmem:[%s8 + $0x10] sm:$0xff]
  %v3985 = vld [vmem:[%s8 + $0x18] sm:$0xff]
  %v3986 = vld [vmem:[%s8 + $0x20] sm:$0xff]
  %v3987 = vld [vmem:[%s8 + $0x28] sm:$0xff]
  %v3988 = vld [vmem:[%s8 + $0x30] sm:$0xff]
  %v3989 = vld [vmem:[%s8 + $0x38] sm:$0xff]
  %v3990 = vld [vmem:[%s8 + $0x40] sm:$0xff]
  %v3991 = vld [vmem:[%s8 + $0x48] sm:$0xff]
  %v3992 = vld [vmem:[%s8 + $0x50] sm:$0xff]
  %v3993 = vld [vmem:[%s8 + $0x58] sm:$0xff]
  %v3994 = vld [vmem:[%s8 + $0x60] sm:$0xff]
  %v3995 = vld [vmem:[%s8 + $0x68] sm:$0xff]
  %v3996 = vld [vmem:[%s8 + $0x70] sm:$0xff]
  %v3997 = vld [vmem:[%s8 + $0x78] sm:$0xff]
  %v3998 = vld [vmem:[%s9] sm:$0x1]
  %v4000 = vlaneseq
  %v4001 = vshrl.u32 %v4000, 7
  %v4002 = vsub.s32 0, %v4001
  %v4003 = vrot.slane %v3998, %v4002
  %4005 = vmatprep.subr.mxu0 0.0
  %4006 = vmatpush1.msra.mxu0 %v3997
  %4007 = vmatprep.subr.mxu0 0.0
  %4008 = vmatpush1.msra.mxu0 %v3996
  %4009 = vmatprep.subr.mxu0 0.0
  %4010 = vmatpush1.msra.mxu0 %v3995
  %4011 = vmatprep.subr.mxu0 0.0
  %4012 = vmatpush1.msra.mxu0 %v3994
  %4013 = vmatprep.subr.mxu0 0.0
  %4014 = vmatpush1.msra.mxu0 %v3993
  %4015 = vmatprep.subr.mxu0 0.0
  %4016 = vmatpush1.msra.mxu0 %v3992
  %4017 = vmatprep.subr.mxu0 0.0
  %4018 = vmatpush1.msra.mxu0 %v3991
  %4019 = vmatprep.subr.mxu0 0.0
  %4020 = vmatpush1.msra.mxu0 %v3990
  %4021 = vmatprep.subr.mxu0 0.0
  %4022 = vmatpush1.msra.mxu0 %v3989
  %4023 = vmatprep.subr.mxu0 0.0
  %4024 = vmatpush1.msra.mxu0 %v3988
  %4025 = vmatprep.subr.mxu0 0.0
  %4026 = vmatpush1.msra.mxu0 %v3987
  %4027 = vmatprep.subr.mxu0 0.0
  %4028 = vmatpush1.msra.mxu0 %v3986
  %4029 = vmatprep.subr.mxu0 0.0
  %4030 = vmatpush1.msra.mxu0 %v3985
  %4031 = vmatprep.subr.mxu0 0.0
  %4032 = vmatpush1.msra.mxu0 %v3984
  %4033 = vmatprep.subr.mxu0 0.0
  %4034 = vmatpush1.msra.mxu0 %v3983
  %4035 = vmatprep.subr.mxu0 0.0
  %4036 = vmatpush1.msra.mxu0 %v3982
  %4037 = vmatprep.subr.mxu0 0.0
  %4038 = vmatpush2.msra.mxu0 0.0
  %4039 = vmatprep.subr.mxu0 0.0
  %4040 = vmatpush2.msra.mxu0 0.0
  %4041 = vmatprep.subr.mxu0 0.0
  %4042 = vmatpush2.msra.mxu0 0.0
  %4043 = vmatprep.subr.mxu0 0.0
  %4044 = vmatpush2.msra.mxu0 0.0
  %4045 = vmatprep.subr.mxu0 0.0
  %4046 = vmatpush2.msra.mxu0 0.0
  %4047 = vmatprep.subr.mxu0 0.0
  %4048 = vmatpush2.msra.mxu0 0.0
  %4049 = vmatprep.subr.mxu0 0.0
  %4050 = vmatpush2.msra.mxu0 0.0
  %4051 = vmatprep.subr.mxu0 0.0
  %4052 = vmatpush2.msra.mxu0 0.0
  %4053 = vmatprep.subr.mxu0 0.0
  %4054 = vmatpush2.msra.mxu0 0.0
  %4055 = vmatprep.subr.mxu0 0.0
  %4056 = vmatpush2.msra.mxu0 0.0
  %4057 = vmatprep.subr.mxu0 0.0
  %4058 = vmatpush2.msra.mxu0 0.0
  %4059 = vmatprep.subr.mxu0 0.0
  %4060 = vmatpush2.msra.mxu0 0.0
  %4061 = vmatprep.subr.mxu0 0.0
  %4062 = vmatpush2.msra.mxu0 0.0
  %4063 = vmatprep.subr.mxu0 0.0
  %4064 = vmatpush2.msra.mxu0 0.0
  %4065 = vmatprep.subr.mxu0 0.0
  %4066 = vmatpush2.msra.mxu0 0.0
  %4067 = vmatprep.subr.mxu0 0.0
  %4068 = vmatpush2.msra.mxu0 0.0
  %4069 = vmatprep.mubr.f32.mxu0 0.0
  %4070 = vmatmul.mubr.f32.gmra.mxu0 %v3974
  %v4071 = vpop.f32.mrf.mxu0
  %v4072 = vadd.f32 %v4003, %v4071
  %v4073 = vpop.f32.mrf.mxu0
  %4074 = vmatprep.mubr.f32.mxu0 0.0
  %4075 = vmatmul.mubr.f32.gmra.mxu0 %v3975
  %v4076 = vpop.f32.mrf.mxu0
  %v4077 = vadd.f32 %v4003, %v4076
  %v4078 = vpop.f32.mrf.mxu0
  %4079 = vmatprep.mubr.f32.mxu0 0.0
  %4080 = vmatmul.mubr.f32.gmra.mxu0 %v3976
  %v4081 = vpop.f32.mrf.mxu0
  %v4082 = vadd.f32 %v4003, %v4081
  %v4083 = vpop.f32.mrf.mxu0
  %4084 = vmatprep.mubr.f32.mxu0 0.0
  %4085 = vmatmul.mubr.f32.gmra.mxu0 %v3977
  %v4086 = vpop.f32.mrf.mxu0
  %v4087 = vadd.f32 %v4003, %v4086
  %v4088 = vpop.f32.mrf.mxu0
  %4089 = vmatprep.mubr.f32.mxu0 0.0
  %4090 = vmatmul.mubr.f32.gmra.mxu0 %v3978
  %v4091 = vpop.f32.mrf.mxu0
  %v4092 = vadd.f32 %v4003, %v4091
  %v4093 = vpop.f32.mrf.mxu0
  %4094 = vmatprep.mubr.f32.mxu0 0.0
  %4095 = vmatmul.mubr.f32.gmra.mxu0 %v3979
  %v4096 = vpop.f32.mrf.mxu0
  %v4097 = vadd.f32 %v4003, %v4096
  %v4098 = vpop.f32.mrf.mxu0
  %4099 = vmatprep.mubr.f32.mxu0 0.0
  %4100 = vmatmul.mubr.f32.gmra.mxu0 %v3980
  %v4101 = vpop.f32.mrf.mxu0
  %v4102 = vadd.f32 %v4003, %v4101
  %v4103 = vpop.f32.mrf.mxu0
  %4104 = vmatprep.mubr.f32.mxu0 0.0
  %4105 = vmatmul.mubr.f32.gmra.mxu0 %v3981
  %v4106 = vpop.f32.mrf.mxu0
  %v4107 = vadd.f32 %v4003, %v4106
  %v4108 = vpop.f32.mrf.mxu0
  %4109 = vdwg.mxu0
  %vm4110 = vcmp.gt.f32.partialorder %v4072, 0.0
  %vm4111 = vcmp.gt.f32.partialorder %v4077, 0.0
  %vm4112 = vcmp.gt.f32.partialorder %v4082, 0.0
  %vm4113 = vcmp.gt.f32.partialorder %v4087, 0.0
  %vm4114 = vcmp.gt.f32.partialorder %v4092, 0.0
  %vm4115 = vcmp.gt.f32.partialorder %v4097, 0.0
  %vm4116 = vcmp.gt.f32.partialorder %v4102, 0.0
  %vm4117 = vcmp.gt.f32.partialorder %v4107, 0.0
  %v4118 = vmul.f32 %v4072, 0.01
  %v4119 = vmul.f32 %v4077, 0.01
  %v4120 = vmul.f32 %v4082, 0.01
  %v4121 = vmul.f32 %v4087, 0.01
  %v4122 = vmul.f32 %v4092, 0.01
  %v4123 = vmul.f32 %v4097, 0.01
  %v4124 = vmul.f32 %v4102, 0.01
  %v4125 = vmul.f32 %v4107, 0.01
  %v4126 = vsel %vm4110, %v4072, %v4118
  %v4127 = vsel %vm4111, %v4077, %v4119
  %v4128 = vsel %vm4112, %v4082, %v4120
  %v4129 = vsel %vm4113, %v4087, %v4121
  %v4130 = vsel %vm4114, %v4092, %v4122
  %v4131 = vsel %vm4115, %v4097, %v4123
  %v4132 = vsel %vm4116, %v4102, %v4124
  %v4133 = vsel %vm4117, %v4107, %v4125
  %v4134 = vld [vmem:[%s10] sm:$0xff]
  %v4135 = vld [vmem:[%s10 + $0x8] sm:$0xff]
  %v4136 = vld [vmem:[%s10 + $0x10] sm:$0xff]
  %v4137 = vld [vmem:[%s10 + $0x18] sm:$0xff]
  %v4138 = vld [vmem:[%s10 + $0x20] sm:$0xff]
  %v4139 = vld [vmem:[%s10 + $0x28] sm:$0xff]
  %v4140 = vld [vmem:[%s10 + $0x30] sm:$0xff]
  %v4141 = vld [vmem:[%s10 + $0x38] sm:$0xff]
  %v4142 = vld [vmem:[%s10 + $0x40] sm:$0xff]
  %v4143 = vld [vmem:[%s10 + $0x48] sm:$0xff]
  %v4144 = vld [vmem:[%s10 + $0x50] sm:$0xff]
  %v4145 = vld [vmem:[%s10 + $0x58] sm:$0xff]
  %v4146 = vld [vmem:[%s10 + $0x60] sm:$0xff]
  %v4147 = vld [vmem:[%s10 + $0x68] sm:$0xff]
  %v4148 = vld [vmem:[%s10 + $0x70] sm:$0xff]
  %v4149 = vld [vmem:[%s10 + $0x78] sm:$0xff]
  %v4150 = vld [vmem:[%s11] sm:$0x1]
  %v4152 = vlaneseq
  %v4153 = vshrl.u32 %v4152, 7
  %v4154 = vsub.s32 0, %v4153
  %v4155 = vrot.slane %v4150, %v4154
  %4157 = vmatprep.subr.mxu0 0.0
  %4158 = vmatpush1.msra.mxu0 %v4149
  %4159 = vmatprep.subr.mxu0 0.0
  %4160 = vmatpush1.msra.mxu0 %v4148
  %4161 = vmatprep.subr.mxu0 0.0
  %4162 = vmatpush1.msra.mxu0 %v4147
  %4163 = vmatprep.subr.mxu0 0.0
  %4164 = vmatpush1.msra.mxu0 %v4146
  %4165 = vmatprep.subr.mxu0 0.0
  %4166 = vmatpush1.msra.mxu0 %v4145
  %4167 = vmatprep.subr.mxu0 0.0
  %4168 = vmatpush1.msra.mxu0 %v4144
  %4169 = vmatprep.subr.mxu0 0.0
  %4170 = vmatpush1.msra.mxu0 %v4143
  %4171 = vmatprep.subr.mxu0 0.0
  %4172 = vmatpush1.msra.mxu0 %v4142
  %4173 = vmatprep.subr.mxu0 0.0
  %4174 = vmatpush1.msra.mxu0 %v4141
  %4175 = vmatprep.subr.mxu0 0.0
  %4176 = vmatpush1.msra.mxu0 %v4140
  %4177 = vmatprep.subr.mxu0 0.0
  %4178 = vmatpush1.msra.mxu0 %v4139
  %4179 = vmatprep.subr.mxu0 0.0
  %4180 = vmatpush1.msra.mxu0 %v4138
  %4181 = vmatprep.subr.mxu0 0.0
  %4182 = vmatpush1.msra.mxu0 %v4137
  %4183 = vmatprep.subr.mxu0 0.0
  %4184 = vmatpush1.msra.mxu0 %v4136
  %4185 = vmatprep.subr.mxu0 0.0
  %4186 = vmatpush1.msra.mxu0 %v4135
  %4187 = vmatprep.subr.mxu0 0.0
  %4188 = vmatpush1.msra.mxu0 %v4134
  %4189 = vmatprep.subr.mxu0 0.0
  %4190 = vmatpush2.msra.mxu0 0.0
  %4191 = vmatprep.subr.mxu0 0.0
  %4192 = vmatpush2.msra.mxu0 0.0
  %4193 = vmatprep.subr.mxu0 0.0
  %4194 = vmatpush2.msra.mxu0 0.0
  %4195 = vmatprep.subr.mxu0 0.0
  %4196 = vmatpush2.msra.mxu0 0.0
  %4197 = vmatprep.subr.mxu0 0.0
  %4198 = vmatpush2.msra.mxu0 0.0
  %4199 = vmatprep.subr.mxu0 0.0
  %4200 = vmatpush2.msra.mxu0 0.0
  %4201 = vmatprep.subr.mxu0 0.0
  %4202 = vmatpush2.msra.mxu0 0.0
  %4203 = vmatprep.subr.mxu0 0.0
  %4204 = vmatpush2.msra.mxu0 0.0
  %4205 = vmatprep.subr.mxu0 0.0
  %4206 = vmatpush2.msra.mxu0 0.0
  %4207 = vmatprep.subr.mxu0 0.0
  %4208 = vmatpush2.msra.mxu0 0.0
  %4209 = vmatprep.subr.mxu0 0.0
  %4210 = vmatpush2.msra.mxu0 0.0
  %4211 = vmatprep.subr.mxu0 0.0
  %4212 = vmatpush2.msra.mxu0 0.0
  %4213 = vmatprep.subr.mxu0 0.0
  %4214 = vmatpush2.msra.mxu0 0.0
  %4215 = vmatprep.subr.mxu0 0.0
  %4216 = vmatpush2.msra.mxu0 0.0
  %4217 = vmatprep.subr.mxu0 0.0
  %4218 = vmatpush2.msra.mxu0 0.0
  %4219 = vmatprep.subr.mxu0 0.0
  %4220 = vmatpush2.msra.mxu0 0.0
  %4221 = vmatprep.mubr.f32.mxu0 0.0
  %4222 = vmatmul.mubr.f32.gmra.mxu0 %v4126
  %v4223 = vpop.f32.mrf.mxu0
  %v4224 = vadd.f32 %v4155, %v4223
  %v4225 = vpop.f32.mrf.mxu0
  %4226 = vmatprep.mubr.f32.mxu0 0.0
  %4227 = vmatmul.mubr.f32.gmra.mxu0 %v4127
  %v4228 = vpop.f32.mrf.mxu0
  %v4229 = vadd.f32 %v4155, %v4228
  %v4230 = vpop.f32.mrf.mxu0
  %4231 = vmatprep.mubr.f32.mxu0 0.0
  %4232 = vmatmul.mubr.f32.gmra.mxu0 %v4128
  %v4233 = vpop.f32.mrf.mxu0
  %v4234 = vadd.f32 %v4155, %v4233
  %v4235 = vpop.f32.mrf.mxu0
  %4236 = vmatprep.mubr.f32.mxu0 0.0
  %4237 = vmatmul.mubr.f32.gmra.mxu0 %v4129
  %v4238 = vpop.f32.mrf.mxu0
  %v4239 = vadd.f32 %v4155, %v4238
  %v4240 = vpop.f32.mrf.mxu0
  %4241 = vmatprep.mubr.f32.mxu0 0.0
  %4242 = vmatmul.mubr.f32.gmra.mxu0 %v4130
  %v4243 = vpop.f32.mrf.mxu0
  %v4244 = vadd.f32 %v4155, %v4243
  %v4245 = vpop.f32.mrf.mxu0
  %4246 = vmatprep.mubr.f32.mxu0 0.0
  %4247 = vmatmul.mubr.f32.gmra.mxu0 %v4131
  %v4248 = vpop.f32.mrf.mxu0
  %v4249 = vadd.f32 %v4155, %v4248
  %v4250 = vpop.f32.mrf.mxu0
  %4251 = vmatprep.mubr.f32.mxu0 0.0
  %4252 = vmatmul.mubr.f32.gmra.mxu0 %v4132
  %v4253 = vpop.f32.mrf.mxu0
  %v4254 = vadd.f32 %v4155, %v4253
  %v4255 = vpop.f32.mrf.mxu0
  %4256 = vmatprep.mubr.f32.mxu0 0.0
  %4257 = vmatmul.mubr.f32.gmra.mxu0 %v4133
  %v4258 = vpop.f32.mrf.mxu0
  %v4259 = vadd.f32 %v4155, %v4258
  %v4260 = vpop.f32.mrf.mxu0
  %4261 = vdwg.mxu0
  %4262 = vst [vmem:[%s12] sm:$0xff] %v4224
  %4263 = vst [vmem:[%s12 + $0x8] sm:$0xff] %v4229
  %4264 = vst [vmem:[%s12 + $0x10] sm:$0xff] %v4234
  %4265 = vst [vmem:[%s12 + $0x18] sm:$0xff] %v4239
  %4266 = vst [vmem:[%s12 + $0x20] sm:$0xff] %v4244
  %4267 = vst [vmem:[%s12 + $0x28] sm:$0xff] %v4249
  %4268 = vst [vmem:[%s12 + $0x30] sm:$0xff] %v4254
  %4269 = vst [vmem:[%s12 + $0x38] sm:$0xff] %v4259
  // Predicated region
  $region50: #{forward.1} parent=0 // pred_check
    _
  $region51: #{forward.1} parent=0 // pred_check_branch
    %4271 = sbr.rel (0) target = $region53
  $region52: #{forward.1} parent=0 // pred_region
    _
  $region53: #{forward.1} parent=0 // pred_fallthru
    _
  // Predicated region
  $region54: #{forward.1} parent=0 // pred_check
    _
  $region55: #{forward.1} parent=0 // pred_check_branch
    %4273 = sbr.rel (0) target = $region57
  $region56: #{forward.1} parent=0 // pred_region
    _
  $region57: #{forward.1} parent=0 // pred_fallthru
    _

</llo_original>
